<compile_context>
chip_gen: v5e
topology: v5e:2x2
jax: 0.10.0
libtpu: 0.0.40
codegen_flags: <defaults>
</compile_context>

<pallas_src>
import functools

import jax
import jax.numpy as jnp
from jax.experimental import pallas as pl
from jax.experimental.pallas import tpu as pltpu


# --------------------------------------------------------------------------
# Per-generation VMEM budget
# --------------------------------------------------------------------------
def _vmem_budget_bytes():
    """Scoped-VMEM limit derived from the actual chip, with headroom."""
    cap = None
    try:
        cap = int(getattr(pltpu.get_tpu_info(), "vmem_capacity_bytes", 0)) or None
    except Exception:
        cap = None
    if cap is None:
        return 32 * 1024 * 1024                       # conservative, proven-safe default
    # v7x: 64 MiB physical -> 56 MiB; v5e/v6e: 128 MiB -> 100 MiB.
    return min(max(cap - 8 * 1024 * 1024, 16 * 1024 * 1024), 100 * 1024 * 1024)


# --------------------------------------------------------------------------
# Shared in-kernel helpers
# --------------------------------------------------------------------------
def _channel_mlp_sigmoid(w1, w2, avg, mx):
    """sigmoid(W2 @ (relu(W1@avg) + relu(W1@max))) via one stacked (C,2) MXU push.

    Equivalent to the reference only because both 1x1 convs are bias-free.
    """
    stacked = jnp.concatenate([avg, mx], axis=1)                               # (C, 2)
    hid = jnp.maximum(
        jnp.dot(w1, stacked, preferred_element_type=jnp.float32), 0.0)        # (Cr, 2)
    hid = jnp.sum(hid, axis=1, keepdims=True)                                  # (Cr, 1)
    logits = jnp.dot(w2, hid, preferred_element_type=jnp.float32)              # (C, 1)
    return jax.nn.sigmoid(logits)                                              # (C, 1)


def _spatial_conv_sigmoid(ws_ref, pmap_ref, acc_ref, avg_map, max_map, *, ksize, pad):
    """k x k conv over the stacked [avg, max] maps + sigmoid.

    Zero-padded pooled maps live in a VMEM scratch (padding is free, and reloading
    per-(plane,dy) bands bounds live ranges at large H*W); the 2*k*k weights are
    SMEM scalars; the dx shifts are lane slices of a band loaded once per (c, dy).
    """
    h, w = avg_map.shape
    pmap_ref[...] = jnp.zeros_like(pmap_ref)
    pmap_ref[0, pad:pad + h, pad:pad + w] = avg_map
    pmap_ref[1, pad:pad + h, pad:pad + w] = max_map
    acc_ref[...] = jnp.zeros_like(acc_ref)
    for c in range(2):
        for dy in range(ksize):
            band = pmap_ref[c, dy:dy + h, :]                 # (h, w + 2*pad)
            row_acc = jnp.zeros((h, w), jnp.float32)
            for dx in range(ksize):
                wt = ws_ref[(c * ksize + dy) * ksize + dx]   # SMEM scalar
                row_acc = row_acc + wt * band[:, dx:dx + w]
            acc_ref[...] += row_acc
    return jax.nn.sigmoid(acc_ref[...])


# --------------------------------------------------------------------------
# Fused path: one per-sample kernel, x resident in VMEM (1 read + 1 write of x)
# --------------------------------------------------------------------------
def _cbam_fused_kernel(ws_ref, x_ref, w1_ref, w2_ref, out_ref, pmap_ref, acc_ref,
                       *, ksize, pad):
    x = x_ref[0].astype(jnp.float32)                                           # (C, H, W)
    _, h, w = x.shape

    # Channel attention: avg/max pool over (H, W) -> shared MLP -> sigmoid.
    avg = jnp.sum(jnp.sum(x, axis=2), axis=1, keepdims=True) * (1.0 / (h * w))  # (C, 1)
    mx = jnp.max(jnp.max(x, axis=2), axis=1, keepdims=True)                     # (C, 1)
    ca = _channel_mlp_sigmoid(w1_ref[...], w2_ref[...], avg, mx)                # (C, 1)

    y = x * ca[:, :, None]                                                      # ca(x) * x

    # Spatial attention: channel mean/max -> 7x7 conv -> sigmoid.
    avg_map = jnp.mean(y, axis=0)                                               # (H, W)
    max_map = jnp.max(y, axis=0)                                                # (H, W)
    sa = _spatial_conv_sigmoid(ws_ref, pmap_ref, acc_ref, avg_map, max_map,
                               ksize=ksize, pad=pad)                            # (H, W)

    out_ref[0] = (y * sa[None, :, :]).astype(out_ref.dtype)


# --------------------------------------------------------------------------
# Tiled fallback kernels (per-sample x too large for VMEM)
# --------------------------------------------------------------------------
def _channel_attention_kernel(x_ref, w1_ref, w2_ref, ca_ref, sum_acc, max_acc, *, hw):
    k = pl.program_id(1)

    @pl.when(k == 0)
    def _init():
        sum_acc[...] = jnp.zeros_like(sum_acc)
        max_acc[...] = jnp.full_like(max_acc, -jnp.inf)

    # Reduce the incoming (C, TH, W) tile to (C, 1) partials right away: the per-step
    # reduce hides under DMA and keeps scratch tiny (TH always divides H -> no masking).
    xb = x_ref[0].astype(jnp.float32)
    sum_acc[...] += jnp.sum(jnp.sum(xb, axis=2), axis=1, keepdims=True)
    max_acc[...] = jnp.maximum(
        max_acc[...], jnp.max(jnp.max(xb, axis=2), axis=1, keepdims=True))

    @pl.when(k == pl.num_programs(1) - 1)
    def _finalize():
        avg = sum_acc[...] * (1.0 / hw)
        ca_ref[0] = _channel_mlp_sigmoid(w1_ref[...], w2_ref[...], avg, max_acc[...])


def _spatial_pool_kernel(x_ref, ca_ref, pooled_ref):
    y = x_ref[0].astype(jnp.float32) * ca_ref[0][:, :, None]        # (C, TH, W)
    pooled_ref[0, 0] = jnp.mean(y, axis=0)
    pooled_ref[0, 1] = jnp.max(y, axis=0)


def _spatial_attention_kernel(ws_ref, pooled_ref, sa_ref, pmap_ref, acc_ref, *, ksize, pad):
    sa_ref[0, 0] = _spatial_conv_sigmoid(
        ws_ref, pmap_ref, acc_ref, pooled_ref[0, 0], pooled_ref[0, 1],
        ksize=ksize, pad=pad)


def _apply_attention_kernel(x_ref, ca_ref, sa_ref, out_ref):
    y = x_ref[0].astype(jnp.float32) * ca_ref[0][:, :, None] * sa_ref[0]
    out_ref[0] = y.astype(out_ref.dtype)


# --------------------------------------------------------------------------
# Wrapper
# --------------------------------------------------------------------------
def _pick_h_tile(h, c, w, itemsize, budget, tile_h=None):
    """Largest TH that divides H, is a multiple of 8 (or == H), and fits VMEM."""
    def valid(th):
        return 1 <= th <= h and h % th == 0 and (th % 8 == 0 or th == h)

    if tile_h is not None:
        assert valid(tile_h), f"tile_h={tile_h} must divide H={h} and be a multiple of 8 (or H)"
        return tile_h

    candidates = [th for th in range(h, 0, -1) if valid(th)]
    for th in candidates:
        # x block (double-buffered) + f32 working copies + pooled/out blocks (rough).
        per_block = c * th * w * (2 * itemsize + 8) + 8 * th * w * 4
        if per_block <= budget:
            return th
    return candidates[-1]


def cbam_forward(x, w1, w2, ws, *, force_tiled=False, tile_h=None):
    """CBAM forward.

    x  : (N, C, H, W) float32 or bfloat16
    w1 : (C//ratio, C)  ChannelAttention conv1 weight (1x1, bias=False, squeezed)
    w2 : (C, C//ratio)  ChannelAttention conv2 weight (1x1, bias=False, squeezed)
    ws : (1, 2, k, k)   SpatialAttention conv weight  (k in {3, 7}, bias=False)
    """
    n, c, h, w = x.shape
    cr = w1.shape[0]
    ksize = ws.shape[-1]
    pad = (ksize - 1) // 2
    ws_flat = ws.reshape(-1).astype(jnp.float32)       # 2*k*k scalars for SMEM

    vmem_limit = _vmem_budget_bytes()
    budget = vmem_limit - (8 << 20)                    # headroom for internal scratch
    isz = x.dtype.itemsize

    # Per-sample footprint of the fused kernel: double-buffered in/out blocks,
    # f32 working copies (x, y), padded pooled-map + conv scratch, MLP weights.
    fused_bytes = (c * h * w * (4 * isz + 8)
                   + 2 * (h + 2 * pad) * (w + 2 * pad) * 4
                   + h * w * 4
                   + 4 * cr * c * 4)

    if (not force_tiled) and fused_bytes <= budget:
        # ---- fully fused: x resident in VMEM, 1 HBM read + 1 HBM write of x.
        return pl.pallas_call(
            functools.partial(_cbam_fused_kernel, ksize=ksize, pad=pad),
            out_shape=jax.ShapeDtypeStruct((n, c, h, w), x.dtype),
            grid=(n,),
            in_specs=[
                pl.BlockSpec(memory_space=pltpu.MemorySpace.SMEM),      # ws (flat)
                pl.BlockSpec((1, c, h, w), lambda i: (i, 0, 0, 0)),     # x
                pl.BlockSpec((cr, c), lambda i: (0, 0)),                # w1
                pl.BlockSpec((c, cr), lambda i: (0, 0)),                # w2
            ],
            out_specs=pl.BlockSpec((1, c, h, w), lambda i: (i, 0, 0, 0)),
            scratch_shapes=[
                pltpu.VMEM((2, h + 2 * pad, w + 2 * pad), jnp.float32),  # padded pooled maps
                pltpu.VMEM((h, w), jnp.float32),                          # conv accumulator
            ],
            compiler_params=pltpu.CompilerParams(
                dimension_semantics=("parallel",),
                vmem_limit_bytes=vmem_limit),
        )(ws_flat, x, w1, w2)

    # ---- tiled fallback: per-sample x too large for VMEM.  H-tiles always divide H.
    th = _pick_h_tile(h, c, w, isz, budget, tile_h)
    nh = h // th

    # K1: channel attention -> ca (N, C, 1)
    # TODO(synk): for N==1 on v7x, split the HW reduction across the two TensorCores
    # (two-level reduction) instead of running the whole channel-pool pass on one TC.
    ca = pl.pallas_call(
        functools.partial(_channel_attention_kernel, hw=h * w),
        out_shape=jax.ShapeDtypeStruct((n, c, 1), jnp.float32),
        grid=(n, nh),
        in_specs=[
            pl.BlockSpec((1, c, th, w), lambda i, k: (i, 0, k, 0)),
            pl.BlockSpec((cr, c), lambda i, k: (0, 0)),
            pl.BlockSpec((c, cr), lambda i, k: (0, 0)),
        ],
        out_specs=pl.BlockSpec((1, c, 1), lambda i, k: (i, 0, 0)),
        scratch_shapes=[pltpu.VMEM((c, 1), jnp.float32),     # running sum (partials)
                        pltpu.VMEM((c, 1), jnp.float32)],    # running max (partials)
        compiler_params=pltpu.CompilerParams(
            dimension_semantics=("parallel", "arbitrary"),
            vmem_limit_bytes=vmem_limit),
    )(x, w1, w2)

    # K2: channel-wise mean/max of (ca * x) -> pooled (N, 2, H, W)
    pooled = pl.pallas_call(
        _spatial_pool_kernel,
        out_shape=jax.ShapeDtypeStruct((n, 2, h, w), jnp.float32),
        grid=(n, nh),
        in_specs=[
            pl.BlockSpec((1, c, th, w), lambda i, k: (i, 0, k, 0)),
            pl.BlockSpec((1, c, 1), lambda i, k: (i, 0, 0)),
        ],
        out_specs=pl.BlockSpec((1, 2, th, w), lambda i, k: (i, 0, k, 0)),
        compiler_params=pltpu.CompilerParams(
            dimension_semantics=("parallel", "parallel"),
            vmem_limit_bytes=vmem_limit),
    )(x, ca)

    # K3: k x k conv over [avg, max] + sigmoid -> sa (N, 1, H, W); padding happens
    # in VMEM scratch inside the kernel (no jnp.pad round trips in the wrapper).
    sa = pl.pallas_call(
        functools.partial(_spatial_attention_kernel, ksize=ksize, pad=pad),
        out_shape=jax.ShapeDtypeStruct((n, 1, h, w), jnp.float32),
        grid=(n,),
        in_specs=[
            pl.BlockSpec(memory_space=pltpu.MemorySpace.SMEM),
            pl.BlockSpec((1, 2, h, w), lambda i: (i, 0, 0, 0)),
        ],
        out_specs=pl.BlockSpec((1, 1, h, w), lambda i: (i, 0, 0, 0)),
        scratch_shapes=[
            pltpu.VMEM((2, h + 2 * pad, w + 2 * pad), jnp.float32),
            pltpu.VMEM((h, w), jnp.float32),
        ],
        compiler_params=pltpu.CompilerParams(
            dimension_semantics=("parallel",),
            vmem_limit_bytes=vmem_limit),
    )(ws_flat, pooled)

    # K4: out = sa * ca * x   (recomputes ca*x; no intermediate HBM write of it)
    return pl.pallas_call(
        _apply_attention_kernel,
        out_shape=jax.ShapeDtypeStruct((n, c, h, w), x.dtype),
        grid=(n, nh),
        in_specs=[
            pl.BlockSpec((1, c, th, w), lambda i, k: (i, 0, k, 0)),
            pl.BlockSpec((1, c, 1), lambda i, k: (i, 0, 0)),
            pl.BlockSpec((1, 1, th, w), lambda i, k: (i, 0, k, 0)),
        ],
        out_specs=pl.BlockSpec((1, c, th, w), lambda i, k: (i, 0, k, 0)),
        compiler_params=pltpu.CompilerParams(
            dimension_semantics=("parallel", "parallel"),
            vmem_limit_bytes=vmem_limit),
    )(x, ca, sa)


# --------------------------------------------------------------------------
# Pure-JAX reference of the CBAM forward pass
# --------------------------------------------------------------------------
def cbam_reference(x, w1, w2, ws):
    xf = x.astype(jnp.float32)
    avg_p = jnp.mean(xf, axis=(2, 3))
    max_p = jnp.max(xf, axis=(2, 3))

    def mlp(p):
        return jnp.maximum(p @ w1.T, 0.0) @ w2.T

    ca = jax.nn.sigmoid(mlp(avg_p) + mlp(max_p))[:, :, None, None]
    y = ca * xf
    pooled = jnp.concatenate(
        [jnp.mean(y, axis=1, keepdims=True), jnp.max(y, axis=1, keepdims=True)],
        axis=1)
    pad = (ws.shape[-1] - 1) // 2
    conv = jax.lax.conv_general_dilated(
        pooled, ws, window_strides=(1, 1), padding=((pad, pad), (pad, pad)),
        dimension_numbers=("NCHW", "OIHW", "NCHW"),
        precision=jax.lax.Precision.HIGHEST)
    sa = jax.nn.sigmoid(conv)
    return (sa * y).astype(x.dtype)


if __name__ == "__main__":
    # Small shapes consistent with the module: planes=32, ratio=8 -> hidden=4.
    N, C, H, W = 2, 32, 16, 16
    ratio = 8
    Cr = C // ratio

    key = jax.random.PRNGKey(0)
    kx, k1, k2, k3 = jax.random.split(key, 4)

    x = jax.random.normal(kx, (N, C, H, W), dtype=jnp.float32)
    w1 = jax.random.normal(k1, (Cr, C), dtype=jnp.float32) * 0.1   # C -> C//ratio
    w2 = jax.random.normal(k2, (C, Cr), dtype=jnp.float32) * 0.1   # C//ratio -> C
    ws = jax.random.normal(k3, (1, 2, 7, 7), dtype=jnp.float32) * 0.1

    ref = cbam_reference(x, w1, w2, ws)

    # Fused single-pass path (x resident in VMEM) — the common case.
    out = jax.jit(cbam_forward)(x, w1, w2, ws)
    jax.block_until_ready(out)
    assert out.shape == (N, C, H, W)
    err_f = float(jnp.max(jnp.abs(out - ref)))
    assert jnp.allclose(out, ref, atol=2e-5, rtol=2e-5), f"fused max_err={err_f}"

    # Tiled fallback path, forced with tile_h=8 so the H-tiled accumulator
    # pipeline (init / accumulate / finalize) is actually exercised.
    out_t = jax.jit(functools.partial(cbam_forward, force_tiled=True, tile_h=8))(
        x, w1, w2, ws)
    jax.block_until_ready(out_t)
    err_t = float(jnp.max(jnp.abs(out_t - ref)))
    assert jnp.allclose(out_t, ref, atol=2e-5, rtol=2e-5), f"tiled max_err={err_t}"

    print("KERNEL_OK")
</pallas_src>

<mosaic_0001>
module attributes {stable_mosaic.version = 11 : i64} {
  func.func @_cbam_fused_kernel(%arg0: i32, %arg1: memref<98xf32, #tpu.memory_space<smem>>, %arg2: memref<1x32x16x16xf32, #tpu.memory_space<vmem>>, %arg3: memref<4x32xf32, #tpu.memory_space<vmem>>, %arg4: memref<32x4xf32, #tpu.memory_space<vmem>>, %arg5: memref<1x32x16x16xf32, #tpu.memory_space<vmem>>, %arg6: memref<2x22x22xf32, #tpu.memory_space<vmem>>, %arg7: memref<16x16xf32, #tpu.memory_space<vmem>>) attributes {dimension_semantics = [#tpu.dimension_semantics<parallel>], iteration_bounds = array<i64: 2>, scalar_prefetch = 0 : i64, scratch_operands = 2 : i64, tpu.core_type = #tpu.core_type<tc>, window_params = [{transform_indices = @transform_0, window_bounds = array<i64: 98>}, {transform_indices = @transform_1, window_bounds = array<i64: 1, 32, 16, 16>}, {pipeline_mode = #tpu.pipeline_mode<synchronous>, transform_indices = @transform_2, window_bounds = array<i64: 4, 32>}, {pipeline_mode = #tpu.pipeline_mode<synchronous>, transform_indices = @transform_3, window_bounds = array<i64: 32, 4>}, {transform_indices = @transform_4, window_bounds = array<i64: 1, 32, 16, 16>}]} {
    %c0 = arith.constant 0 : index
    %c0_0 = arith.constant 0 : index
    %c0_1 = arith.constant 0 : index
    %c0_2 = arith.constant 0 : index
    %0 = vector.load %arg2[%c0, %c0_0, %c0_1, %c0_2] : memref<1x32x16x16xf32, #tpu.memory_space<vmem>>, vector<1x32x16x16xf32>
    %1 = vector.shape_cast %0 : vector<1x32x16x16xf32> to vector<32x16x16xf32>
    %cst = arith.constant dense<0.000000e+00> : vector<32x16xf32>
    %2 = vector.multi_reduction <add>, %1, %cst [2] : vector<32x16x16xf32> to vector<32x16xf32>
    %cst_3 = arith.constant dense<0.000000e+00> : vector<32xf32>
    %3 = vector.multi_reduction <add>, %2, %cst_3 [1] : vector<32x16xf32> to vector<32xf32>
    %4 = vector.shape_cast %3 : vector<32xf32> to vector<32x1xf32>
    %cst_4 = arith.constant 3.906250e-03 : f32
    %5 = vector.broadcast %cst_4 : f32 to vector<32x1xf32>
    %6 = arith.mulf %4, %5 : vector<32x1xf32>
    %cst_5 = arith.constant dense<0xFF800000> : vector<32x16xf32>
    %7 = vector.multi_reduction <maximumf>, %1, %cst_5 [2] : vector<32x16x16xf32> to vector<32x16xf32>
    %cst_6 = arith.constant dense<0xFF800000> : vector<32xf32>
    %8 = vector.multi_reduction <maximumf>, %7, %cst_6 [1] : vector<32x16xf32> to vector<32xf32>
    %9 = vector.shape_cast %8 : vector<32xf32> to vector<32x1xf32>
    %c0_7 = arith.constant 0 : index
    %c0_8 = arith.constant 0 : index
    %10 = vector.load %arg3[%c0_7, %c0_8] : memref<4x32xf32, #tpu.memory_space<vmem>>, vector<4x32xf32>
    %c0_9 = arith.constant 0 : index
    %c0_10 = arith.constant 0 : index
    %11 = vector.load %arg4[%c0_9, %c0_10] : memref<32x4xf32, #tpu.memory_space<vmem>>, vector<32x4xf32>
    %12 = tpu.concatenate %6, %9 in 1 : vector<32x1xf32>, vector<32x1xf32> -> vector<32x2xf32>
    %cst_11 = arith.constant dense<0.000000e+00> : vector<4x2xf32>
    %13 = tpu.matmul %10, %12, %cst_11 {dimension_numbers = #tpu.dot_dimension_numbers<[1], [0], [0], [1], [0, 0, 1, 1], [], []>} : vector<4x32xf32>, vector<32x2xf32>, vector<4x2xf32> -> vector<4x2xf32>
    %cst_12 = arith.constant 0.000000e+00 : f32
    %14 = vector.broadcast %cst_12 : f32 to vector<4x2xf32>
    %15 = arith.maximumf %13, %14 : vector<4x2xf32>
    %cst_13 = arith.constant dense<0.000000e+00> : vector<4xf32>
    %16 = vector.multi_reduction <add>, %15, %cst_13 [1] : vector<4x2xf32> to vector<4xf32>
    %17 = vector.shape_cast %16 : vector<4xf32> to vector<4x1xf32>
    %cst_14 = arith.constant dense<0.000000e+00> : vector<32x1xf32>
    %18 = tpu.matmul %11, %17, %cst_14 {dimension_numbers = #tpu.dot_dimension_numbers<[1], [0], [0], [1], [0, 0, 1, 1], [], []>} : vector<32x4xf32>, vector<4x1xf32>, vector<32x1xf32> -> vector<32x1xf32>
    %19 = arith.negf %18 : vector<32x1xf32>
    %20 = math.exp %19 : vector<32x1xf32>
    %cst_15 = arith.constant 1.000000e+00 : f32
    %21 = vector.broadcast %cst_15 : f32 to vector<32x1xf32>
    %22 = arith.addf %21, %20 : vector<32x1xf32>
    %23 = arith.divf %21, %22 : vector<32x1xf32>
    %24 = vector.shape_cast %23 : vector<32x1xf32> to vector<32x1x1xf32>
    %25 = vector.broadcast %24 : vector<32x1x1xf32> to vector<32x16x16xf32>
    %26 = arith.mulf %1, %25 : vector<32x16x16xf32>
    %cst_16 = arith.constant dense<0.000000e+00> : vector<16x16xf32>
    %27 = vector.multi_reduction <add>, %26, %cst_16 [0] : vector<32x16x16xf32> to vector<16x16xf32>
    %cst_17 = arith.constant 3.200000e+01 : f32
    %28 = vector.broadcast %cst_17 : f32 to vector<16x16xf32>
    %29 = arith.divf %27, %28 : vector<16x16xf32>
    %cst_18 = arith.constant dense<0xFF800000> : vector<16x16xf32>
    %30 = vector.multi_reduction <maximumf>, %26, %cst_18 [0] : vector<32x16x16xf32> to vector<16x16xf32>
    %cst_19 = arith.constant 0.000000e+00 : f32
    %31 = vector.broadcast %cst_19 : f32 to vector<2x22x22xf32>
    %c0_20 = arith.constant 0 : index
    %c0_21 = arith.constant 0 : index
    %c0_22 = arith.constant 0 : index
    %32 = vector.load %arg6[%c0_20, %c0_21, %c0_22] : memref<2x22x22xf32, #tpu.memory_space<vmem>>, vector<2x22x22xf32>
    tpu.vector_store %arg6[%c0_20, %c0_21, %c0_22], %31 {strides = array<i32>} : memref<2x22x22xf32, #tpu.memory_space<vmem>>, vector<2x22x22xf32>,
    %c0_23 = arith.constant 0 : index
    %c3 = arith.constant 3 : index
    %c3_24 = arith.constant 3 : index
    %33 = vector.load %arg6[%c0_23, %c3, %c3_24] : memref<2x22x22xf32, #tpu.memory_space<vmem>>, vector<1x16x16xf32>
    %34 = vector.shape_cast %33 : vector<1x16x16xf32> to vector<16x16xf32>
    %35 = vector.shape_cast %29 : vector<16x16xf32> to vector<1x16x16xf32>
    tpu.vector_store %arg6[%c0_23, %c3, %c3_24], %35 {strides = array<i32>} : memref<2x22x22xf32, #tpu.memory_space<vmem>>, vector<1x16x16xf32>,
    %c1 = arith.constant 1 : index
    %c3_25 = arith.constant 3 : index
    %c3_26 = arith.constant 3 : index
    %36 = vector.load %arg6[%c1, %c3_25, %c3_26] : memref<2x22x22xf32, #tpu.memory_space<vmem>>, vector<1x16x16xf32>
    %37 = vector.shape_cast %36 : vector<1x16x16xf32> to vector<16x16xf32>
    %38 = vector.shape_cast %30 : vector<16x16xf32> to vector<1x16x16xf32>
    tpu.vector_store %arg6[%c1, %c3_25, %c3_26], %38 {strides = array<i32>} : memref<2x22x22xf32, #tpu.memory_space<vmem>>, vector<1x16x16xf32>,
    %cst_27 = arith.constant 0.000000e+00 : f32
    %39 = vector.broadcast %cst_27 : f32 to vector<16x16xf32>
    %c0_28 = arith.constant 0 : index
    %c0_29 = arith.constant 0 : index
    %40 = vector.load %arg7[%c0_28, %c0_29] : memref<16x16xf32, #tpu.memory_space<vmem>>, vector<16x16xf32>
    tpu.vector_store %arg7[%c0_28, %c0_29], %39 {strides = array<i32>} : memref<16x16xf32, #tpu.memory_space<vmem>>, vector<16x16xf32>,
    %c0_30 = arith.constant 0 : index
    %c0_31 = arith.constant 0 : index
    %c0_32 = arith.constant 0 : index
    %41 = vector.load %arg6[%c0_30, %c0_31, %c0_32] : memref<2x22x22xf32, #tpu.memory_space<vmem>>, vector<1x16x22xf32>
    %42 = vector.shape_cast %41 : vector<1x16x22xf32> to vector<16x22xf32>
    %cst_33 = arith.constant 0.000000e+00 : f32
    %43 = vector.broadcast %cst_33 : f32 to vector<16x16xf32>
    %c0_34 = arith.constant 0 : index
    %44 = memref.load %arg1[%c0_34] : memref<98xf32, #tpu.memory_space<smem>>
    %45 = vector.extract_strided_slice %42 {offsets = [0, 0], sizes = [16, 16], strides = [1, 1]} : vector<16x22xf32> to vector<16x16xf32>
    %46 = vector.broadcast %44 : f32 to vector<16x16xf32>
    %47 = arith.mulf %46, %45 : vector<16x16xf32>
    %48 = arith.addf %43, %47 : vector<16x16xf32>
    %c1_35 = arith.constant 1 : index
    %49 = memref.load %arg1[%c1_35] : memref<98xf32, #tpu.memory_space<smem>>
    %50 = vector.extract_strided_slice %42 {offsets = [0, 1], sizes = [16, 16], strides = [1, 1]} : vector<16x22xf32> to vector<16x16xf32>
    %51 = vector.broadcast %49 : f32 to vector<16x16xf32>
    %52 = arith.mulf %51, %50 : vector<16x16xf32>
    %53 = arith.addf %48, %52 : vector<16x16xf32>
    %c2 = arith.constant 2 : index
    %54 = memref.load %arg1[%c2] : memref<98xf32, #tpu.memory_space<smem>>
    %55 = vector.extract_strided_slice %42 {offsets = [0, 2], sizes = [16, 16], strides = [1, 1]} : vector<16x22xf32> to vector<16x16xf32>
    %56 = vector.broadcast %54 : f32 to vector<16x16xf32>
    %57 = arith.mulf %56, %55 : vector<16x16xf32>
    %58 = arith.addf %53, %57 : vector<16x16xf32>
    %c3_36 = arith.constant 3 : index
    %59 = memref.load %arg1[%c3_36] : memref<98xf32, #tpu.memory_space<smem>>
    %60 = vector.extract_strided_slice %42 {offsets = [0, 3], sizes = [16, 16], strides = [1, 1]} : vector<16x22xf32> to vector<16x16xf32>
    %61 = vector.broadcast %59 : f32 to vector<16x16xf32>
    %62 = arith.mulf %61, %60 : vector<16x16xf32>
    %63 = arith.addf %58, %62 : vector<16x16xf32>
    %c4 = arith.constant 4 : index
    %64 = memref.load %arg1[%c4] : memref<98xf32, #tpu.memory_space<smem>>
    %65 = vector.extract_strided_slice %42 {offsets = [0, 4], sizes = [16, 16], strides = [1, 1]} : vector<16x22xf32> to vector<16x16xf32>
    %66 = vector.broadcast %64 : f32 to vector<16x16xf32>
    %67 = arith.mulf %66, %65 : vector<16x16xf32>
    %68 = arith.addf %63, %67 : vector<16x16xf32>
    %c5 = arith.constant 5 : index
    %69 = memref.load %arg1[%c5] : memref<98xf32, #tpu.memory_space<smem>>
    %70 = vector.extract_strided_slice %42 {offsets = [0, 5], sizes = [16, 16], strides = [1, 1]} : vector<16x22xf32> to vector<16x16xf32>
    %71 = vector.broadcast %69 : f32 to vector<16x16xf32>
    %72 = arith.mulf %71, %70 : vector<16x16xf32>
    %73 = arith.addf %68, %72 : vector<16x16xf32>
    %c6 = arith.constant 6 : index
    %74 = memref.load %arg1[%c6] : memref<98xf32, #tpu.memory_space<smem>>
    %75 = vector.extract_strided_slice %42 {offsets = [0, 6], sizes = [16, 16], strides = [1, 1]} : vector<16x22xf32> to vector<16x16xf32>
    %76 = vector.broadcast %74 : f32 to vector<16x16xf32>
    %77 = arith.mulf %76, %75 : vector<16x16xf32>
    %78 = arith.addf %73, %77 : vector<16x16xf32>
    %c0_37 = arith.constant 0 : index
    %c0_38 = arith.constant 0 : index
    %79 = vector.load %arg7[%c0_37, %c0_38] : memref<16x16xf32, #tpu.memory_space<vmem>>, vector<16x16xf32>
    %80 = arith.addf %79, %78 : vector<16x16xf32>
    %c0_39 = arith.constant 0 : index
    %c0_40 = arith.constant 0 : index
    %81 = vector.load %arg7[%c0_39, %c0_40] : memref<16x16xf32, #tpu.memory_space<vmem>>, vector<16x16xf32>
    tpu.vector_store %arg7[%c0_39, %c0_40], %80 {strides = array<i32>} : memref<16x16xf32, #tpu.memory_space<vmem>>, vector<16x16xf32>,
    %c0_41 = arith.constant 0 : index
    %c1_42 = arith.constant 1 : index
    %c0_43 = arith.constant 0 : index
    %82 = vector.load %arg6[%c0_41, %c1_42, %c0_43] : memref<2x22x22xf32, #tpu.memory_space<vmem>>, vector<1x16x22xf32>
    %83 = vector.shape_cast %82 : vector<1x16x22xf32> to vector<16x22xf32>
    %cst_44 = arith.constant 0.000000e+00 : f32
    %84 = vector.broadcast %cst_44 : f32 to vector<16x16xf32>
    %c7 = arith.constant 7 : index
    %85 = memref.load %arg1[%c7] : memref<98xf32, #tpu.memory_space<smem>>
    %86 = vector.extract_strided_slice %83 {offsets = [0, 0], sizes = [16, 16], strides = [1, 1]} : vector<16x22xf32> to vector<16x16xf32>
    %87 = vector.broadcast %85 : f32 to vector<16x16xf32>
    %88 = arith.mulf %87, %86 : vector<16x16xf32>
    %89 = arith.addf %84, %88 : vector<16x16xf32>
    %c8 = arith.constant 8 : index
    %90 = memref.load %arg1[%c8] : memref<98xf32, #tpu.memory_space<smem>>
    %91 = vector.extract_strided_slice %83 {offsets = [0, 1], sizes = [16, 16], strides = [1, 1]} : vector<16x22xf32> to vector<16x16xf32>
    %92 = vector.broadcast %90 : f32 to vector<16x16xf32>
    %93 = arith.mulf %92, %91 : vector<16x16xf32>
    %94 = arith.addf %89, %93 : vector<16x16xf32>
    %c9 = arith.constant 9 : index
    %95 = memref.load %arg1[%c9] : memref<98xf32, #tpu.memory_space<smem>>
    %96 = vector.extract_strided_slice %83 {offsets = [0, 2], sizes = [16, 16], strides = [1, 1]} : vector<16x22xf32> to vector<16x16xf32>
    %97 = vector.broadcast %95 : f32 to vector<16x16xf32>
    %98 = arith.mulf %97, %96 : vector<16x16xf32>
    %99 = arith.addf %94, %98 : vector<16x16xf32>
    %c10 = arith.constant 10 : index
    %100 = memref.load %arg1[%c10] : memref<98xf32, #tpu.memory_space<smem>>
    %101 = vector.extract_strided_slice %83 {offsets = [0, 3], sizes = [16, 16], strides = [1, 1]} : vector<16x22xf32> to vector<16x16xf32>
    %102 = vector.broadcast %100 : f32 to vector<16x16xf32>
    %103 = arith.mulf %102, %101 : vector<16x16xf32>
    %104 = arith.addf %99, %103 : vector<16x16xf32>
    %c11 = arith.constant 11 : index
    %105 = memref.load %arg1[%c11] : memref<98xf32, #tpu.memory_space<smem>>
    %106 = vector.extract_strided_slice %83 {offsets = [0, 4], sizes = [16, 16], strides = [1, 1]} : vector<16x22xf32> to vector<16x16xf32>
    %107 = vector.broadcast %105 : f32 to vector<16x16xf32>
    %108 = arith.mulf %107, %106 : vector<16x16xf32>
    %109 = arith.addf %104, %108 : vector<16x16xf32>
    %c12 = arith.constant 12 : index
    %110 = memref.load %arg1[%c12] : memref<98xf32, #tpu.memory_space<smem>>
    %111 = vector.extract_strided_slice %83 {offsets = [0, 5], sizes = [16, 16], strides = [1, 1]} : vector<16x22xf32> to vector<16x16xf32>
    %112 = vector.broadcast %110 : f32 to vector<16x16xf32>
    %113 = arith.mulf %112, %111 : vector<16x16xf32>
    %114 = arith.addf %109, %113 : vector<16x16xf32>
    %c13 = arith.constant 13 : index
    %115 = memref.load %arg1[%c13] : memref<98xf32, #tpu.memory_space<smem>>
    %116 = vector.extract_strided_slice %83 {offsets = [0, 6], sizes = [16, 16], strides = [1, 1]} : vector<16x22xf32> to vector<16x16xf32>
    %117 = vector.broadcast %115 : f32 to vector<16x16xf32>
    %118 = arith.mulf %117, %116 : vector<16x16xf32>
    %119 = arith.addf %114, %118 : vector<16x16xf32>
    %c0_45 = arith.constant 0 : index
    %c0_46 = arith.constant 0 : index
    %120 = vector.load %arg7[%c0_45, %c0_46] : memref<16x16xf32, #tpu.memory_space<vmem>>, vector<16x16xf32>
    %121 = arith.addf %120, %119 : vector<16x16xf32>
    %c0_47 = arith.constant 0 : index
    %c0_48 = arith.constant 0 : index
    %122 = vector.load %arg7[%c0_47, %c0_48] : memref<16x16xf32, #tpu.memory_space<vmem>>, vector<16x16xf32>
    tpu.vector_store %arg7[%c0_47, %c0_48], %121 {strides = array<i32>} : memref<16x16xf32, #tpu.memory_space<vmem>>, vector<16x16xf32>,
    %c0_49 = arith.constant 0 : index
    %c2_50 = arith.constant 2 : index
    %c0_51 = arith.constant 0 : index
    %123 = vector.load %arg6[%c0_49, %c2_50, %c0_51] : memref<2x22x22xf32, #tpu.memory_space<vmem>>, vector<1x16x22xf32>
    %124 = vector.shape_cast %123 : vector<1x16x22xf32> to vector<16x22xf32>
    %cst_52 = arith.constant 0.000000e+00 : f32
    %125 = vector.broadcast %cst_52 : f32 to vector<16x16xf32>
    %c14 = arith.constant 14 : index
    %126 = memref.load %arg1[%c14] : memref<98xf32, #tpu.memory_space<smem>>
    %127 = vector.extract_strided_slice %124 {offsets = [0, 0], sizes = [16, 16], strides = [1, 1]} : vector<16x22xf32> to vector<16x16xf32>
    %128 = vector.broadcast %126 : f32 to vector<16x16xf32>
    %129 = arith.mulf %128, %127 : vector<16x16xf32>
    %130 = arith.addf %125, %129 : vector<16x16xf32>
    %c15 = arith.constant 15 : index
    %131 = memref.load %arg1[%c15] : memref<98xf32, #tpu.memory_space<smem>>
    %132 = vector.extract_strided_slice %124 {offsets = [0, 1], sizes = [16, 16], strides = [1, 1]} : vector<16x22xf32> to vector<16x16xf32>
    %133 = vector.broadcast %131 : f32 to vector<16x16xf32>
    %134 = arith.mulf %133, %132 : vector<16x16xf32>
    %135 = arith.addf %130, %134 : vector<16x16xf32>
    %c16 = arith.constant 16 : index
    %136 = memref.load %arg1[%c16] : memref<98xf32, #tpu.memory_space<smem>>
    %137 = vector.extract_strided_slice %124 {offsets = [0, 2], sizes = [16, 16], strides = [1, 1]} : vector<16x22xf32> to vector<16x16xf32>
    %138 = vector.broadcast %136 : f32 to vector<16x16xf32>
    %139 = arith.mulf %138, %137 : vector<16x16xf32>
    %140 = arith.addf %135, %139 : vector<16x16xf32>
    %c17 = arith.constant 17 : index
    %141 = memref.load %arg1[%c17] : memref<98xf32, #tpu.memory_space<smem>>
    %142 = vector.extract_strided_slice %124 {offsets = [0, 3], sizes = [16, 16], strides = [1, 1]} : vector<16x22xf32> to vector<16x16xf32>
    %143 = vector.broadcast %141 : f32 to vector<16x16xf32>
    %144 = arith.mulf %143, %142 : vector<16x16xf32>
    %145 = arith.addf %140, %144 : vector<16x16xf32>
    %c18 = arith.constant 18 : index
    %146 = memref.load %arg1[%c18] : memref<98xf32, #tpu.memory_space<smem>>
    %147 = vector.extract_strided_slice %124 {offsets = [0, 4], sizes = [16, 16], strides = [1, 1]} : vector<16x22xf32> to vector<16x16xf32>
    %148 = vector.broadcast %146 : f32 to vector<16x16xf32>
    %149 = arith.mulf %148, %147 : vector<16x16xf32>
    %150 = arith.addf %145, %149 : vector<16x16xf32>
    %c19 = arith.constant 19 : index
    %151 = memref.load %arg1[%c19] : memref<98xf32, #tpu.memory_space<smem>>
    %152 = vector.extract_strided_slice %124 {offsets = [0, 5], sizes = [16, 16], strides = [1, 1]} : vector<16x22xf32> to vector<16x16xf32>
    %153 = vector.broadcast %151 : f32 to vector<16x16xf32>
    %154 = arith.mulf %153, %152 : vector<16x16xf32>
    %155 = arith.addf %150, %154 : vector<16x16xf32>
    %c20 = arith.constant 20 : index
    %156 = memref.load %arg1[%c20] : memref<98xf32, #tpu.memory_space<smem>>
    %157 = vector.extract_strided_slice %124 {offsets = [0, 6], sizes = [16, 16], strides = [1, 1]} : vector<16x22xf32> to vector<16x16xf32>
    %158 = vector.broadcast %156 : f32 to vector<16x16xf32>
    %159 = arith.mulf %158, %157 : vector<16x16xf32>
    %160 = arith.addf %155, %159 : vector<16x16xf32>
    %c0_53 = arith.constant 0 : index
    %c0_54 = arith.constant 0 : index
    %161 = vector.load %arg7[%c0_53, %c0_54] : memref<16x16xf32, #tpu.memory_space<vmem>>, vector<16x16xf32>
    %162 = arith.addf %161, %160 : vector<16x16xf32>
    %c0_55 = arith.constant 0 : index
    %c0_56 = arith.constant 0 : index
    %163 = vector.load %arg7[%c0_55, %c0_56] : memref<16x16xf32, #tpu.memory_space<vmem>>, vector<16x16xf32>
    tpu.vector_store %arg7[%c0_55, %c0_56], %162 {strides = array<i32>} : memref<16x16xf32, #tpu.memory_space<vmem>>, vector<16x16xf32>,
    %c0_57 = arith.constant 0 : index
    %c3_58 = arith.constant 3 : index
    %c0_59 = arith.constant 0 : index
    %164 = vector.load %arg6[%c0_57, %c3_58, %c0_59] : memref<2x22x22xf32, #tpu.memory_space<vmem>>, vector<1x16x22xf32>
    %165 = vector.shape_cast %164 : vector<1x16x22xf32> to vector<16x22xf32>
    %cst_60 = arith.constant 0.000000e+00 : f32
    %166 = vector.broadcast %cst_60 : f32 to vector<16x16xf32>
    %c21 = arith.constant 21 : index
    %167 = memref.load %arg1[%c21] : memref<98xf32, #tpu.memory_space<smem>>
    %168 = vector.extract_strided_slice %165 {offsets = [0, 0], sizes = [16, 16], strides = [1, 1]} : vector<16x22xf32> to vector<16x16xf32>
    %169 = vector.broadcast %167 : f32 to vector<16x16xf32>
    %170 = arith.mulf %169, %168 : vector<16x16xf32>
    %171 = arith.addf %166, %170 : vector<16x16xf32>
    %c22 = arith.constant 22 : index
    %172 = memref.load %arg1[%c22] : memref<98xf32, #tpu.memory_space<smem>>
    %173 = vector.extract_strided_slice %165 {offsets = [0, 1], sizes = [16, 16], strides = [1, 1]} : vector<16x22xf32> to vector<16x16xf32>
    %174 = vector.broadcast %172 : f32 to vector<16x16xf32>
    %175 = arith.mulf %174, %173 : vector<16x16xf32>
    %176 = arith.addf %171, %175 : vector<16x16xf32>
    %c23 = arith.constant 23 : index
    %177 = memref.load %arg1[%c23] : memref<98xf32, #tpu.memory_space<smem>>
    %178 = vector.extract_strided_slice %165 {offsets = [0, 2], sizes = [16, 16], strides = [1, 1]} : vector<16x22xf32> to vector<16x16xf32>
    %179 = vector.broadcast %177 : f32 to vector<16x16xf32>
    %180 = arith.mulf %179, %178 : vector<16x16xf32>
    %181 = arith.addf %176, %180 : vector<16x16xf32>
    %c24 = arith.constant 24 : index
    %182 = memref.load %arg1[%c24] : memref<98xf32, #tpu.memory_space<smem>>
    %183 = vector.extract_strided_slice %165 {offsets = [0, 3], sizes = [16, 16], strides = [1, 1]} : vector<16x22xf32> to vector<16x16xf32>
    %184 = vector.broadcast %182 : f32 to vector<16x16xf32>
    %185 = arith.mulf %184, %183 : vector<16x16xf32>
    %186 = arith.addf %181, %185 : vector<16x16xf32>
    %c25 = arith.constant 25 : index
    %187 = memref.load %arg1[%c25] : memref<98xf32, #tpu.memory_space<smem>>
    %188 = vector.extract_strided_slice %165 {offsets = [0, 4], sizes = [16, 16], strides = [1, 1]} : vector<16x22xf32> to vector<16x16xf32>
    %189 = vector.broadcast %187 : f32 to vector<16x16xf32>
    %190 = arith.mulf %189, %188 : vector<16x16xf32>
    %191 = arith.addf %186, %190 : vector<16x16xf32>
    %c26 = arith.constant 26 : index
    %192 = memref.load %arg1[%c26] : memref<98xf32, #tpu.memory_space<smem>>
    %193 = vector.extract_strided_slice %165 {offsets = [0, 5], sizes = [16, 16], strides = [1, 1]} : vector<16x22xf32> to vector<16x16xf32>
    %194 = vector.broadcast %192 : f32 to vector<16x16xf32>
    %195 = arith.mulf %194, %193 : vector<16x16xf32>
    %196 = arith.addf %191, %195 : vector<16x16xf32>
    %c27 = arith.constant 27 : index
    %197 = memref.load %arg1[%c27] : memref<98xf32, #tpu.memory_space<smem>>
    %198 = vector.extract_strided_slice %165 {offsets = [0, 6], sizes = [16, 16], strides = [1, 1]} : vector<16x22xf32> to vector<16x16xf32>
    %199 = vector.broadcast %197 : f32 to vector<16x16xf32>
    %200 = arith.mulf %199, %198 : vector<16x16xf32>
    %201 = arith.addf %196, %200 : vector<16x16xf32>
    %c0_61 = arith.constant 0 : index
    %c0_62 = arith.constant 0 : index
    %202 = vector.load %arg7[%c0_61, %c0_62] : memref<16x16xf32, #tpu.memory_space<vmem>>, vector<16x16xf32>
    %203 = arith.addf %202, %201 : vector<16x16xf32>
    %c0_63 = arith.constant 0 : index
    %c0_64 = arith.constant 0 : index
    %204 = vector.load %arg7[%c0_63, %c0_64] : memref<16x16xf32, #tpu.memory_space<vmem>>, vector<16x16xf32>
    tpu.vector_store %arg7[%c0_63, %c0_64], %203 {strides = array<i32>} : memref<16x16xf32, #tpu.memory_space<vmem>>, vector<16x16xf32>,
    %c0_65 = arith.constant 0 : index
    %c4_66 = arith.constant 4 : index
    %c0_67 = arith.constant 0 : index
    %205 = vector.load %arg6[%c0_65, %c4_66, %c0_67] : memref<2x22x22xf32, #tpu.memory_space<vmem>>, vector<1x16x22xf32>
    %206 = vector.shape_cast %205 : vector<1x16x22xf32> to vector<16x22xf32>
    %cst_68 = arith.constant 0.000000e+00 : f32
    %207 = vector.broadcast %cst_68 : f32 to vector<16x16xf32>
    %c28 = arith.constant 28 : index
    %208 = memref.load %arg1[%c28] : memref<98xf32, #tpu.memory_space<smem>>
    %209 = vector.extract_strided_slice %206 {offsets = [0, 0], sizes = [16, 16], strides = [1, 1]} : vector<16x22xf32> to vector<16x16xf32>
    %210 = vector.broadcast %208 : f32 to vector<16x16xf32>
    %211 = arith.mulf %210, %209 : vector<16x16xf32>
    %212 = arith.addf %207, %211 : vector<16x16xf32>
    %c29 = arith.constant 29 : index
    %213 = memref.load %arg1[%c29] : memref<98xf32, #tpu.memory_space<smem>>
    %214 = vector.extract_strided_slice %206 {offsets = [0, 1], sizes = [16, 16], strides = [1, 1]} : vector<16x22xf32> to vector<16x16xf32>
    %215 = vector.broadcast %213 : f32 to vector<16x16xf32>
    %216 = arith.mulf %215, %214 : vector<16x16xf32>
    %217 = arith.addf %212, %216 : vector<16x16xf32>
    %c30 = arith.constant 30 : index
    %218 = memref.load %arg1[%c30] : memref<98xf32, #tpu.memory_space<smem>>
    %219 = vector.extract_strided_slice %206 {offsets = [0, 2], sizes = [16, 16], strides = [1, 1]} : vector<16x22xf32> to vector<16x16xf32>
    %220 = vector.broadcast %218 : f32 to vector<16x16xf32>
    %221 = arith.mulf %220, %219 : vector<16x16xf32>
    %222 = arith.addf %217, %221 : vector<16x16xf32>
    %c31 = arith.constant 31 : index
    %223 = memref.load %arg1[%c31] : memref<98xf32, #tpu.memory_space<smem>>
    %224 = vector.extract_strided_slice %206 {offsets = [0, 3], sizes = [16, 16], strides = [1, 1]} : vector<16x22xf32> to vector<16x16xf32>
    %225 = vector.broadcast %223 : f32 to vector<16x16xf32>
    %226 = arith.mulf %225, %224 : vector<16x16xf32>
    %227 = arith.addf %222, %226 : vector<16x16xf32>
    %c32 = arith.constant 32 : index
    %228 = memref.load %arg1[%c32] : memref<98xf32, #tpu.memory_space<smem>>
    %229 = vector.extract_strided_slice %206 {offsets = [0, 4], sizes = [16, 16], strides = [1, 1]} : vector<16x22xf32> to vector<16x16xf32>
    %230 = vector.broadcast %228 : f32 to vector<16x16xf32>
    %231 = arith.mulf %230, %229 : vector<16x16xf32>
    %232 = arith.addf %227, %231 : vector<16x16xf32>
    %c33 = arith.constant 33 : index
    %233 = memref.load %arg1[%c33] : memref<98xf32, #tpu.memory_space<smem>>
    %234 = vector.extract_strided_slice %206 {offsets = [0, 5], sizes = [16, 16], strides = [1, 1]} : vector<16x22xf32> to vector<16x16xf32>
    %235 = vector.broadcast %233 : f32 to vector<16x16xf32>
    %236 = arith.mulf %235, %234 : vector<16x16xf32>
    %237 = arith.addf %232, %236 : vector<16x16xf32>
    %c34 = arith.constant 34 : index
    %238 = memref.load %arg1[%c34] : memref<98xf32, #tpu.memory_space<smem>>
    %239 = vector.extract_strided_slice %206 {offsets = [0, 6], sizes = [16, 16], strides = [1, 1]} : vector<16x22xf32> to vector<16x16xf32>
    %240 = vector.broadcast %238 : f32 to vector<16x16xf32>
    %241 = arith.mulf %240, %239 : vector<16x16xf32>
    %242 = arith.addf %237, %241 : vector<16x16xf32>
    %c0_69 = arith.constant 0 : index
    %c0_70 = arith.constant 0 : index
    %243 = vector.load %arg7[%c0_69, %c0_70] : memref<16x16xf32, #tpu.memory_space<vmem>>, vector<16x16xf32>
    %244 = arith.addf %243, %242 : vector<16x16xf32>
    %c0_71 = arith.constant 0 : index
    %c0_72 = arith.constant 0 : index
    %245 = vector.load %arg7[%c0_71, %c0_72] : memref<16x16xf32, #tpu.memory_space<vmem>>, vector<16x16xf32>
    tpu.vector_store %arg7[%c0_71, %c0_72], %244 {strides = array<i32>} : memref<16x16xf32, #tpu.memory_space<vmem>>, vector<16x16xf32>,
    %c0_73 = arith.constant 0 : index
    %c5_74 = arith.constant 5 : index
    %c0_75 = arith.constant 0 : index
    %246 = vector.load %arg6[%c0_73, %c5_74, %c0_75] : memref<2x22x22xf32, #tpu.memory_space<vmem>>, vector<1x16x22xf32>
    %247 = vector.shape_cast %246 : vector<1x16x22xf32> to vector<16x22xf32>
    %cst_76 = arith.constant 0.000000e+00 : f32
    %248 = vector.broadcast %cst_76 : f32 to vector<16x16xf32>
    %c35 = arith.constant 35 : index
    %249 = memref.load %arg1[%c35] : memref<98xf32, #tpu.memory_space<smem>>
    %250 = vector.extract_strided_slice %247 {offsets = [0, 0], sizes = [16, 16], strides = [1, 1]} : vector<16x22xf32> to vector<16x16xf32>
    %251 = vector.broadcast %249 : f32 to vector<16x16xf32>
    %252 = arith.mulf %251, %250 : vector<16x16xf32>
    %253 = arith.addf %248, %252 : vector<16x16xf32>
    %c36 = arith.constant 36 : index
    %254 = memref.load %arg1[%c36] : memref<98xf32, #tpu.memory_space<smem>>
    %255 = vector.extract_strided_slice %247 {offsets = [0, 1], sizes = [16, 16], strides = [1, 1]} : vector<16x22xf32> to vector<16x16xf32>
    %256 = vector.broadcast %254 : f32 to vector<16x16xf32>
    %257 = arith.mulf %256, %255 : vector<16x16xf32>
    %258 = arith.addf %253, %257 : vector<16x16xf32>
    %c37 = arith.constant 37 : index
    %259 = memref.load %arg1[%c37] : memref<98xf32, #tpu.memory_space<smem>>
    %260 = vector.extract_strided_slice %247 {offsets = [0, 2], sizes = [16, 16], strides = [1, 1]} : vector<16x22xf32> to vector<16x16xf32>
    %261 = vector.broadcast %259 : f32 to vector<16x16xf32>
    %262 = arith.mulf %261, %260 : vector<16x16xf32>
    %263 = arith.addf %258, %262 : vector<16x16xf32>
    %c38 = arith.constant 38 : index
    %264 = memref.load %arg1[%c38] : memref<98xf32, #tpu.memory_space<smem>>
    %265 = vector.extract_strided_slice %247 {offsets = [0, 3], sizes = [16, 16], strides = [1, 1]} : vector<16x22xf32> to vector<16x16xf32>
    %266 = vector.broadcast %264 : f32 to vector<16x16xf32>
    %267 = arith.mulf %266, %265 : vector<16x16xf32>
    %268 = arith.addf %263, %267 : vector<16x16xf32>
    %c39 = arith.constant 39 : index
    %269 = memref.load %arg1[%c39] : memref<98xf32, #tpu.memory_space<smem>>
    %270 = vector.extract_strided_slice %247 {offsets = [0, 4], sizes = [16, 16], strides = [1, 1]} : vector<16x22xf32> to vector<16x16xf32>
    %271 = vector.broadcast %269 : f32 to vector<16x16xf32>
    %272 = arith.mulf %271, %270 : vector<16x16xf32>
    %273 = arith.addf %268, %272 : vector<16x16xf32>
    %c40 = arith.constant 40 : index
    %274 = memref.load %arg1[%c40] : memref<98xf32, #tpu.memory_space<smem>>
    %275 = vector.extract_strided_slice %247 {offsets = [0, 5], sizes = [16, 16], strides = [1, 1]} : vector<16x22xf32> to vector<16x16xf32>
    %276 = vector.broadcast %274 : f32 to vector<16x16xf32>
    %277 = arith.mulf %276, %275 : vector<16x16xf32>
    %278 = arith.addf %273, %277 : vector<16x16xf32>
    %c41 = arith.constant 41 : index
    %279 = memref.load %arg1[%c41] : memref<98xf32, #tpu.memory_space<smem>>
    %280 = vector.extract_strided_slice %247 {offsets = [0, 6], sizes = [16, 16], strides = [1, 1]} : vector<16x22xf32> to vector<16x16xf32>
    %281 = vector.broadcast %279 : f32 to vector<16x16xf32>
    %282 = arith.mulf %281, %280 : vector<16x16xf32>
    %283 = arith.addf %278, %282 : vector<16x16xf32>
    %c0_77 = arith.constant 0 : index
    %c0_78 = arith.constant 0 : index
    %284 = vector.load %arg7[%c0_77, %c0_78] : memref<16x16xf32, #tpu.memory_space<vmem>>, vector<16x16xf32>
    %285 = arith.addf %284, %283 : vector<16x16xf32>
    %c0_79 = arith.constant 0 : index
    %c0_80 = arith.constant 0 : index
    %286 = vector.load %arg7[%c0_79, %c0_80] : memref<16x16xf32, #tpu.memory_space<vmem>>, vector<16x16xf32>
    tpu.vector_store %arg7[%c0_79, %c0_80], %285 {strides = array<i32>} : memref<16x16xf32, #tpu.memory_space<vmem>>, vector<16x16xf32>,
    %c0_81 = arith.constant 0 : index
    %c6_82 = arith.constant 6 : index
    %c0_83 = arith.constant 0 : index
    %287 = vector.load %arg6[%c0_81, %c6_82, %c0_83] : memref<2x22x22xf32, #tpu.memory_space<vmem>>, vector<1x16x22xf32>
    %288 = vector.shape_cast %287 : vector<1x16x22xf32> to vector<16x22xf32>
    %cst_84 = arith.constant 0.000000e+00 : f32
    %289 = vector.broadcast %cst_84 : f32 to vector<16x16xf32>
    %c42 = arith.constant 42 : index
    %290 = memref.load %arg1[%c42] : memref<98xf32, #tpu.memory_space<smem>>
    %291 = vector.extract_strided_slice %288 {offsets = [0, 0], sizes = [16, 16], strides = [1, 1]} : vector<16x22xf32> to vector<16x16xf32>
    %292 = vector.broadcast %290 : f32 to vector<16x16xf32>
    %293 = arith.mulf %292, %291 : vector<16x16xf32>
    %294 = arith.addf %289, %293 : vector<16x16xf32>
    %c43 = arith.constant 43 : index
    %295 = memref.load %arg1[%c43] : memref<98xf32, #tpu.memory_space<smem>>
    %296 = vector.extract_strided_slice %288 {offsets = [0, 1], sizes = [16, 16], strides = [1, 1]} : vector<16x22xf32> to vector<16x16xf32>
    %297 = vector.broadcast %295 : f32 to vector<16x16xf32>
    %298 = arith.mulf %297, %296 : vector<16x16xf32>
    %299 = arith.addf %294, %298 : vector<16x16xf32>
    %c44 = arith.constant 44 : index
    %300 = memref.load %arg1[%c44] : memref<98xf32, #tpu.memory_space<smem>>
    %301 = vector.extract_strided_slice %288 {offsets = [0, 2], sizes = [16, 16], strides = [1, 1]} : vector<16x22xf32> to vector<16x16xf32>
    %302 = vector.broadcast %300 : f32 to vector<16x16xf32>
    %303 = arith.mulf %302, %301 : vector<16x16xf32>
    %304 = arith.addf %299, %303 : vector<16x16xf32>
    %c45 = arith.constant 45 : index
    %305 = memref.load %arg1[%c45] : memref<98xf32, #tpu.memory_space<smem>>
    %306 = vector.extract_strided_slice %288 {offsets = [0, 3], sizes = [16, 16], strides = [1, 1]} : vector<16x22xf32> to vector<16x16xf32>
    %307 = vector.broadcast %305 : f32 to vector<16x16xf32>
    %308 = arith.mulf %307, %306 : vector<16x16xf32>
    %309 = arith.addf %304, %308 : vector<16x16xf32>
    %c46 = arith.constant 46 : index
    %310 = memref.load %arg1[%c46] : memref<98xf32, #tpu.memory_space<smem>>
    %311 = vector.extract_strided_slice %288 {offsets = [0, 4], sizes = [16, 16], strides = [1, 1]} : vector<16x22xf32> to vector<16x16xf32>
    %312 = vector.broadcast %310 : f32 to vector<16x16xf32>
    %313 = arith.mulf %312, %311 : vector<16x16xf32>
    %314 = arith.addf %309, %313 : vector<16x16xf32>
    %c47 = arith.constant 47 : index
    %315 = memref.load %arg1[%c47] : memref<98xf32, #tpu.memory_space<smem>>
    %316 = vector.extract_strided_slice %288 {offsets = [0, 5], sizes = [16, 16], strides = [1, 1]} : vector<16x22xf32> to vector<16x16xf32>
    %317 = vector.broadcast %315 : f32 to vector<16x16xf32>
    %318 = arith.mulf %317, %316 : vector<16x16xf32>
    %319 = arith.addf %314, %318 : vector<16x16xf32>
    %c48 = arith.constant 48 : index
    %320 = memref.load %arg1[%c48] : memref<98xf32, #tpu.memory_space<smem>>
    %321 = vector.extract_strided_slice %288 {offsets = [0, 6], sizes = [16, 16], strides = [1, 1]} : vector<16x22xf32> to vector<16x16xf32>
    %322 = vector.broadcast %320 : f32 to vector<16x16xf32>
    %323 = arith.mulf %322, %321 : vector<16x16xf32>
    %324 = arith.addf %319, %323 : vector<16x16xf32>
    %c0_85 = arith.constant 0 : index
    %c0_86 = arith.constant 0 : index
    %325 = vector.load %arg7[%c0_85, %c0_86] : memref<16x16xf32, #tpu.memory_space<vmem>>, vector<16x16xf32>
    %326 = arith.addf %325, %324 : vector<16x16xf32>
    %c0_87 = arith.constant 0 : index
    %c0_88 = arith.constant 0 : index
    %327 = vector.load %arg7[%c0_87, %c0_88] : memref<16x16xf32, #tpu.memory_space<vmem>>, vector<16x16xf32>
    tpu.vector_store %arg7[%c0_87, %c0_88], %326 {strides = array<i32>} : memref<16x16xf32, #tpu.memory_space<vmem>>, vector<16x16xf32>,
    %c1_89 = arith.constant 1 : index
    %c0_90 = arith.constant 0 : index
    %c0_91 = arith.constant 0 : index
    %328 = vector.load %arg6[%c1_89, %c0_90, %c0_91] : memref<2x22x22xf32, #tpu.memory_space<vmem>>, vector<1x16x22xf32>
    %329 = vector.shape_cast %328 : vector<1x16x22xf32> to vector<16x22xf32>
    %cst_92 = arith.constant 0.000000e+00 : f32
    %330 = vector.broadcast %cst_92 : f32 to vector<16x16xf32>
    %c49 = arith.constant 49 : index
    %331 = memref.load %arg1[%c49] : memref<98xf32, #tpu.memory_space<smem>>
    %332 = vector.extract_strided_slice %329 {offsets = [0, 0], sizes = [16, 16], strides = [1, 1]} : vector<16x22xf32> to vector<16x16xf32>
    %333 = vector.broadcast %331 : f32 to vector<16x16xf32>
    %334 = arith.mulf %333, %332 : vector<16x16xf32>
    %335 = arith.addf %330, %334 : vector<16x16xf32>
    %c50 = arith.constant 50 : index
    %336 = memref.load %arg1[%c50] : memref<98xf32, #tpu.memory_space<smem>>
    %337 = vector.extract_strided_slice %329 {offsets = [0, 1], sizes = [16, 16], strides = [1, 1]} : vector<16x22xf32> to vector<16x16xf32>
    %338 = vector.broadcast %336 : f32 to vector<16x16xf32>
    %339 = arith.mulf %338, %337 : vector<16x16xf32>
    %340 = arith.addf %335, %339 : vector<16x16xf32>
    %c51 = arith.constant 51 : index
    %341 = memref.load %arg1[%c51] : memref<98xf32, #tpu.memory_space<smem>>
    %342 = vector.extract_strided_slice %329 {offsets = [0, 2], sizes = [16, 16], strides = [1, 1]} : vector<16x22xf32> to vector<16x16xf32>
    %343 = vector.broadcast %341 : f32 to vector<16x16xf32>
    %344 = arith.mulf %343, %342 : vector<16x16xf32>
    %345 = arith.addf %340, %344 : vector<16x16xf32>
    %c52 = arith.constant 52 : index
    %346 = memref.load %arg1[%c52] : memref<98xf32, #tpu.memory_space<smem>>
    %347 = vector.extract_strided_slice %329 {offsets = [0, 3], sizes = [16, 16], strides = [1, 1]} : vector<16x22xf32> to vector<16x16xf32>
    %348 = vector.broadcast %346 : f32 to vector<16x16xf32>
    %349 = arith.mulf %348, %347 : vector<16x16xf32>
    %350 = arith.addf %345, %349 : vector<16x16xf32>
    %c53 = arith.constant 53 : index
    %351 = memref.load %arg1[%c53] : memref<98xf32, #tpu.memory_space<smem>>
    %352 = vector.extract_strided_slice %329 {offsets = [0, 4], sizes = [16, 16], strides = [1, 1]} : vector<16x22xf32> to vector<16x16xf32>
    %353 = vector.broadcast %351 : f32 to vector<16x16xf32>
    %354 = arith.mulf %353, %352 : vector<16x16xf32>
    %355 = arith.addf %350, %354 : vector<16x16xf32>
    %c54 = arith.constant 54 : index
    %356 = memref.load %arg1[%c54] : memref<98xf32, #tpu.memory_space<smem>>
    %357 = vector.extract_strided_slice %329 {offsets = [0, 5], sizes = [16, 16], strides = [1, 1]} : vector<16x22xf32> to vector<16x16xf32>
    %358 = vector.broadcast %356 : f32 to vector<16x16xf32>
    %359 = arith.mulf %358, %357 : vector<16x16xf32>
    %360 = arith.addf %355, %359 : vector<16x16xf32>
    %c55 = arith.constant 55 : index
    %361 = memref.load %arg1[%c55] : memref<98xf32, #tpu.memory_space<smem>>
    %362 = vector.extract_strided_slice %329 {offsets = [0, 6], sizes = [16, 16], strides = [1, 1]} : vector<16x22xf32> to vector<16x16xf32>
    %363 = vector.broadcast %361 : f32 to vector<16x16xf32>
    %364 = arith.mulf %363, %362 : vector<16x16xf32>
    %365 = arith.addf %360, %364 : vector<16x16xf32>
    %c0_93 = arith.constant 0 : index
    %c0_94 = arith.constant 0 : index
    %366 = vector.load %arg7[%c0_93, %c0_94] : memref<16x16xf32, #tpu.memory_space<vmem>>, vector<16x16xf32>
    %367 = arith.addf %366, %365 : vector<16x16xf32>
    %c0_95 = arith.constant 0 : index
    %c0_96 = arith.constant 0 : index
    %368 = vector.load %arg7[%c0_95, %c0_96] : memref<16x16xf32, #tpu.memory_space<vmem>>, vector<16x16xf32>
    tpu.vector_store %arg7[%c0_95, %c0_96], %367 {strides = array<i32>} : memref<16x16xf32, #tpu.memory_space<vmem>>, vector<16x16xf32>,
    %c1_97 = arith.constant 1 : index
    %c1_98 = arith.constant 1 : index
    %c0_99 = arith.constant 0 : index
    %369 = vector.load %arg6[%c1_97, %c1_98, %c0_99] : memref<2x22x22xf32, #tpu.memory_space<vmem>>, vector<1x16x22xf32>
    %370 = vector.shape_cast %369 : vector<1x16x22xf32> to vector<16x22xf32>
    %cst_100 = arith.constant 0.000000e+00 : f32
    %371 = vector.broadcast %cst_100 : f32 to vector<16x16xf32>
    %c56 = arith.constant 56 : index
    %372 = memref.load %arg1[%c56] : memref<98xf32, #tpu.memory_space<smem>>
    %373 = vector.extract_strided_slice %370 {offsets = [0, 0], sizes = [16, 16], strides = [1, 1]} : vector<16x22xf32> to vector<16x16xf32>
    %374 = vector.broadcast %372 : f32 to vector<16x16xf32>
    %375 = arith.mulf %374, %373 : vector<16x16xf32>
    %376 = arith.addf %371, %375 : vector<16x16xf32>
    %c57 = arith.constant 57 : index
    %377 = memref.load %arg1[%c57] : memref<98xf32, #tpu.memory_space<smem>>
    %378 = vector.extract_strided_slice %370 {offsets = [0, 1], sizes = [16, 16], strides = [1, 1]} : vector<16x22xf32> to vector<16x16xf32>
    %379 = vector.broadcast %377 : f32 to vector<16x16xf32>
    %380 = arith.mulf %379, %378 : vector<16x16xf32>
    %381 = arith.addf %376, %380 : vector<16x16xf32>
    %c58 = arith.constant 58 : index
    %382 = memref.load %arg1[%c58] : memref<98xf32, #tpu.memory_space<smem>>
    %383 = vector.extract_strided_slice %370 {offsets = [0, 2], sizes = [16, 16], strides = [1, 1]} : vector<16x22xf32> to vector<16x16xf32>
    %384 = vector.broadcast %382 : f32 to vector<16x16xf32>
    %385 = arith.mulf %384, %383 : vector<16x16xf32>
    %386 = arith.addf %381, %385 : vector<16x16xf32>
    %c59 = arith.constant 59 : index
    %387 = memref.load %arg1[%c59] : memref<98xf32, #tpu.memory_space<smem>>
    %388 = vector.extract_strided_slice %370 {offsets = [0, 3], sizes = [16, 16], strides = [1, 1]} : vector<16x22xf32> to vector<16x16xf32>
    %389 = vector.broadcast %387 : f32 to vector<16x16xf32>
    %390 = arith.mulf %389, %388 : vector<16x16xf32>
    %391 = arith.addf %386, %390 : vector<16x16xf32>
    %c60 = arith.constant 60 : index
    %392 = memref.load %arg1[%c60] : memref<98xf32, #tpu.memory_space<smem>>
    %393 = vector.extract_strided_slice %370 {offsets = [0, 4], sizes = [16, 16], strides = [1, 1]} : vector<16x22xf32> to vector<16x16xf32>
    %394 = vector.broadcast %392 : f32 to vector<16x16xf32>
    %395 = arith.mulf %394, %393 : vector<16x16xf32>
    %396 = arith.addf %391, %395 : vector<16x16xf32>
    %c61 = arith.constant 61 : index
    %397 = memref.load %arg1[%c61] : memref<98xf32, #tpu.memory_space<smem>>
    %398 = vector.extract_strided_slice %370 {offsets = [0, 5], sizes = [16, 16], strides = [1, 1]} : vector<16x22xf32> to vector<16x16xf32>
    %399 = vector.broadcast %397 : f32 to vector<16x16xf32>
    %400 = arith.mulf %399, %398 : vector<16x16xf32>
    %401 = arith.addf %396, %400 : vector<16x16xf32>
    %c62 = arith.constant 62 : index
    %402 = memref.load %arg1[%c62] : memref<98xf32, #tpu.memory_space<smem>>
    %403 = vector.extract_strided_slice %370 {offsets = [0, 6], sizes = [16, 16], strides = [1, 1]} : vector<16x22xf32> to vector<16x16xf32>
    %404 = vector.broadcast %402 : f32 to vector<16x16xf32>
    %405 = arith.mulf %404, %403 : vector<16x16xf32>
    %406 = arith.addf %401, %405 : vector<16x16xf32>
    %c0_101 = arith.constant 0 : index
    %c0_102 = arith.constant 0 : index
    %407 = vector.load %arg7[%c0_101, %c0_102] : memref<16x16xf32, #tpu.memory_space<vmem>>, vector<16x16xf32>
    %408 = arith.addf %407, %406 : vector<16x16xf32>
    %c0_103 = arith.constant 0 : index
    %c0_104 = arith.constant 0 : index
    %409 = vector.load %arg7[%c0_103, %c0_104] : memref<16x16xf32, #tpu.memory_space<vmem>>, vector<16x16xf32>
    tpu.vector_store %arg7[%c0_103, %c0_104], %408 {strides = array<i32>} : memref<16x16xf32, #tpu.memory_space<vmem>>, vector<16x16xf32>,
    %c1_105 = arith.constant 1 : index
    %c2_106 = arith.constant 2 : index
    %c0_107 = arith.constant 0 : index
    %410 = vector.load %arg6[%c1_105, %c2_106, %c0_107] : memref<2x22x22xf32, #tpu.memory_space<vmem>>, vector<1x16x22xf32>
    %411 = vector.shape_cast %410 : vector<1x16x22xf32> to vector<16x22xf32>
    %cst_108 = arith.constant 0.000000e+00 : f32
    %412 = vector.broadcast %cst_108 : f32 to vector<16x16xf32>
    %c63 = arith.constant 63 : index
    %413 = memref.load %arg1[%c63] : memref<98xf32, #tpu.memory_space<smem>>
    %414 = vector.extract_strided_slice %411 {offsets = [0, 0], sizes = [16, 16], strides = [1, 1]} : vector<16x22xf32> to vector<16x16xf32>
    %415 = vector.broadcast %413 : f32 to vector<16x16xf32>
    %416 = arith.mulf %415, %414 : vector<16x16xf32>
    %417 = arith.addf %412, %416 : vector<16x16xf32>
    %c64 = arith.constant 64 : index
    %418 = memref.load %arg1[%c64] : memref<98xf32, #tpu.memory_space<smem>>
    %419 = vector.extract_strided_slice %411 {offsets = [0, 1], sizes = [16, 16], strides = [1, 1]} : vector<16x22xf32> to vector<16x16xf32>
    %420 = vector.broadcast %418 : f32 to vector<16x16xf32>
    %421 = arith.mulf %420, %419 : vector<16x16xf32>
    %422 = arith.addf %417, %421 : vector<16x16xf32>
    %c65 = arith.constant 65 : index
    %423 = memref.load %arg1[%c65] : memref<98xf32, #tpu.memory_space<smem>>
    %424 = vector.extract_strided_slice %411 {offsets = [0, 2], sizes = [16, 16], strides = [1, 1]} : vector<16x22xf32> to vector<16x16xf32>
    %425 = vector.broadcast %423 : f32 to vector<16x16xf32>
    %426 = arith.mulf %425, %424 : vector<16x16xf32>
    %427 = arith.addf %422, %426 : vector<16x16xf32>
    %c66 = arith.constant 66 : index
    %428 = memref.load %arg1[%c66] : memref<98xf32, #tpu.memory_space<smem>>
    %429 = vector.extract_strided_slice %411 {offsets = [0, 3], sizes = [16, 16], strides = [1, 1]} : vector<16x22xf32> to vector<16x16xf32>
    %430 = vector.broadcast %428 : f32 to vector<16x16xf32>
    %431 = arith.mulf %430, %429 : vector<16x16xf32>
    %432 = arith.addf %427, %431 : vector<16x16xf32>
    %c67 = arith.constant 67 : index
    %433 = memref.load %arg1[%c67] : memref<98xf32, #tpu.memory_space<smem>>
    %434 = vector.extract_strided_slice %411 {offsets = [0, 4], sizes = [16, 16], strides = [1, 1]} : vector<16x22xf32> to vector<16x16xf32>
    %435 = vector.broadcast %433 : f32 to vector<16x16xf32>
    %436 = arith.mulf %435, %434 : vector<16x16xf32>
    %437 = arith.addf %432, %436 : vector<16x16xf32>
    %c68 = arith.constant 68 : index
    %438 = memref.load %arg1[%c68] : memref<98xf32, #tpu.memory_space<smem>>
    %439 = vector.extract_strided_slice %411 {offsets = [0, 5], sizes = [16, 16], strides = [1, 1]} : vector<16x22xf32> to vector<16x16xf32>
    %440 = vector.broadcast %438 : f32 to vector<16x16xf32>
    %441 = arith.mulf %440, %439 : vector<16x16xf32>
    %442 = arith.addf %437, %441 : vector<16x16xf32>
    %c69 = arith.constant 69 : index
    %443 = memref.load %arg1[%c69] : memref<98xf32, #tpu.memory_space<smem>>
    %444 = vector.extract_strided_slice %411 {offsets = [0, 6], sizes = [16, 16], strides = [1, 1]} : vector<16x22xf32> to vector<16x16xf32>
    %445 = vector.broadcast %443 : f32 to vector<16x16xf32>
    %446 = arith.mulf %445, %444 : vector<16x16xf32>
    %447 = arith.addf %442, %446 : vector<16x16xf32>
    %c0_109 = arith.constant 0 : index
    %c0_110 = arith.constant 0 : index
    %448 = vector.load %arg7[%c0_109, %c0_110] : memref<16x16xf32, #tpu.memory_space<vmem>>, vector<16x16xf32>
    %449 = arith.addf %448, %447 : vector<16x16xf32>
    %c0_111 = arith.constant 0 : index
    %c0_112 = arith.constant 0 : index
    %450 = vector.load %arg7[%c0_111, %c0_112] : memref<16x16xf32, #tpu.memory_space<vmem>>, vector<16x16xf32>
    tpu.vector_store %arg7[%c0_111, %c0_112], %449 {strides = array<i32>} : memref<16x16xf32, #tpu.memory_space<vmem>>, vector<16x16xf32>,
    %c1_113 = arith.constant 1 : index
    %c3_114 = arith.constant 3 : index
    %c0_115 = arith.constant 0 : index
    %451 = vector.load %arg6[%c1_113, %c3_114, %c0_115] : memref<2x22x22xf32, #tpu.memory_space<vmem>>, vector<1x16x22xf32>
    %452 = vector.shape_cast %451 : vector<1x16x22xf32> to vector<16x22xf32>
    %cst_116 = arith.constant 0.000000e+00 : f32
    %453 = vector.broadcast %cst_116 : f32 to vector<16x16xf32>
    %c70 = arith.constant 70 : index
    %454 = memref.load %arg1[%c70] : memref<98xf32, #tpu.memory_space<smem>>
    %455 = vector.extract_strided_slice %452 {offsets = [0, 0], sizes = [16, 16], strides = [1, 1]} : vector<16x22xf32> to vector<16x16xf32>
    %456 = vector.broadcast %454 : f32 to vector<16x16xf32>
    %457 = arith.mulf %456, %455 : vector<16x16xf32>
    %458 = arith.addf %453, %457 : vector<16x16xf32>
    %c71 = arith.constant 71 : index
    %459 = memref.load %arg1[%c71] : memref<98xf32, #tpu.memory_space<smem>>
    %460 = vector.extract_strided_slice %452 {offsets = [0, 1], sizes = [16, 16], strides = [1, 1]} : vector<16x22xf32> to vector<16x16xf32>
    %461 = vector.broadcast %459 : f32 to vector<16x16xf32>
    %462 = arith.mulf %461, %460 : vector<16x16xf32>
    %463 = arith.addf %458, %462 : vector<16x16xf32>
    %c72 = arith.constant 72 : index
    %464 = memref.load %arg1[%c72] : memref<98xf32, #tpu.memory_space<smem>>
    %465 = vector.extract_strided_slice %452 {offsets = [0, 2], sizes = [16, 16], strides = [1, 1]} : vector<16x22xf32> to vector<16x16xf32>
    %466 = vector.broadcast %464 : f32 to vector<16x16xf32>
    %467 = arith.mulf %466, %465 : vector<16x16xf32>
    %468 = arith.addf %463, %467 : vector<16x16xf32>
    %c73 = arith.constant 73 : index
    %469 = memref.load %arg1[%c73] : memref<98xf32, #tpu.memory_space<smem>>
    %470 = vector.extract_strided_slice %452 {offsets = [0, 3], sizes = [16, 16], strides = [1, 1]} : vector<16x22xf32> to vector<16x16xf32>
    %471 = vector.broadcast %469 : f32 to vector<16x16xf32>
    %472 = arith.mulf %471, %470 : vector<16x16xf32>
    %473 = arith.addf %468, %472 : vector<16x16xf32>
    %c74 = arith.constant 74 : index
    %474 = memref.load %arg1[%c74] : memref<98xf32, #tpu.memory_space<smem>>
    %475 = vector.extract_strided_slice %452 {offsets = [0, 4], sizes = [16, 16], strides = [1, 1]} : vector<16x22xf32> to vector<16x16xf32>
    %476 = vector.broadcast %474 : f32 to vector<16x16xf32>
    %477 = arith.mulf %476, %475 : vector<16x16xf32>
    %478 = arith.addf %473, %477 : vector<16x16xf32>
    %c75 = arith.constant 75 : index
    %479 = memref.load %arg1[%c75] : memref<98xf32, #tpu.memory_space<smem>>
    %480 = vector.extract_strided_slice %452 {offsets = [0, 5], sizes = [16, 16], strides = [1, 1]} : vector<16x22xf32> to vector<16x16xf32>
    %481 = vector.broadcast %479 : f32 to vector<16x16xf32>
    %482 = arith.mulf %481, %480 : vector<16x16xf32>
    %483 = arith.addf %478, %482 : vector<16x16xf32>
    %c76 = arith.constant 76 : index
    %484 = memref.load %arg1[%c76] : memref<98xf32, #tpu.memory_space<smem>>
    %485 = vector.extract_strided_slice %452 {offsets = [0, 6], sizes = [16, 16], strides = [1, 1]} : vector<16x22xf32> to vector<16x16xf32>
    %486 = vector.broadcast %484 : f32 to vector<16x16xf32>
    %487 = arith.mulf %486, %485 : vector<16x16xf32>
    %488 = arith.addf %483, %487 : vector<16x16xf32>
    %c0_117 = arith.constant 0 : index
    %c0_118 = arith.constant 0 : index
    %489 = vector.load %arg7[%c0_117, %c0_118] : memref<16x16xf32, #tpu.memory_space<vmem>>, vector<16x16xf32>
    %490 = arith.addf %489, %488 : vector<16x16xf32>
    %c0_119 = arith.constant 0 : index
    %c0_120 = arith.constant 0 : index
    %491 = vector.load %arg7[%c0_119, %c0_120] : memref<16x16xf32, #tpu.memory_space<vmem>>, vector<16x16xf32>
    tpu.vector_store %arg7[%c0_119, %c0_120], %490 {strides = array<i32>} : memref<16x16xf32, #tpu.memory_space<vmem>>, vector<16x16xf32>,
    %c1_121 = arith.constant 1 : index
    %c4_122 = arith.constant 4 : index
    %c0_123 = arith.constant 0 : index
    %492 = vector.load %arg6[%c1_121, %c4_122, %c0_123] : memref<2x22x22xf32, #tpu.memory_space<vmem>>, vector<1x16x22xf32>
    %493 = vector.shape_cast %492 : vector<1x16x22xf32> to vector<16x22xf32>
    %cst_124 = arith.constant 0.000000e+00 : f32
    %494 = vector.broadcast %cst_124 : f32 to vector<16x16xf32>
    %c77 = arith.constant 77 : index
    %495 = memref.load %arg1[%c77] : memref<98xf32, #tpu.memory_space<smem>>
    %496 = vector.extract_strided_slice %493 {offsets = [0, 0], sizes = [16, 16], strides = [1, 1]} : vector<16x22xf32> to vector<16x16xf32>
    %497 = vector.broadcast %495 : f32 to vector<16x16xf32>
    %498 = arith.mulf %497, %496 : vector<16x16xf32>
    %499 = arith.addf %494, %498 : vector<16x16xf32>
    %c78 = arith.constant 78 : index
    %500 = memref.load %arg1[%c78] : memref<98xf32, #tpu.memory_space<smem>>
    %501 = vector.extract_strided_slice %493 {offsets = [0, 1], sizes = [16, 16], strides = [1, 1]} : vector<16x22xf32> to vector<16x16xf32>
    %502 = vector.broadcast %500 : f32 to vector<16x16xf32>
    %503 = arith.mulf %502, %501 : vector<16x16xf32>
    %504 = arith.addf %499, %503 : vector<16x16xf32>
    %c79 = arith.constant 79 : index
    %505 = memref.load %arg1[%c79] : memref<98xf32, #tpu.memory_space<smem>>
    %506 = vector.extract_strided_slice %493 {offsets = [0, 2], sizes = [16, 16], strides = [1, 1]} : vector<16x22xf32> to vector<16x16xf32>
    %507 = vector.broadcast %505 : f32 to vector<16x16xf32>
    %508 = arith.mulf %507, %506 : vector<16x16xf32>
    %509 = arith.addf %504, %508 : vector<16x16xf32>
    %c80 = arith.constant 80 : index
    %510 = memref.load %arg1[%c80] : memref<98xf32, #tpu.memory_space<smem>>
    %511 = vector.extract_strided_slice %493 {offsets = [0, 3], sizes = [16, 16], strides = [1, 1]} : vector<16x22xf32> to vector<16x16xf32>
    %512 = vector.broadcast %510 : f32 to vector<16x16xf32>
    %513 = arith.mulf %512, %511 : vector<16x16xf32>
    %514 = arith.addf %509, %513 : vector<16x16xf32>
    %c81 = arith.constant 81 : index
    %515 = memref.load %arg1[%c81] : memref<98xf32, #tpu.memory_space<smem>>
    %516 = vector.extract_strided_slice %493 {offsets = [0, 4], sizes = [16, 16], strides = [1, 1]} : vector<16x22xf32> to vector<16x16xf32>
    %517 = vector.broadcast %515 : f32 to vector<16x16xf32>
    %518 = arith.mulf %517, %516 : vector<16x16xf32>
    %519 = arith.addf %514, %518 : vector<16x16xf32>
    %c82 = arith.constant 82 : index
    %520 = memref.load %arg1[%c82] : memref<98xf32, #tpu.memory_space<smem>>
    %521 = vector.extract_strided_slice %493 {offsets = [0, 5], sizes = [16, 16], strides = [1, 1]} : vector<16x22xf32> to vector<16x16xf32>
    %522 = vector.broadcast %520 : f32 to vector<16x16xf32>
    %523 = arith.mulf %522, %521 : vector<16x16xf32>
    %524 = arith.addf %519, %523 : vector<16x16xf32>
    %c83 = arith.constant 83 : index
    %525 = memref.load %arg1[%c83] : memref<98xf32, #tpu.memory_space<smem>>
    %526 = vector.extract_strided_slice %493 {offsets = [0, 6], sizes = [16, 16], strides = [1, 1]} : vector<16x22xf32> to vector<16x16xf32>
    %527 = vector.broadcast %525 : f32 to vector<16x16xf32>
    %528 = arith.mulf %527, %526 : vector<16x16xf32>
    %529 = arith.addf %524, %528 : vector<16x16xf32>
    %c0_125 = arith.constant 0 : index
    %c0_126 = arith.constant 0 : index
    %530 = vector.load %arg7[%c0_125, %c0_126] : memref<16x16xf32, #tpu.memory_space<vmem>>, vector<16x16xf32>
    %531 = arith.addf %530, %529 : vector<16x16xf32>
    %c0_127 = arith.constant 0 : index
    %c0_128 = arith.constant 0 : index
    %532 = vector.load %arg7[%c0_127, %c0_128] : memref<16x16xf32, #tpu.memory_space<vmem>>, vector<16x16xf32>
    tpu.vector_store %arg7[%c0_127, %c0_128], %531 {strides = array<i32>} : memref<16x16xf32, #tpu.memory_space<vmem>>, vector<16x16xf32>,
    %c1_129 = arith.constant 1 : index
    %c5_130 = arith.constant 5 : index
    %c0_131 = arith.constant 0 : index
    %533 = vector.load %arg6[%c1_129, %c5_130, %c0_131] : memref<2x22x22xf32, #tpu.memory_space<vmem>>, vector<1x16x22xf32>
    %534 = vector.shape_cast %533 : vector<1x16x22xf32> to vector<16x22xf32>
    %cst_132 = arith.constant 0.000000e+00 : f32
    %535 = vector.broadcast %cst_132 : f32 to vector<16x16xf32>
    %c84 = arith.constant 84 : index
    %536 = memref.load %arg1[%c84] : memref<98xf32, #tpu.memory_space<smem>>
    %537 = vector.extract_strided_slice %534 {offsets = [0, 0], sizes = [16, 16], strides = [1, 1]} : vector<16x22xf32> to vector<16x16xf32>
    %538 = vector.broadcast %536 : f32 to vector<16x16xf32>
    %539 = arith.mulf %538, %537 : vector<16x16xf32>
    %540 = arith.addf %535, %539 : vector<16x16xf32>
    %c85 = arith.constant 85 : index
    %541 = memref.load %arg1[%c85] : memref<98xf32, #tpu.memory_space<smem>>
    %542 = vector.extract_strided_slice %534 {offsets = [0, 1], sizes = [16, 16], strides = [1, 1]} : vector<16x22xf32> to vector<16x16xf32>
    %543 = vector.broadcast %541 : f32 to vector<16x16xf32>
    %544 = arith.mulf %543, %542 : vector<16x16xf32>
    %545 = arith.addf %540, %544 : vector<16x16xf32>
    %c86 = arith.constant 86 : index
    %546 = memref.load %arg1[%c86] : memref<98xf32, #tpu.memory_space<smem>>
    %547 = vector.extract_strided_slice %534 {offsets = [0, 2], sizes = [16, 16], strides = [1, 1]} : vector<16x22xf32> to vector<16x16xf32>
    %548 = vector.broadcast %546 : f32 to vector<16x16xf32>
    %549 = arith.mulf %548, %547 : vector<16x16xf32>
    %550 = arith.addf %545, %549 : vector<16x16xf32>
    %c87 = arith.constant 87 : index
    %551 = memref.load %arg1[%c87] : memref<98xf32, #tpu.memory_space<smem>>
    %552 = vector.extract_strided_slice %534 {offsets = [0, 3], sizes = [16, 16], strides = [1, 1]} : vector<16x22xf32> to vector<16x16xf32>
    %553 = vector.broadcast %551 : f32 to vector<16x16xf32>
    %554 = arith.mulf %553, %552 : vector<16x16xf32>
    %555 = arith.addf %550, %554 : vector<16x16xf32>
    %c88 = arith.constant 88 : index
    %556 = memref.load %arg1[%c88] : memref<98xf32, #tpu.memory_space<smem>>
    %557 = vector.extract_strided_slice %534 {offsets = [0, 4], sizes = [16, 16], strides = [1, 1]} : vector<16x22xf32> to vector<16x16xf32>
    %558 = vector.broadcast %556 : f32 to vector<16x16xf32>
    %559 = arith.mulf %558, %557 : vector<16x16xf32>
    %560 = arith.addf %555, %559 : vector<16x16xf32>
    %c89 = arith.constant 89 : index
    %561 = memref.load %arg1[%c89] : memref<98xf32, #tpu.memory_space<smem>>
    %562 = vector.extract_strided_slice %534 {offsets = [0, 5], sizes = [16, 16], strides = [1, 1]} : vector<16x22xf32> to vector<16x16xf32>
    %563 = vector.broadcast %561 : f32 to vector<16x16xf32>
    %564 = arith.mulf %563, %562 : vector<16x16xf32>
    %565 = arith.addf %560, %564 : vector<16x16xf32>
    %c90 = arith.constant 90 : index
    %566 = memref.load %arg1[%c90] : memref<98xf32, #tpu.memory_space<smem>>
    %567 = vector.extract_strided_slice %534 {offsets = [0, 6], sizes = [16, 16], strides = [1, 1]} : vector<16x22xf32> to vector<16x16xf32>
    %568 = vector.broadcast %566 : f32 to vector<16x16xf32>
    %569 = arith.mulf %568, %567 : vector<16x16xf32>
    %570 = arith.addf %565, %569 : vector<16x16xf32>
    %c0_133 = arith.constant 0 : index
    %c0_134 = arith.constant 0 : index
    %571 = vector.load %arg7[%c0_133, %c0_134] : memref<16x16xf32, #tpu.memory_space<vmem>>, vector<16x16xf32>
    %572 = arith.addf %571, %570 : vector<16x16xf32>
    %c0_135 = arith.constant 0 : index
    %c0_136 = arith.constant 0 : index
    %573 = vector.load %arg7[%c0_135, %c0_136] : memref<16x16xf32, #tpu.memory_space<vmem>>, vector<16x16xf32>
    tpu.vector_store %arg7[%c0_135, %c0_136], %572 {strides = array<i32>} : memref<16x16xf32, #tpu.memory_space<vmem>>, vector<16x16xf32>,
    %c1_137 = arith.constant 1 : index
    %c6_138 = arith.constant 6 : index
    %c0_139 = arith.constant 0 : index
    %574 = vector.load %arg6[%c1_137, %c6_138, %c0_139] : memref<2x22x22xf32, #tpu.memory_space<vmem>>, vector<1x16x22xf32>
    %575 = vector.shape_cast %574 : vector<1x16x22xf32> to vector<16x22xf32>
    %cst_140 = arith.constant 0.000000e+00 : f32
    %576 = vector.broadcast %cst_140 : f32 to vector<16x16xf32>
    %c91 = arith.constant 91 : index
    %577 = memref.load %arg1[%c91] : memref<98xf32, #tpu.memory_space<smem>>
    %578 = vector.extract_strided_slice %575 {offsets = [0, 0], sizes = [16, 16], strides = [1, 1]} : vector<16x22xf32> to vector<16x16xf32>
    %579 = vector.broadcast %577 : f32 to vector<16x16xf32>
    %580 = arith.mulf %579, %578 : vector<16x16xf32>
    %581 = arith.addf %576, %580 : vector<16x16xf32>
    %c92 = arith.constant 92 : index
    %582 = memref.load %arg1[%c92] : memref<98xf32, #tpu.memory_space<smem>>
    %583 = vector.extract_strided_slice %575 {offsets = [0, 1], sizes = [16, 16], strides = [1, 1]} : vector<16x22xf32> to vector<16x16xf32>
    %584 = vector.broadcast %582 : f32 to vector<16x16xf32>
    %585 = arith.mulf %584, %583 : vector<16x16xf32>
    %586 = arith.addf %581, %585 : vector<16x16xf32>
    %c93 = arith.constant 93 : index
    %587 = memref.load %arg1[%c93] : memref<98xf32, #tpu.memory_space<smem>>
    %588 = vector.extract_strided_slice %575 {offsets = [0, 2], sizes = [16, 16], strides = [1, 1]} : vector<16x22xf32> to vector<16x16xf32>
    %589 = vector.broadcast %587 : f32 to vector<16x16xf32>
    %590 = arith.mulf %589, %588 : vector<16x16xf32>
    %591 = arith.addf %586, %590 : vector<16x16xf32>
    %c94 = arith.constant 94 : index
    %592 = memref.load %arg1[%c94] : memref<98xf32, #tpu.memory_space<smem>>
    %593 = vector.extract_strided_slice %575 {offsets = [0, 3], sizes = [16, 16], strides = [1, 1]} : vector<16x22xf32> to vector<16x16xf32>
    %594 = vector.broadcast %592 : f32 to vector<16x16xf32>
    %595 = arith.mulf %594, %593 : vector<16x16xf32>
    %596 = arith.addf %591, %595 : vector<16x16xf32>
    %c95 = arith.constant 95 : index
    %597 = memref.load %arg1[%c95] : memref<98xf32, #tpu.memory_space<smem>>
    %598 = vector.extract_strided_slice %575 {offsets = [0, 4], sizes = [16, 16], strides = [1, 1]} : vector<16x22xf32> to vector<16x16xf32>
    %599 = vector.broadcast %597 : f32 to vector<16x16xf32>
    %600 = arith.mulf %599, %598 : vector<16x16xf32>
    %601 = arith.addf %596, %600 : vector<16x16xf32>
    %c96 = arith.constant 96 : index
    %602 = memref.load %arg1[%c96] : memref<98xf32, #tpu.memory_space<smem>>
    %603 = vector.extract_strided_slice %575 {offsets = [0, 5], sizes = [16, 16], strides = [1, 1]} : vector<16x22xf32> to vector<16x16xf32>
    %604 = vector.broadcast %602 : f32 to vector<16x16xf32>
    %605 = arith.mulf %604, %603 : vector<16x16xf32>
    %606 = arith.addf %601, %605 : vector<16x16xf32>
    %c97 = arith.constant 97 : index
    %607 = memref.load %arg1[%c97] : memref<98xf32, #tpu.memory_space<smem>>
    %608 = vector.extract_strided_slice %575 {offsets = [0, 6], sizes = [16, 16], strides = [1, 1]} : vector<16x22xf32> to vector<16x16xf32>
    %609 = vector.broadcast %607 : f32 to vector<16x16xf32>
    %610 = arith.mulf %609, %608 : vector<16x16xf32>
    %611 = arith.addf %606, %610 : vector<16x16xf32>
    %c0_141 = arith.constant 0 : index
    %c0_142 = arith.constant 0 : index
    %612 = vector.load %arg7[%c0_141, %c0_142] : memref<16x16xf32, #tpu.memory_space<vmem>>, vector<16x16xf32>
    %613 = arith.addf %612, %611 : vector<16x16xf32>
    %c0_143 = arith.constant 0 : index
    %c0_144 = arith.constant 0 : index
    %614 = vector.load %arg7[%c0_143, %c0_144] : memref<16x16xf32, #tpu.memory_space<vmem>>, vector<16x16xf32>
    tpu.vector_store %arg7[%c0_143, %c0_144], %613 {strides = array<i32>} : memref<16x16xf32, #tpu.memory_space<vmem>>, vector<16x16xf32>,
    %c0_145 = arith.constant 0 : index
    %c0_146 = arith.constant 0 : index
    %615 = vector.load %arg7[%c0_145, %c0_146] : memref<16x16xf32, #tpu.memory_space<vmem>>, vector<16x16xf32>
    %616 = arith.negf %615 : vector<16x16xf32>
    %617 = math.exp %616 : vector<16x16xf32>
    %cst_147 = arith.constant 1.000000e+00 : f32
    %618 = vector.broadcast %cst_147 : f32 to vector<16x16xf32>
    %619 = arith.addf %618, %617 : vector<16x16xf32>
    %620 = arith.divf %618, %619 : vector<16x16xf32>
    %621 = vector.shape_cast %620 : vector<16x16xf32> to vector<1x16x16xf32>
    %622 = vector.broadcast %621 : vector<1x16x16xf32> to vector<32x16x16xf32>
    %623 = arith.mulf %26, %622 : vector<32x16x16xf32>
    %c0_148 = arith.constant 0 : index
    %c0_149 = arith.constant 0 : index
    %c0_150 = arith.constant 0 : index
    %c0_151 = arith.constant 0 : index
    %624 = vector.load %arg5[%c0_148, %c0_149, %c0_150, %c0_151] : memref<1x32x16x16xf32, #tpu.memory_space<vmem>>, vector<1x32x16x16xf32>
    %625 = vector.shape_cast %624 : vector<1x32x16x16xf32> to vector<32x16x16xf32>
    %626 = vector.shape_cast %623 : vector<32x16x16xf32> to vector<1x32x16x16xf32>
    tpu.vector_store %arg5[%c0_148, %c0_149, %c0_150, %c0_151], %626 {strides = array<i32>} : memref<1x32x16x16xf32, #tpu.memory_space<vmem>>, vector<1x32x16x16xf32>,
    return
  }
  func.func @transform_0(%arg0: i32) -> i32 {
    %c0_i32 = arith.constant 0 : i32
    %c0_i32_0 = arith.constant 0 : i32
    return %c0_i32 : i32
  }
  func.func @transform_1(%arg0: i32) -> (i32, i32, i32, i32) {
    %c0_i32 = arith.constant 0 : i32
    %c0_i32_0 = arith.constant 0 : i32
    %c0_i32_1 = arith.constant 0 : i32
    %c0_i32_2 = arith.constant 0 : i32
    return %arg0, %c0_i32, %c0_i32_0, %c0_i32_1 : i32, i32, i32, i32
  }
  func.func @transform_2(%arg0: i32) -> (i32, i32) {
    %c0_i32 = arith.constant 0 : i32
    %c0_i32_0 = arith.constant 0 : i32
    %c0_i32_1 = arith.constant 0 : i32
    return %c0_i32, %c0_i32_0 : i32, i32
  }
  func.func @transform_3(%arg0: i32) -> (i32, i32) {
    %c0_i32 = arith.constant 0 : i32
    %c0_i32_0 = arith.constant 0 : i32
    %c0_i32_1 = arith.constant 0 : i32
    return %c0_i32, %c0_i32_0 : i32, i32
  }
  func.func @transform_4(%arg0: i32) -> (i32, i32, i32, i32) {
    %c0_i32 = arith.constant 0 : i32
    %c0_i32_0 = arith.constant 0 : i32
    %c0_i32_1 = arith.constant 0 : i32
    %c0_i32_2 = arith.constant 0 : i32
    return %arg0, %c0_i32, %c0_i32_0, %c0_i32_1 : i32, i32, i32, i32
  }
}

</mosaic_0001>

<llo_original>
// kernel: cbam_forward.1
$region0: #{cbam_forward.1}
  #allocation0 [shape = 'u32[]', space=smem, size = 0x4, offset = 0x4, fixed_abs, tag = 'smem constant byte address 0x4 - core index']
  #allocation1 [shape = 'u32[72,128]{1,0:T(1,128)}', space=vmem, size = 0x9000, scoped, tag = 'internal scratch']
  #allocation2 [shape = 'f32[2,22,22]{2,1,0:T(8,128)}', space=vmem, size = 0x6000, scoped, tag = 'scratch operand']
  #allocation3 [shape = 'f32[16,16]{1,0:T(8,128)}', space=vmem, size = 0x2000, scoped, tag = 'scratch operand']
  %s0 = inlined_call_operand.vmem [shape: f32[98], index: 0, kind: input, shape index: {}]
  %s1 = inlined_call_operand.vmem [shape: f32[2,32,16,16], index: 1, kind: input, shape index: {}]
  %s2 = inlined_call_operand.vmem [shape: f32[4,32], index: 2, kind: input, shape index: {}]
  %s3 = inlined_call_operand.vmem [shape: f32[32,4], index: 3, kind: input, shape index: {}]
  %s4 = inlined_call_operand.vmem [shape: f32[2,32,16,16], index: 4, kind: output, shape index: {}]
  %s5 = sld [smem:[#allocation0]]
  $region53: #{cbam_forward.1} parent=0
    _
  %s7 = ssub.s32 1, %s5
  %s8 = scalar_select 0, %s7, %s5
  $region1: #{cbam_forward.1} parent=0
    #allocation4 [shape = 'u8[512]{0}', space=smem, size = 0x200, scoped, tag = 'input window, operand 0, single buffered']
    #allocation5 [shape = 's32[2]{0}', space=sflag, size = 0x8, scoped, tag = 'scoped memory for cbam_forward.1']
    %9 = vsyncpa [#allocation5], 0
    loop: start=0, step=1, limit=4
    $region2: #{cbam_forward.1} parent=1 // loop_pre_header
      _
    $region3: #{cbam_forward.1} parent=1 // loop_header
      %s11 = sphi 0, %s15
      %p12 = scmp.ge.s32.totalorder %s11, 4
      %s19 = sphi 0, %s19
      %s21 = sphi 0, %s19
      %s22 = sphi 0, %s21
      %s36 = sphi 0, %s22
      %s42 = sphi 0, %s44
      %s45 = sphi 0, %s42
      %s46 = sphi 0, %s45
      %s62 = sphi 0, %s46
      %s66 = sphi 0, %s66
      %s68 = sphi 0, %s66
      %s69 = sphi 0, %s68
      %s83 = sphi 0, %s69
      %s87 = sphi 0, %s87
      %s89 = sphi 0, %s87
      %s90 = sphi 0, %s89
      %s104 = sphi 0, %s90
      %s110 = sphi 0, %s112
      %s113 = sphi 0, %s110
      %s114 = sphi 0, %s113
      %s130 = sphi 0, %s114
    $region4: #{cbam_forward.1} parent=1 // loop_header_branch
      %14 = sbr.rel (%p12) target = $region8
    $region5: #{cbam_forward.1} parent=1 // loop_body
      %s16 = ssub.s32 %s11, 1
      %s17 = ssub.s32 %s11, 2
      %s18 = sadd.s32 %s11, 1
      %s20 = sadd.s32 %s19, 1
      %p23 = scmp.eq.s32.totalorder %s11, 1
      %p24 = scmp.ne.s32.totalorder %s19, %s21
      %p25 = scmp.eq.s32.totalorder %s11, 0
      %p26 = por %p24, %p25
      %p27 = scmp.ne.s32.totalorder %s19, %s21
      %p28 = scmp.eq.s32.totalorder %s16, 1
      %p29 = por %p27, %p28
      %p30 = scmp.ne.s32.totalorder %s21, %s22
      %p31 = scmp.eq.s32.totalorder %s16, 0
      %p32 = por %p30, %p31
      %p33 = scmp.ne.s32.totalorder %s21, %s22
      %p34 = scmp.eq.s32.totalorder %s17, 1
      %p35 = por %p33, %p34
      %p37 = scmp.ne.s32.totalorder %s22, %s36
      %p38 = scmp.eq.s32.totalorder %s17, 0
      %p39 = por %p37, %p38
      %s40 = ssub.s32 %s11, %s18
      %p41 = scmp.eq.s32.totalorder %s40, 0
      %s43 = sadd.s32 %s42, 1
      %s44 = scalar_select %p41, %s42, %s43
      %p47 = pneg %p41
      %p48 = scmp.eq.s32.totalorder %s11, 1
      %p49 = por %p47, %p48
      %p50 = scmp.ne.s32.totalorder %s42, %s45
      %p51 = scmp.eq.s32.totalorder %s11, 0
      %p52 = por %p50, %p51
      %p53 = scmp.ne.s32.totalorder %s42, %s45
      %p54 = scmp.eq.s32.totalorder %s16, 1
      %p55 = por %p53, %p54
      %p56 = scmp.ne.s32.totalorder %s45, %s46
      %p57 = scmp.eq.s32.totalorder %s16, 0
      %p58 = por %p56, %p57
      %p59 = scmp.ne.s32.totalorder %s45, %s46
      %p60 = scmp.eq.s32.totalorder %s17, 1
      %p61 = por %p59, %p60
      %p63 = scmp.ne.s32.totalorder %s46, %s62
      %p64 = scmp.eq.s32.totalorder %s17, 0
      %p65 = por %p63, %p64
      %s67 = sadd.s32 %s66, 1
      %p70 = scmp.eq.s32.totalorder %s11, 1
      %p71 = scmp.ne.s32.totalorder %s66, %s68
      %p72 = scmp.eq.s32.totalorder %s11, 0
      %p73 = por %p71, %p72
      %p74 = scmp.ne.s32.totalorder %s66, %s68
      %p75 = scmp.eq.s32.totalorder %s16, 1
      %p76 = por %p74, %p75
      %p77 = scmp.ne.s32.totalorder %s68, %s69
      %p78 = scmp.eq.s32.totalorder %s16, 0
      %p79 = por %p77, %p78
      %p80 = scmp.ne.s32.totalorder %s68, %s69
      %p81 = scmp.eq.s32.totalorder %s17, 1
      %p82 = por %p80, %p81
      %p84 = scmp.ne.s32.totalorder %s69, %s83
      %p85 = scmp.eq.s32.totalorder %s17, 0
      %p86 = por %p84, %p85
      %s88 = sadd.s32 %s87, 1
      %p91 = scmp.eq.s32.totalorder %s11, 1
      %p92 = scmp.ne.s32.totalorder %s87, %s89
      %p93 = scmp.eq.s32.totalorder %s11, 0
      %p94 = por %p92, %p93
      %p95 = scmp.ne.s32.totalorder %s87, %s89
      %p96 = scmp.eq.s32.totalorder %s16, 1
      %p97 = por %p95, %p96
      %p98 = scmp.ne.s32.totalorder %s89, %s90
      %p99 = scmp.eq.s32.totalorder %s16, 0
      %p100 = por %p98, %p99
      %p101 = scmp.ne.s32.totalorder %s89, %s90
      %p102 = scmp.eq.s32.totalorder %s17, 1
      %p103 = por %p101, %p102
      %p105 = scmp.ne.s32.totalorder %s90, %s104
      %p106 = scmp.eq.s32.totalorder %s17, 0
      %p107 = por %p105, %p106
      %s108 = ssub.s32 %s11, %s18
      %p109 = scmp.eq.s32.totalorder %s108, 0
      %s111 = sadd.s32 %s110, 1
      %s112 = scalar_select %p109, %s110, %s111
      %p115 = pneg %p109
      %p116 = scmp.eq.s32.totalorder %s11, 1
      %p117 = por %p115, %p116
      %p118 = scmp.ne.s32.totalorder %s110, %s113
      %p119 = scmp.eq.s32.totalorder %s11, 0
      %p120 = por %p118, %p119
      %p121 = scmp.ne.s32.totalorder %s110, %s113
      %p122 = scmp.eq.s32.totalorder %s16, 1
      %p123 = por %p121, %p122
      %p124 = scmp.ne.s32.totalorder %s113, %s114
      %p125 = scmp.eq.s32.totalorder %s16, 0
      %p126 = por %p124, %p125
      %p127 = scmp.ne.s32.totalorder %s113, %s114
      %p128 = scmp.eq.s32.totalorder %s17, 1
      %p129 = por %p127, %p128
      %p131 = scmp.ne.s32.totalorder %s114, %s130
      %p132 = scmp.eq.s32.totalorder %s17, 0
      %p133 = por %p131, %p132
      %p134 = scmp.le.s32.totalorder 1, %s11
      %p135 = scmp.lt.s32.totalorder %s11, 3
      %p136 = pnand %p134, %p135
      %p137 = pneg %p136
      // Predicated region
      $region9: #{cbam_forward.1} parent=5 // pred_check
        _
      $region10: #{cbam_forward.1} parent=5 // pred_check_branch
        %139 = sbr.rel (%p136) target = $region12
      $region11: #{cbam_forward.1} parent=5 // pred_region
        %s140 = ssub.s32 %s11, 1
        // Predicated region
        $region13: #{cbam_forward.1} parent=11 // pred_check
          %p141 = pneg %p32
        $region14: #{cbam_forward.1} parent=11 // pred_check_branch
          %143 = sbr.rel (%p141) target = $region16
        $region15: #{cbam_forward.1} parent=11 // pred_region
          %145 = vsyncadd [#allocation5], 0
          %s147 = sshll.u32 %s0, 4
          %s148 = int_to_ptr.vmem [resolvable:$true] %s147
          %150 = dma.vmem_to_smem %s148, 16, [#allocation4], [#allocation5]
        $region16: #{cbam_forward.1} parent=11 // pred_fallthru
          _
        // Predicated region
        $region17: #{cbam_forward.1} parent=11 // pred_check
          %p151 = pneg %p79
        $region18: #{cbam_forward.1} parent=11 // pred_check_branch
          %153 = sbr.rel (%p151) target = $region20
        $region19: #{cbam_forward.1} parent=11 // pred_region
          _
        $region20: #{cbam_forward.1} parent=11 // pred_fallthru
          _
        // Predicated region
        $region21: #{cbam_forward.1} parent=11 // pred_check
          %p154 = pneg %p100
        $region22: #{cbam_forward.1} parent=11 // pred_check_branch
          %156 = sbr.rel (%p154) target = $region24
        $region23: #{cbam_forward.1} parent=11 // pred_region
          _
        $region24: #{cbam_forward.1} parent=11 // pred_fallthru
          _
      $region12: #{cbam_forward.1} parent=5 // pred_fallthru
        _
      %p157 = scmp.lt.s32.totalorder %s11, 2
      // Predicated region
      $region25: #{cbam_forward.1} parent=5 // pred_check
        %p158 = pneg %p157
      $region26: #{cbam_forward.1} parent=5 // pred_check_branch
        %160 = sbr.rel (%p158) target = $region28
      $region27: #{cbam_forward.1} parent=5 // pred_region
        // Predicated region
        $region29: #{cbam_forward.1} parent=27 // pred_check
          %p161 = pneg %p52
        $region30: #{cbam_forward.1} parent=27 // pred_check_branch
          %163 = sbr.rel (%p161) target = $region32
        $region31: #{cbam_forward.1} parent=27 // pred_region
          %p164 = scmp.lt.s32.totalorder %s11, 1
          %s165 = scalar_select %p164, %s11, 1
          %s166 = smul.addr %s165, 64
          %s167 = smul.addr %s166, 8
          %s168 = scalar_lea.vmem %s1, %s167
        $region32: #{cbam_forward.1} parent=27 // pred_fallthru
          _
      $region28: #{cbam_forward.1} parent=5 // pred_fallthru
        _
      %p169 = scmp.le.s32.totalorder 1, %s11
      %p170 = scmp.lt.s32.totalorder %s11, 3
      %p171 = pnand %p169, %p170
      %p172 = pneg %p171
      // Predicated region
      $region33: #{cbam_forward.1} parent=5 // pred_check
        _
      $region34: #{cbam_forward.1} parent=5 // pred_check_branch
        %174 = sbr.rel (%p171) target = $region36
      $region35: #{cbam_forward.1} parent=5 // pred_region
        %s175 = ssub.s32 %s11, 1
        // Predicated region
        $region37: #{cbam_forward.1} parent=35 // pred_check
          %p176 = pneg %p32
        $region38: #{cbam_forward.1} parent=35 // pred_check_branch
          %178 = sbr.rel (%p176) target = $region40
        $region39: #{cbam_forward.1} parent=35 // pred_region
          %180 = dma.done [#allocation5], 16
        $region40: #{cbam_forward.1} parent=35 // pred_fallthru
          _
        %181 = sfence
        %p182 = pneg %p32
        %p183 = pneg %p29
        %p184 = scmp.lt.s32.totalorder %s16, 1
        %s185 = scalar_select %p184, %s16, 1
        %s186 = smul.addr %s185, 64
        %s187 = smul.addr %s186, 8
        %s188 = scalar_lea.vmem %s1, %s187
        %p189 = pneg %p58
        %p190 = pneg %p55
        %p191 = pneg %p79
        %p192 = pneg %p76
        %p193 = pneg %p100
        %p194 = pneg %p97
        %p195 = pneg %p126
        %p196 = pneg %p123
        %p197 = scmp.lt.s32.totalorder %s16, 1
        %s198 = scalar_select %p197, %s16, 1
        %s199 = smul.addr %s198, 64
        %s200 = smul.addr %s199, 8
        %s201 = scalar_lea.vmem %s4, %s200
        %p202 = scmp.lt.s32.totalorder %s16, 1
        %s203 = scalar_select %p202, %s16, 1
        %s204 = smul.addr %s203, 64
        %s205 = smul.addr %s204, 8
        %s206 = scalar_lea.vmem %s1, %s205
        %p207 = scmp.lt.s32.totalorder %s16, 1
        %s208 = scalar_select %p207, %s16, 1
        %s209 = smul.addr %s208, 64
        %s210 = smul.addr %s209, 8
        %s211 = scalar_lea.vmem %s4, %s210
        %v212 = vld [vmem:[%s206] sm:$0xff]
        %v213 = vld [vmem:[%s206 + $0x8] sm:$0xff]
        %v214 = vld [vmem:[%s206 + $0x10] sm:$0xff]
        %v215 = vld [vmem:[%s206 + $0x18] sm:$0xff]
        %v216 = vld [vmem:[%s206 + $0x20] sm:$0xff]
        %v217 = vld [vmem:[%s206 + $0x28] sm:$0xff]
        %v218 = vld [vmem:[%s206 + $0x30] sm:$0xff]
        %v219 = vld [vmem:[%s206 + $0x38] sm:$0xff]
        %v220 = vld [vmem:[%s206 + $0x40] sm:$0xff]
        %v221 = vld [vmem:[%s206 + $0x48] sm:$0xff]
        %v222 = vld [vmem:[%s206 + $0x50] sm:$0xff]
        %v223 = vld [vmem:[%s206 + $0x58] sm:$0xff]
        %v224 = vld [vmem:[%s206 + $0x60] sm:$0xff]
        %v225 = vld [vmem:[%s206 + $0x68] sm:$0xff]
        %v226 = vld [vmem:[%s206 + $0x70] sm:$0xff]
        %v227 = vld [vmem:[%s206 + $0x78] sm:$0xff]
        %v228 = vld [vmem:[%s206 + $0x80] sm:$0xff]
        %v229 = vld [vmem:[%s206 + $0x88] sm:$0xff]
        %v230 = vld [vmem:[%s206 + $0x90] sm:$0xff]
        %v231 = vld [vmem:[%s206 + $0x98] sm:$0xff]
        %v232 = vld [vmem:[%s206 + $0xa0] sm:$0xff]
        %v233 = vld [vmem:[%s206 + $0xa8] sm:$0xff]
        %v234 = vld [vmem:[%s206 + $0xb0] sm:$0xff]
        %v235 = vld [vmem:[%s206 + $0xb8] sm:$0xff]
        %v236 = vld [vmem:[%s206 + $0xc0] sm:$0xff]
        %v237 = vld [vmem:[%s206 + $0xc8] sm:$0xff]
        %v238 = vld [vmem:[%s206 + $0xd0] sm:$0xff]
        %v239 = vld [vmem:[%s206 + $0xd8] sm:$0xff]
        %v240 = vld [vmem:[%s206 + $0xe0] sm:$0xff]
        %v241 = vld [vmem:[%s206 + $0xe8] sm:$0xff]
        %v242 = vld [vmem:[%s206 + $0xf0] sm:$0xff]
        %v243 = vld [vmem:[%s206 + $0xf8] sm:$0xff]
        %v244 = vld [vmem:[%s206 + $0x100] sm:$0xff]
        %v245 = vld [vmem:[%s206 + $0x108] sm:$0xff]
        %v246 = vld [vmem:[%s206 + $0x110] sm:$0xff]
        %v247 = vld [vmem:[%s206 + $0x118] sm:$0xff]
        %v248 = vld [vmem:[%s206 + $0x120] sm:$0xff]
        %v249 = vld [vmem:[%s206 + $0x128] sm:$0xff]
        %v250 = vld [vmem:[%s206 + $0x130] sm:$0xff]
        %v251 = vld [vmem:[%s206 + $0x138] sm:$0xff]
        %v252 = vld [vmem:[%s206 + $0x140] sm:$0xff]
        %v253 = vld [vmem:[%s206 + $0x148] sm:$0xff]
        %v254 = vld [vmem:[%s206 + $0x150] sm:$0xff]
        %v255 = vld [vmem:[%s206 + $0x158] sm:$0xff]
        %v256 = vld [vmem:[%s206 + $0x160] sm:$0xff]
        %v257 = vld [vmem:[%s206 + $0x168] sm:$0xff]
        %v258 = vld [vmem:[%s206 + $0x170] sm:$0xff]
        %v259 = vld [vmem:[%s206 + $0x178] sm:$0xff]
        %v260 = vld [vmem:[%s206 + $0x180] sm:$0xff]
        %v261 = vld [vmem:[%s206 + $0x188] sm:$0xff]
        %v262 = vld [vmem:[%s206 + $0x190] sm:$0xff]
        %v263 = vld [vmem:[%s206 + $0x198] sm:$0xff]
        %v264 = vld [vmem:[%s206 + $0x1a0] sm:$0xff]
        %v265 = vld [vmem:[%s206 + $0x1a8] sm:$0xff]
        %v266 = vld [vmem:[%s206 + $0x1b0] sm:$0xff]
        %v267 = vld [vmem:[%s206 + $0x1b8] sm:$0xff]
        %v268 = vld [vmem:[%s206 + $0x1c0] sm:$0xff]
        %v269 = vld [vmem:[%s206 + $0x1c8] sm:$0xff]
        %v270 = vld [vmem:[%s206 + $0x1d0] sm:$0xff]
        %v271 = vld [vmem:[%s206 + $0x1d8] sm:$0xff]
        %v272 = vld [vmem:[%s206 + $0x1e0] sm:$0xff]
        %v273 = vld [vmem:[%s206 + $0x1e8] sm:$0xff]
        %v274 = vld [vmem:[%s206 + $0x1f0] sm:$0xff]
        %v275 = vld [vmem:[%s206 + $0x1f8] sm:$0xff]
        %vm276 = vcmask 130048
        %v277 = vsel %vm276, %v212, 0.0
        %278 = vadd.xlane.f32.xlu0 %v277
        %v279 = vpop.xlane.xlu0 %278
        %v280 = vsel %vm276, %v213, 0.0
        %281 = vadd.xlane.f32.xlu0 %v280
        %v282 = vpop.xlane.xlu0 %281
        %v283 = vsel %vm276, %v214, 0.0
        %284 = vadd.xlane.f32.xlu0 %v283
        %v285 = vpop.xlane.xlu0 %284
        %v286 = vsel %vm276, %v215, 0.0
        %287 = vadd.xlane.f32.xlu0 %v286
        %v288 = vpop.xlane.xlu0 %287
        %v289 = vsel %vm276, %v216, 0.0
        %290 = vadd.xlane.f32.xlu0 %v289
        %v291 = vpop.xlane.xlu0 %290
        %v292 = vsel %vm276, %v217, 0.0
        %293 = vadd.xlane.f32.xlu0 %v292
        %v294 = vpop.xlane.xlu0 %293
        %v295 = vsel %vm276, %v218, 0.0
        %296 = vadd.xlane.f32.xlu0 %v295
        %v297 = vpop.xlane.xlu0 %296
        %v298 = vsel %vm276, %v219, 0.0
        %299 = vadd.xlane.f32.xlu0 %v298
        %v300 = vpop.xlane.xlu0 %299
        %v301 = vsel %vm276, %v220, 0.0
        %302 = vadd.xlane.f32.xlu0 %v301
        %v303 = vpop.xlane.xlu0 %302
        %v304 = vsel %vm276, %v221, 0.0
        %305 = vadd.xlane.f32.xlu0 %v304
        %v306 = vpop.xlane.xlu0 %305
        %v307 = vsel %vm276, %v222, 0.0
        %308 = vadd.xlane.f32.xlu0 %v307
        %v309 = vpop.xlane.xlu0 %308
        %v310 = vsel %vm276, %v223, 0.0
        %311 = vadd.xlane.f32.xlu0 %v310
        %v312 = vpop.xlane.xlu0 %311
        %v313 = vsel %vm276, %v224, 0.0
        %314 = vadd.xlane.f32.xlu0 %v313
        %v315 = vpop.xlane.xlu0 %314
        %v316 = vsel %vm276, %v225, 0.0
        %317 = vadd.xlane.f32.xlu0 %v316
        %v318 = vpop.xlane.xlu0 %317
        %v319 = vsel %vm276, %v226, 0.0
        %320 = vadd.xlane.f32.xlu0 %v319
        %v321 = vpop.xlane.xlu0 %320
        %v322 = vsel %vm276, %v227, 0.0
        %323 = vadd.xlane.f32.xlu0 %v322
        %v324 = vpop.xlane.xlu0 %323
        %v325 = vsel %vm276, %v228, 0.0
        %326 = vadd.xlane.f32.xlu0 %v325
        %v327 = vpop.xlane.xlu0 %326
        %v328 = vsel %vm276, %v229, 0.0
        %329 = vadd.xlane.f32.xlu0 %v328
        %v330 = vpop.xlane.xlu0 %329
        %v331 = vsel %vm276, %v230, 0.0
        %332 = vadd.xlane.f32.xlu0 %v331
        %v333 = vpop.xlane.xlu0 %332
        %v334 = vsel %vm276, %v231, 0.0
        %335 = vadd.xlane.f32.xlu0 %v334
        %v336 = vpop.xlane.xlu0 %335
        %v337 = vsel %vm276, %v232, 0.0
        %338 = vadd.xlane.f32.xlu0 %v337
        %v339 = vpop.xlane.xlu0 %338
        %v340 = vsel %vm276, %v233, 0.0
        %341 = vadd.xlane.f32.xlu0 %v340
        %v342 = vpop.xlane.xlu0 %341
        %v343 = vsel %vm276, %v234, 0.0
        %344 = vadd.xlane.f32.xlu0 %v343
        %v345 = vpop.xlane.xlu0 %344
        %v346 = vsel %vm276, %v235, 0.0
        %347 = vadd.xlane.f32.xlu0 %v346
        %v348 = vpop.xlane.xlu0 %347
        %v349 = vsel %vm276, %v236, 0.0
        %350 = vadd.xlane.f32.xlu0 %v349
        %v351 = vpop.xlane.xlu0 %350
        %v352 = vsel %vm276, %v237, 0.0
        %353 = vadd.xlane.f32.xlu0 %v352
        %v354 = vpop.xlane.xlu0 %353
        %v355 = vsel %vm276, %v238, 0.0
        %356 = vadd.xlane.f32.xlu0 %v355
        %v357 = vpop.xlane.xlu0 %356
        %v358 = vsel %vm276, %v239, 0.0
        %359 = vadd.xlane.f32.xlu0 %v358
        %v360 = vpop.xlane.xlu0 %359
        %v361 = vsel %vm276, %v240, 0.0
        %362 = vadd.xlane.f32.xlu0 %v361
        %v363 = vpop.xlane.xlu0 %362
        %v364 = vsel %vm276, %v241, 0.0
        %365 = vadd.xlane.f32.xlu0 %v364
        %v366 = vpop.xlane.xlu0 %365
        %v367 = vsel %vm276, %v242, 0.0
        %368 = vadd.xlane.f32.xlu0 %v367
        %v369 = vpop.xlane.xlu0 %368
        %v370 = vsel %vm276, %v243, 0.0
        %371 = vadd.xlane.f32.xlu0 %v370
        %v372 = vpop.xlane.xlu0 %371
        %v373 = vsel %vm276, %v244, 0.0
        %374 = vadd.xlane.f32.xlu0 %v373
        %v375 = vpop.xlane.xlu0 %374
        %v376 = vsel %vm276, %v245, 0.0
        %377 = vadd.xlane.f32.xlu0 %v376
        %v378 = vpop.xlane.xlu0 %377
        %v379 = vsel %vm276, %v246, 0.0
        %380 = vadd.xlane.f32.xlu0 %v379
        %v381 = vpop.xlane.xlu0 %380
        %v382 = vsel %vm276, %v247, 0.0
        %383 = vadd.xlane.f32.xlu0 %v382
        %v384 = vpop.xlane.xlu0 %383
        %v385 = vsel %vm276, %v248, 0.0
        %386 = vadd.xlane.f32.xlu0 %v385
        %v387 = vpop.xlane.xlu0 %386
        %v388 = vsel %vm276, %v249, 0.0
        %389 = vadd.xlane.f32.xlu0 %v388
        %v390 = vpop.xlane.xlu0 %389
        %v391 = vsel %vm276, %v250, 0.0
        %392 = vadd.xlane.f32.xlu0 %v391
        %v393 = vpop.xlane.xlu0 %392
        %v394 = vsel %vm276, %v251, 0.0
        %395 = vadd.xlane.f32.xlu0 %v394
        %v396 = vpop.xlane.xlu0 %395
        %v397 = vsel %vm276, %v252, 0.0
        %398 = vadd.xlane.f32.xlu0 %v397
        %v399 = vpop.xlane.xlu0 %398
        %v400 = vsel %vm276, %v253, 0.0
        %401 = vadd.xlane.f32.xlu0 %v400
        %v402 = vpop.xlane.xlu0 %401
        %v403 = vsel %vm276, %v254, 0.0
        %404 = vadd.xlane.f32.xlu0 %v403
        %v405 = vpop.xlane.xlu0 %404
        %v406 = vsel %vm276, %v255, 0.0
        %407 = vadd.xlane.f32.xlu0 %v406
        %v408 = vpop.xlane.xlu0 %407
        %v409 = vsel %vm276, %v256, 0.0
        %410 = vadd.xlane.f32.xlu0 %v409
        %v411 = vpop.xlane.xlu0 %410
        %v412 = vsel %vm276, %v257, 0.0
        %413 = vadd.xlane.f32.xlu0 %v412
        %v414 = vpop.xlane.xlu0 %413
        %v415 = vsel %vm276, %v258, 0.0
        %416 = vadd.xlane.f32.xlu0 %v415
        %v417 = vpop.xlane.xlu0 %416
        %v418 = vsel %vm276, %v259, 0.0
        %419 = vadd.xlane.f32.xlu0 %v418
        %v420 = vpop.xlane.xlu0 %419
        %v421 = vsel %vm276, %v260, 0.0
        %422 = vadd.xlane.f32.xlu0 %v421
        %v423 = vpop.xlane.xlu0 %422
        %v424 = vsel %vm276, %v261, 0.0
        %425 = vadd.xlane.f32.xlu0 %v424
        %v426 = vpop.xlane.xlu0 %425
        %v427 = vsel %vm276, %v262, 0.0
        %428 = vadd.xlane.f32.xlu0 %v427
        %v429 = vpop.xlane.xlu0 %428
        %v430 = vsel %vm276, %v263, 0.0
        %431 = vadd.xlane.f32.xlu0 %v430
        %v432 = vpop.xlane.xlu0 %431
        %v433 = vsel %vm276, %v264, 0.0
        %434 = vadd.xlane.f32.xlu0 %v433
        %v435 = vpop.xlane.xlu0 %434
        %v436 = vsel %vm276, %v265, 0.0
        %437 = vadd.xlane.f32.xlu0 %v436
        %v438 = vpop.xlane.xlu0 %437
        %v439 = vsel %vm276, %v266, 0.0
        %440 = vadd.xlane.f32.xlu0 %v439
        %v441 = vpop.xlane.xlu0 %440
        %v442 = vsel %vm276, %v267, 0.0
        %443 = vadd.xlane.f32.xlu0 %v442
        %v444 = vpop.xlane.xlu0 %443
        %v445 = vsel %vm276, %v268, 0.0
        %446 = vadd.xlane.f32.xlu0 %v445
        %v447 = vpop.xlane.xlu0 %446
        %v448 = vsel %vm276, %v269, 0.0
        %449 = vadd.xlane.f32.xlu0 %v448
        %v450 = vpop.xlane.xlu0 %449
        %v451 = vsel %vm276, %v270, 0.0
        %452 = vadd.xlane.f32.xlu0 %v451
        %v453 = vpop.xlane.xlu0 %452
        %v454 = vsel %vm276, %v271, 0.0
        %455 = vadd.xlane.f32.xlu0 %v454
        %v456 = vpop.xlane.xlu0 %455
        %v457 = vsel %vm276, %v272, 0.0
        %458 = vadd.xlane.f32.xlu0 %v457
        %v459 = vpop.xlane.xlu0 %458
        %v460 = vsel %vm276, %v273, 0.0
        %461 = vadd.xlane.f32.xlu0 %v460
        %v462 = vpop.xlane.xlu0 %461
        %v463 = vsel %vm276, %v274, 0.0
        %464 = vadd.xlane.f32.xlu0 %v463
        %v465 = vpop.xlane.xlu0 %464
        %v466 = vsel %vm276, %v275, 0.0
        %467 = vadd.xlane.f32.xlu0 %v466
        %v468 = vpop.xlane.xlu0 %467
        %v533 = vlaneseq
        %v534 = vand.u32 %v533, 127
        %v535 = vperm.slane %v279, %v534
        %v536 = vadd.s32 %v534, 4294967288
        %v537 = vperm.slane %v282, %v536
        %vm538 = vcmask 130112
        %v539 = vsel %vm538, %v537, %v535
        %v540 = vperm.slane %v285, %v534
        %v541 = vperm.slane %v288, %v536
        %v542 = vsel %vm538, %v541, %v540
        %v543 = vperm.slane %v291, %v534
        %v544 = vperm.slane %v294, %v536
        %v545 = vsel %vm538, %v544, %v543
        %v546 = vperm.slane %v297, %v534
        %v547 = vperm.slane %v300, %v536
        %v548 = vsel %vm538, %v547, %v546
        %v549 = vperm.slane %v303, %v534
        %v550 = vperm.slane %v306, %v536
        %v551 = vsel %vm538, %v550, %v549
        %v552 = vperm.slane %v309, %v534
        %v553 = vperm.slane %v312, %v536
        %v554 = vsel %vm538, %v553, %v552
        %v555 = vperm.slane %v315, %v534
        %v556 = vperm.slane %v318, %v536
        %v557 = vsel %vm538, %v556, %v555
        %v558 = vperm.slane %v321, %v534
        %v559 = vperm.slane %v324, %v536
        %v560 = vsel %vm538, %v559, %v558
        %v561 = vperm.slane %v327, %v534
        %v562 = vperm.slane %v330, %v536
        %v563 = vsel %vm538, %v562, %v561
        %v564 = vperm.slane %v333, %v534
        %v565 = vperm.slane %v336, %v536
        %v566 = vsel %vm538, %v565, %v564
        %v567 = vperm.slane %v339, %v534
        %v568 = vperm.slane %v342, %v536
        %v569 = vsel %vm538, %v568, %v567
        %v570 = vperm.slane %v345, %v534
        %v571 = vperm.slane %v348, %v536
        %v572 = vsel %vm538, %v571, %v570
        %v573 = vperm.slane %v351, %v534
        %v574 = vperm.slane %v354, %v536
        %v575 = vsel %vm538, %v574, %v573
        %v576 = vperm.slane %v357, %v534
        %v577 = vperm.slane %v360, %v536
        %v578 = vsel %vm538, %v577, %v576
        %v579 = vperm.slane %v363, %v534
        %v580 = vperm.slane %v366, %v536
        %v581 = vsel %vm538, %v580, %v579
        %v582 = vperm.slane %v369, %v534
        %v583 = vperm.slane %v372, %v536
        %v584 = vsel %vm538, %v583, %v582
        %v585 = vperm.slane %v375, %v534
        %v586 = vperm.slane %v378, %v536
        %v587 = vsel %vm538, %v586, %v585
        %v588 = vperm.slane %v381, %v534
        %v589 = vperm.slane %v384, %v536
        %v590 = vsel %vm538, %v589, %v588
        %v591 = vperm.slane %v387, %v534
        %v592 = vperm.slane %v390, %v536
        %v593 = vsel %vm538, %v592, %v591
        %v594 = vperm.slane %v393, %v534
        %v595 = vperm.slane %v396, %v536
        %v596 = vsel %vm538, %v595, %v594
        %v597 = vperm.slane %v399, %v534
        %v598 = vperm.slane %v402, %v536
        %v599 = vsel %vm538, %v598, %v597
        %v600 = vperm.slane %v405, %v534
        %v601 = vperm.slane %v408, %v536
        %v602 = vsel %vm538, %v601, %v600
        %v603 = vperm.slane %v411, %v534
        %v604 = vperm.slane %v414, %v536
        %v605 = vsel %vm538, %v604, %v603
        %v606 = vperm.slane %v417, %v534
        %v607 = vperm.slane %v420, %v536
        %v608 = vsel %vm538, %v607, %v606
        %v609 = vperm.slane %v423, %v534
        %v610 = vperm.slane %v426, %v536
        %v611 = vsel %vm538, %v610, %v609
        %v612 = vperm.slane %v429, %v534
        %v613 = vperm.slane %v432, %v536
        %v614 = vsel %vm538, %v613, %v612
        %v615 = vperm.slane %v435, %v534
        %v616 = vperm.slane %v438, %v536
        %v617 = vsel %vm538, %v616, %v615
        %v618 = vperm.slane %v441, %v534
        %v619 = vperm.slane %v444, %v536
        %v620 = vsel %vm538, %v619, %v618
        %v621 = vperm.slane %v447, %v534
        %v622 = vperm.slane %v450, %v536
        %v623 = vsel %vm538, %v622, %v621
        %v624 = vperm.slane %v453, %v534
        %v625 = vperm.slane %v456, %v536
        %v626 = vsel %vm538, %v625, %v624
        %v627 = vperm.slane %v459, %v534
        %v628 = vperm.slane %v462, %v536
        %v629 = vsel %vm538, %v628, %v627
        %v630 = vperm.slane %v465, %v534
        %v631 = vperm.slane %v468, %v536
        %v632 = vsel %vm538, %v631, %v630
        %vm633 = vcmask 1041409
        %v634 = vsel %vm633, %v542, %v539
        %vm635 = vcmask 1042434
        %v636 = vsel %vm635, %v545, %v634
        %vm637 = vcmask 1043459
        %v638 = vsel %vm637, %v548, %v636
        %vm639 = vcmask 1044484
        %v640 = vsel %vm639, %v551, %v638
        %vm641 = vcmask 1045509
        %v642 = vsel %vm641, %v554, %v640
        %vm643 = vcmask 1046534
        %v644 = vsel %vm643, %v557, %v642
        %vm645 = vcmask 1047559
        %v646 = vsel %vm645, %v560, %v644
        %v647 = vsel %vm633, %v566, %v563
        %v648 = vsel %vm635, %v569, %v647
        %v649 = vsel %vm637, %v572, %v648
        %v650 = vsel %vm639, %v575, %v649
        %v651 = vsel %vm641, %v578, %v650
        %v652 = vsel %vm643, %v581, %v651
        %v653 = vsel %vm645, %v584, %v652
        %v654 = vsel %vm633, %v590, %v587
        %v655 = vsel %vm635, %v593, %v654
        %v656 = vsel %vm637, %v596, %v655
        %v657 = vsel %vm639, %v599, %v656
        %v658 = vsel %vm641, %v602, %v657
        %v659 = vsel %vm643, %v605, %v658
        %v660 = vsel %vm645, %v608, %v659
        %v661 = vsel %vm633, %v614, %v611
        %v662 = vsel %vm635, %v617, %v661
        %v663 = vsel %vm637, %v620, %v662
        %v664 = vsel %vm639, %v623, %v663
        %v665 = vsel %vm641, %v626, %v664
        %v666 = vsel %vm643, %v629, %v665
        %v667 = vsel %vm645, %v632, %v666
        %v672 = vsel %vm276, %v646, 0.0
        %673 = vadd.xlane.f32.xlu0 %v672
        %v674 = vpop.xlane.xlu0 %673
        %v675 = vsel %vm276, %v653, 0.0
        %676 = vadd.xlane.f32.xlu0 %v675
        %v677 = vpop.xlane.xlu0 %676
        %v678 = vsel %vm276, %v660, 0.0
        %679 = vadd.xlane.f32.xlu0 %v678
        %v680 = vpop.xlane.xlu0 %679
        %v681 = vsel %vm276, %v667, 0.0
        %682 = vadd.xlane.f32.xlu0 %v681
        %v683 = vpop.xlane.xlu0 %682
        %v684 = vmul.f32 %v674, 0.00390625
        %v685 = vmul.f32 %v677, 0.00390625
        %v686 = vmul.f32 %v680, 0.00390625
        %v687 = vmul.f32 %v683, 0.00390625
        %v688 = vsel %vm276, %v212, -inf
        %689 = vmax.xlane.f32.xlu0 %v688
        %v690 = vpop.xlane.xlu0 %689
        %v691 = vsel %vm276, %v213, -inf
        %692 = vmax.xlane.f32.xlu0 %v691
        %v693 = vpop.xlane.xlu0 %692
        %v694 = vsel %vm276, %v214, -inf
        %695 = vmax.xlane.f32.xlu0 %v694
        %v696 = vpop.xlane.xlu0 %695
        %v697 = vsel %vm276, %v215, -inf
        %698 = vmax.xlane.f32.xlu0 %v697
        %v699 = vpop.xlane.xlu0 %698
        %v700 = vsel %vm276, %v216, -inf
        %701 = vmax.xlane.f32.xlu0 %v700
        %v702 = vpop.xlane.xlu0 %701
        %v703 = vsel %vm276, %v217, -inf
        %704 = vmax.xlane.f32.xlu0 %v703
        %v705 = vpop.xlane.xlu0 %704
        %v706 = vsel %vm276, %v218, -inf
        %707 = vmax.xlane.f32.xlu0 %v706
        %v708 = vpop.xlane.xlu0 %707
        %v709 = vsel %vm276, %v219, -inf
        %710 = vmax.xlane.f32.xlu0 %v709
        %v711 = vpop.xlane.xlu0 %710
        %v712 = vsel %vm276, %v220, -inf
        %713 = vmax.xlane.f32.xlu0 %v712
        %v714 = vpop.xlane.xlu0 %713
        %v715 = vsel %vm276, %v221, -inf
        %716 = vmax.xlane.f32.xlu0 %v715
        %v717 = vpop.xlane.xlu0 %716
        %v718 = vsel %vm276, %v222, -inf
        %719 = vmax.xlane.f32.xlu0 %v718
        %v720 = vpop.xlane.xlu0 %719
        %v721 = vsel %vm276, %v223, -inf
        %722 = vmax.xlane.f32.xlu0 %v721
        %v723 = vpop.xlane.xlu0 %722
        %v724 = vsel %vm276, %v224, -inf
        %725 = vmax.xlane.f32.xlu0 %v724
        %v726 = vpop.xlane.xlu0 %725
        %v727 = vsel %vm276, %v225, -inf
        %728 = vmax.xlane.f32.xlu0 %v727
        %v729 = vpop.xlane.xlu0 %728
        %v730 = vsel %vm276, %v226, -inf
        %731 = vmax.xlane.f32.xlu0 %v730
        %v732 = vpop.xlane.xlu0 %731
        %v733 = vsel %vm276, %v227, -inf
        %734 = vmax.xlane.f32.xlu0 %v733
        %v735 = vpop.xlane.xlu0 %734
        %v736 = vsel %vm276, %v228, -inf
        %737 = vmax.xlane.f32.xlu0 %v736
        %v738 = vpop.xlane.xlu0 %737
        %v739 = vsel %vm276, %v229, -inf
        %740 = vmax.xlane.f32.xlu0 %v739
        %v741 = vpop.xlane.xlu0 %740
        %v742 = vsel %vm276, %v230, -inf
        %743 = vmax.xlane.f32.xlu0 %v742
        %v744 = vpop.xlane.xlu0 %743
        %v745 = vsel %vm276, %v231, -inf
        %746 = vmax.xlane.f32.xlu0 %v745
        %v747 = vpop.xlane.xlu0 %746
        %v748 = vsel %vm276, %v232, -inf
        %749 = vmax.xlane.f32.xlu0 %v748
        %v750 = vpop.xlane.xlu0 %749
        %v751 = vsel %vm276, %v233, -inf
        %752 = vmax.xlane.f32.xlu0 %v751
        %v753 = vpop.xlane.xlu0 %752
        %v754 = vsel %vm276, %v234, -inf
        %755 = vmax.xlane.f32.xlu0 %v754
        %v756 = vpop.xlane.xlu0 %755
        %v757 = vsel %vm276, %v235, -inf
        %758 = vmax.xlane.f32.xlu0 %v757
        %v759 = vpop.xlane.xlu0 %758
        %v760 = vsel %vm276, %v236, -inf
        %761 = vmax.xlane.f32.xlu0 %v760
        %v762 = vpop.xlane.xlu0 %761
        %v763 = vsel %vm276, %v237, -inf
        %764 = vmax.xlane.f32.xlu0 %v763
        %v765 = vpop.xlane.xlu0 %764
        %v766 = vsel %vm276, %v238, -inf
        %767 = vmax.xlane.f32.xlu0 %v766
        %v768 = vpop.xlane.xlu0 %767
        %v769 = vsel %vm276, %v239, -inf
        %770 = vmax.xlane.f32.xlu0 %v769
        %v771 = vpop.xlane.xlu0 %770
        %v772 = vsel %vm276, %v240, -inf
        %773 = vmax.xlane.f32.xlu0 %v772
        %v774 = vpop.xlane.xlu0 %773
        %v775 = vsel %vm276, %v241, -inf
        %776 = vmax.xlane.f32.xlu0 %v775
        %v777 = vpop.xlane.xlu0 %776
        %v778 = vsel %vm276, %v242, -inf
        %779 = vmax.xlane.f32.xlu0 %v778
        %v780 = vpop.xlane.xlu0 %779
        %v781 = vsel %vm276, %v243, -inf
        %782 = vmax.xlane.f32.xlu0 %v781
        %v783 = vpop.xlane.xlu0 %782
        %v784 = vsel %vm276, %v244, -inf
        %785 = vmax.xlane.f32.xlu0 %v784
        %v786 = vpop.xlane.xlu0 %785
        %v787 = vsel %vm276, %v245, -inf
        %788 = vmax.xlane.f32.xlu0 %v787
        %v789 = vpop.xlane.xlu0 %788
        %v790 = vsel %vm276, %v246, -inf
        %791 = vmax.xlane.f32.xlu0 %v790
        %v792 = vpop.xlane.xlu0 %791
        %v793 = vsel %vm276, %v247, -inf
        %794 = vmax.xlane.f32.xlu0 %v793
        %v795 = vpop.xlane.xlu0 %794
        %v796 = vsel %vm276, %v248, -inf
        %797 = vmax.xlane.f32.xlu0 %v796
        %v798 = vpop.xlane.xlu0 %797
        %v799 = vsel %vm276, %v249, -inf
        %800 = vmax.xlane.f32.xlu0 %v799
        %v801 = vpop.xlane.xlu0 %800
        %v802 = vsel %vm276, %v250, -inf
        %803 = vmax.xlane.f32.xlu0 %v802
        %v804 = vpop.xlane.xlu0 %803
        %v805 = vsel %vm276, %v251, -inf
        %806 = vmax.xlane.f32.xlu0 %v805
        %v807 = vpop.xlane.xlu0 %806
        %v808 = vsel %vm276, %v252, -inf
        %809 = vmax.xlane.f32.xlu0 %v808
        %v810 = vpop.xlane.xlu0 %809
        %v811 = vsel %vm276, %v253, -inf
        %812 = vmax.xlane.f32.xlu0 %v811
        %v813 = vpop.xlane.xlu0 %812
        %v814 = vsel %vm276, %v254, -inf
        %815 = vmax.xlane.f32.xlu0 %v814
        %v816 = vpop.xlane.xlu0 %815
        %v817 = vsel %vm276, %v255, -inf
        %818 = vmax.xlane.f32.xlu0 %v817
        %v819 = vpop.xlane.xlu0 %818
        %v820 = vsel %vm276, %v256, -inf
        %821 = vmax.xlane.f32.xlu0 %v820
        %v822 = vpop.xlane.xlu0 %821
        %v823 = vsel %vm276, %v257, -inf
        %824 = vmax.xlane.f32.xlu0 %v823
        %v825 = vpop.xlane.xlu0 %824
        %v826 = vsel %vm276, %v258, -inf
        %827 = vmax.xlane.f32.xlu0 %v826
        %v828 = vpop.xlane.xlu0 %827
        %v829 = vsel %vm276, %v259, -inf
        %830 = vmax.xlane.f32.xlu0 %v829
        %v831 = vpop.xlane.xlu0 %830
        %v832 = vsel %vm276, %v260, -inf
        %833 = vmax.xlane.f32.xlu0 %v832
        %v834 = vpop.xlane.xlu0 %833
        %v835 = vsel %vm276, %v261, -inf
        %836 = vmax.xlane.f32.xlu0 %v835
        %v837 = vpop.xlane.xlu0 %836
        %v838 = vsel %vm276, %v262, -inf
        %839 = vmax.xlane.f32.xlu0 %v838
        %v840 = vpop.xlane.xlu0 %839
        %v841 = vsel %vm276, %v263, -inf
        %842 = vmax.xlane.f32.xlu0 %v841
        %v843 = vpop.xlane.xlu0 %842
        %v844 = vsel %vm276, %v264, -inf
        %845 = vmax.xlane.f32.xlu0 %v844
        %v846 = vpop.xlane.xlu0 %845
        %v847 = vsel %vm276, %v265, -inf
        %848 = vmax.xlane.f32.xlu0 %v847
        %v849 = vpop.xlane.xlu0 %848
        %v850 = vsel %vm276, %v266, -inf
        %851 = vmax.xlane.f32.xlu0 %v850
        %v852 = vpop.xlane.xlu0 %851
        %v853 = vsel %vm276, %v267, -inf
        %854 = vmax.xlane.f32.xlu0 %v853
        %v855 = vpop.xlane.xlu0 %854
        %v856 = vsel %vm276, %v268, -inf
        %857 = vmax.xlane.f32.xlu0 %v856
        %v858 = vpop.xlane.xlu0 %857
        %v859 = vsel %vm276, %v269, -inf
        %860 = vmax.xlane.f32.xlu0 %v859
        %v861 = vpop.xlane.xlu0 %860
        %v862 = vsel %vm276, %v270, -inf
        %863 = vmax.xlane.f32.xlu0 %v862
        %v864 = vpop.xlane.xlu0 %863
        %v865 = vsel %vm276, %v271, -inf
        %866 = vmax.xlane.f32.xlu0 %v865
        %v867 = vpop.xlane.xlu0 %866
        %v868 = vsel %vm276, %v272, -inf
        %869 = vmax.xlane.f32.xlu0 %v868
        %v870 = vpop.xlane.xlu0 %869
        %v871 = vsel %vm276, %v273, -inf
        %872 = vmax.xlane.f32.xlu0 %v871
        %v873 = vpop.xlane.xlu0 %872
        %v874 = vsel %vm276, %v274, -inf
        %875 = vmax.xlane.f32.xlu0 %v874
        %v876 = vpop.xlane.xlu0 %875
        %v877 = vsel %vm276, %v275, -inf
        %878 = vmax.xlane.f32.xlu0 %v877
        %v879 = vpop.xlane.xlu0 %878
        %v944 = vperm.slane %v690, %v534
        %v945 = vperm.slane %v693, %v536
        %v946 = vsel %vm538, %v945, %v944
        %v947 = vperm.slane %v696, %v534
        %v948 = vperm.slane %v699, %v536
        %v949 = vsel %vm538, %v948, %v947
        %v950 = vperm.slane %v702, %v534
        %v951 = vperm.slane %v705, %v536
        %v952 = vsel %vm538, %v951, %v950
        %v953 = vperm.slane %v708, %v534
        %v954 = vperm.slane %v711, %v536
        %v955 = vsel %vm538, %v954, %v953
        %v956 = vperm.slane %v714, %v534
        %v957 = vperm.slane %v717, %v536
        %v958 = vsel %vm538, %v957, %v956
        %v959 = vperm.slane %v720, %v534
        %v960 = vperm.slane %v723, %v536
        %v961 = vsel %vm538, %v960, %v959
        %v962 = vperm.slane %v726, %v534
        %v963 = vperm.slane %v729, %v536
        %v964 = vsel %vm538, %v963, %v962
        %v965 = vperm.slane %v732, %v534
        %v966 = vperm.slane %v735, %v536
        %v967 = vsel %vm538, %v966, %v965
        %v968 = vperm.slane %v738, %v534
        %v969 = vperm.slane %v741, %v536
        %v970 = vsel %vm538, %v969, %v968
        %v971 = vperm.slane %v744, %v534
        %v972 = vperm.slane %v747, %v536
        %v973 = vsel %vm538, %v972, %v971
        %v974 = vperm.slane %v750, %v534
        %v975 = vperm.slane %v753, %v536
        %v976 = vsel %vm538, %v975, %v974
        %v977 = vperm.slane %v756, %v534
        %v978 = vperm.slane %v759, %v536
        %v979 = vsel %vm538, %v978, %v977
        %v980 = vperm.slane %v762, %v534
        %v981 = vperm.slane %v765, %v536
        %v982 = vsel %vm538, %v981, %v980
        %v983 = vperm.slane %v768, %v534
        %v984 = vperm.slane %v771, %v536
        %v985 = vsel %vm538, %v984, %v983
        %v986 = vperm.slane %v774, %v534
        %v987 = vperm.slane %v777, %v536
        %v988 = vsel %vm538, %v987, %v986
        %v989 = vperm.slane %v780, %v534
        %v990 = vperm.slane %v783, %v536
        %v991 = vsel %vm538, %v990, %v989
        %v992 = vperm.slane %v786, %v534
        %v993 = vperm.slane %v789, %v536
        %v994 = vsel %vm538, %v993, %v992
        %v995 = vperm.slane %v792, %v534
        %v996 = vperm.slane %v795, %v536
        %v997 = vsel %vm538, %v996, %v995
        %v998 = vperm.slane %v798, %v534
        %v999 = vperm.slane %v801, %v536
        %v1000 = vsel %vm538, %v999, %v998
        %v1001 = vperm.slane %v804, %v534
        %v1002 = vperm.slane %v807, %v536
        %v1003 = vsel %vm538, %v1002, %v1001
        %v1004 = vperm.slane %v810, %v534
        %v1005 = vperm.slane %v813, %v536
        %v1006 = vsel %vm538, %v1005, %v1004
        %v1007 = vperm.slane %v816, %v534
        %v1008 = vperm.slane %v819, %v536
        %v1009 = vsel %vm538, %v1008, %v1007
        %v1010 = vperm.slane %v822, %v534
        %v1011 = vperm.slane %v825, %v536
        %v1012 = vsel %vm538, %v1011, %v1010
        %v1013 = vperm.slane %v828, %v534
        %v1014 = vperm.slane %v831, %v536
        %v1015 = vsel %vm538, %v1014, %v1013
        %v1016 = vperm.slane %v834, %v534
        %v1017 = vperm.slane %v837, %v536
        %v1018 = vsel %vm538, %v1017, %v1016
        %v1019 = vperm.slane %v840, %v534
        %v1020 = vperm.slane %v843, %v536
        %v1021 = vsel %vm538, %v1020, %v1019
        %v1022 = vperm.slane %v846, %v534
        %v1023 = vperm.slane %v849, %v536
        %v1024 = vsel %vm538, %v1023, %v1022
        %v1025 = vperm.slane %v852, %v534
        %v1026 = vperm.slane %v855, %v536
        %v1027 = vsel %vm538, %v1026, %v1025
        %v1028 = vperm.slane %v858, %v534
        %v1029 = vperm.slane %v861, %v536
        %v1030 = vsel %vm538, %v1029, %v1028
        %v1031 = vperm.slane %v864, %v534
        %v1032 = vperm.slane %v867, %v536
        %v1033 = vsel %vm538, %v1032, %v1031
        %v1034 = vperm.slane %v870, %v534
        %v1035 = vperm.slane %v873, %v536
        %v1036 = vsel %vm538, %v1035, %v1034
        %v1037 = vperm.slane %v876, %v534
        %v1038 = vperm.slane %v879, %v536
        %v1039 = vsel %vm538, %v1038, %v1037
        %v1040 = vsel %vm633, %v949, %v946
        %v1041 = vsel %vm635, %v952, %v1040
        %v1042 = vsel %vm637, %v955, %v1041
        %v1043 = vsel %vm639, %v958, %v1042
        %v1044 = vsel %vm641, %v961, %v1043
        %v1045 = vsel %vm643, %v964, %v1044
        %v1046 = vsel %vm645, %v967, %v1045
        %v1047 = vsel %vm633, %v973, %v970
        %v1048 = vsel %vm635, %v976, %v1047
        %v1049 = vsel %vm637, %v979, %v1048
        %v1050 = vsel %vm639, %v982, %v1049
        %v1051 = vsel %vm641, %v985, %v1050
        %v1052 = vsel %vm643, %v988, %v1051
        %v1053 = vsel %vm645, %v991, %v1052
        %v1054 = vsel %vm633, %v997, %v994
        %v1055 = vsel %vm635, %v1000, %v1054
        %v1056 = vsel %vm637, %v1003, %v1055
        %v1057 = vsel %vm639, %v1006, %v1056
        %v1058 = vsel %vm641, %v1009, %v1057
        %v1059 = vsel %vm643, %v1012, %v1058
        %v1060 = vsel %vm645, %v1015, %v1059
        %v1061 = vsel %vm633, %v1021, %v1018
        %v1062 = vsel %vm635, %v1024, %v1061
        %v1063 = vsel %vm637, %v1027, %v1062
        %v1064 = vsel %vm639, %v1030, %v1063
        %v1065 = vsel %vm641, %v1033, %v1064
        %v1066 = vsel %vm643, %v1036, %v1065
        %v1067 = vsel %vm645, %v1039, %v1066
        %v1072 = vsel %vm276, %v1046, -inf
        %1073 = vmax.xlane.f32.xlu0 %v1072
        %v1074 = vpop.xlane.xlu0 %1073
        %v1075 = vsel %vm276, %v1053, -inf
        %1076 = vmax.xlane.f32.xlu0 %v1075
        %v1077 = vpop.xlane.xlu0 %1076
        %v1078 = vsel %vm276, %v1060, -inf
        %1079 = vmax.xlane.f32.xlu0 %v1078
        %v1080 = vpop.xlane.xlu0 %1079
        %v1081 = vsel %vm276, %v1067, -inf
        %1082 = vmax.xlane.f32.xlu0 %v1081
        %v1083 = vpop.xlane.xlu0 %1082
        %v1084 = vld [vmem:[%s2] sm:$0xf]
        %v1085 = vld [vmem:[%s3] sm:$0xff]
        %v1086 = vld [vmem:[%s3 + $0x8] sm:$0xff]
        %v1087 = vld [vmem:[%s3 + $0x10] sm:$0xff]
        %v1088 = vld [vmem:[%s3 + $0x18] sm:$0xff]
        %vm1089 = vcmask 7168
        %v1090 = vsel %vm1089, %v684, %v1074
        %v1091 = vsel %vm1089, %v685, %v1077
        %v1092 = vsel %vm1089, %v686, %v1080
        %v1093 = vsel %vm1089, %v687, %v1083
        %vm1094 = vcmask 261120
        %v1096 = vsel %vm1094, %v1084, 0
        %1098 = vmatpush.msra.mxu0 0.0
        %1099 = vmatpush.msra.mxu0 0.0
        %1100 = vmatpush.msra.mxu0 0.0
        %1101 = vmatpush.msra.mxu0 0.0
        %1102 = vmatpush.msra.mxu0 0.0
        %1103 = vmatpush.msra.mxu0 0.0
        %1104 = vmatpush.msra.mxu0 0.0
        %1105 = vmatpush.msra.mxu0 0.0
        %1106 = vmatpush.msra.mxu0 0.0
        %1107 = vmatpush.msra.mxu0 0.0
        %1108 = vmatpush.msra.mxu0 0.0
        %1109 = vmatpush.msra.mxu0 0.0
        %1110 = vmatpush.msra.mxu0 %v1093
        %1111 = vmatpush.msra.mxu0 %v1092
        %1112 = vmatpush.msra.mxu0 %v1091
        %1113 = vmatpush.msra.mxu0 %v1090
        %1114 = vmatmul.f32.gmra.mxu0 %v1096
        %v1115 = vpop.f32.mrf.mxu0
        %v1116 = vadd.f32 0.0, %v1115
        %1117 = vdwg.mxu0
        %v1118 = vmax.f32 %v1116, 0.0
        %vm1119 = vcmask 11264
        %v1120 = vsel %vm1119, %v1118, 0.0
        %1121 = vadd.xlane.f32.xlu0 %v1120
        %v1122 = vpop.xlane.xlu0 %1121
        %vm1123 = vcmask 31744
        %v1125 = vsel %vm1123, %v1085, 0
        %v1128 = vsel %vm1123, %v1086, 0
        %v1131 = vsel %vm1123, %v1087, 0
        %v1134 = vsel %vm1123, %v1088, 0
        %vm1136 = vcmask 1043456
        %v1138 = vsel %vm1136, %v1122, 0
        %1140 = vmatpush.msra.mxu0 0.0
        %1141 = vmatpush.msra.mxu0 0.0
        %1142 = vmatpush.msra.mxu0 0.0
        %1143 = vmatpush.msra.mxu0 0.0
        %1144 = vmatpush.msra.mxu0 0.0
        %1145 = vmatpush.msra.mxu0 0.0
        %1146 = vmatpush.msra.mxu0 0.0
        %1147 = vmatpush.msra.mxu0 0.0
        %1148 = vmatpush.msra.mxu0 0.0
        %1149 = vmatpush.msra.mxu0 0.0
        %1150 = vmatpush.msra.mxu0 0.0
        %1151 = vmatpush.msra.mxu0 0.0
        %1152 = vmatpush.msra.mxu0 0.0
        %1153 = vmatpush.msra.mxu0 0.0
        %1154 = vmatpush.msra.mxu0 0.0
        %1155 = vmatpush.msra.mxu0 %v1138
        %1156 = vmatmul.f32.gmra.mxu0 %v1125
        %v1157 = vpop.f32.mrf.mxu0
        %v1158 = vadd.f32 0.0, %v1157
        %1159 = vmatmul.f32.gmra.mxu0 %v1128
        %v1160 = vpop.f32.mrf.mxu0
        %v1161 = vadd.f32 0.0, %v1160
        %1162 = vmatmul.f32.gmra.mxu0 %v1131
        %v1163 = vpop.f32.mrf.mxu0
        %v1164 = vadd.f32 0.0, %v1163
        %1165 = vmatmul.f32.gmra.mxu0 %v1134
        %v1166 = vpop.f32.mrf.mxu0
        %v1167 = vadd.f32 0.0, %v1166
        %1168 = vdwg.mxu0
        %v1169 = vxor.u32 %v1158, 2147483648
        %v1170 = vxor.u32 %v1161, 2147483648
        %v1171 = vxor.u32 %v1164, 2147483648
        %v1172 = vxor.u32 %v1167, 2147483648
        %v1173 = vmul.f32 %v1169, 1.442695
        %v1174 = vpow.pop %v1173
        %v1175 = vmul.f32 %v1170, 1.442695
        %v1176 = vpow.pop %v1175
        %v1177 = vmul.f32 %v1171, 1.442695
        %v1178 = vpow.pop %v1177
        %v1179 = vmul.f32 %v1172, 1.442695
        %v1180 = vpow.pop %v1179
        %v1181 = vadd.f32 %v1174, 1.0
        %v1182 = vadd.f32 %v1176, 1.0
        %v1183 = vadd.f32 %v1178, 1.0
        %v1184 = vadd.f32 %v1180, 1.0
        %v1185 = vrcp.pop %v1181
        %v1186 = vmul.f32 %v1181, %v1185
        %v1187 = vsub.f32 1.0, %v1186
        %v1188 = vmul.f32 %v1185, %v1187
        %v1189 = vadd.f32 %v1185, %v1188
        %vm1190 = vweird.f32 %v1181
        %vm1191 = vweird.f32 %v1185
        %vm1192 = vmor %vm1190, %vm1191
        %v1193 = vsel %vm1192, %v1185, %v1189
        %v1194 = vand.u32 2147483647, %v1181
        %vm1195 = vcmp.eq.f32.partialorder %v1194, 8.507059e+37
        %v1196 = vand.u32 %v1181, 2147483648
        %v1197 = vor.u32 1.1754944e-38, %v1196
        %v1198 = vsel %vm1195, %v1197, %v1193
        %v1199 = vmul.f32 1.0, %v1198
        %v1200 = vrcp.pop %v1182
        %v1201 = vmul.f32 %v1182, %v1200
        %v1202 = vsub.f32 1.0, %v1201
        %v1203 = vmul.f32 %v1200, %v1202
        %v1204 = vadd.f32 %v1200, %v1203
        %vm1205 = vweird.f32 %v1182
        %vm1206 = vweird.f32 %v1200
        %vm1207 = vmor %vm1205, %vm1206
        %v1208 = vsel %vm1207, %v1200, %v1204
        %v1209 = vand.u32 2147483647, %v1182
        %vm1210 = vcmp.eq.f32.partialorder %v1209, 8.507059e+37
        %v1211 = vand.u32 %v1182, 2147483648
        %v1212 = vor.u32 1.1754944e-38, %v1211
        %v1213 = vsel %vm1210, %v1212, %v1208
        %v1214 = vmul.f32 1.0, %v1213
        %v1215 = vrcp.pop %v1183
        %v1216 = vmul.f32 %v1183, %v1215
        %v1217 = vsub.f32 1.0, %v1216
        %v1218 = vmul.f32 %v1215, %v1217
        %v1219 = vadd.f32 %v1215, %v1218
        %vm1220 = vweird.f32 %v1183
        %vm1221 = vweird.f32 %v1215
        %vm1222 = vmor %vm1220, %vm1221
        %v1223 = vsel %vm1222, %v1215, %v1219
        %v1224 = vand.u32 2147483647, %v1183
        %vm1225 = vcmp.eq.f32.partialorder %v1224, 8.507059e+37
        %v1226 = vand.u32 %v1183, 2147483648
        %v1227 = vor.u32 1.1754944e-38, %v1226
        %v1228 = vsel %vm1225, %v1227, %v1223
        %v1229 = vmul.f32 1.0, %v1228
        %v1230 = vrcp.pop %v1184
        %v1231 = vmul.f32 %v1184, %v1230
        %v1232 = vsub.f32 1.0, %v1231
        %v1233 = vmul.f32 %v1230, %v1232
        %v1234 = vadd.f32 %v1230, %v1233
        %vm1235 = vweird.f32 %v1184
        %vm1236 = vweird.f32 %v1230
        %vm1237 = vmor %vm1235, %vm1236
        %v1238 = vsel %vm1237, %v1230, %v1234
        %v1239 = vand.u32 2147483647, %v1184
        %vm1240 = vcmp.eq.f32.partialorder %v1239, 8.507059e+37
        %v1241 = vand.u32 %v1184, 2147483648
        %v1242 = vor.u32 1.1754944e-38, %v1241
        %v1243 = vsel %vm1240, %v1242, %v1238
        %v1244 = vmul.f32 1.0, %v1243
        %v1249 = vrot.slane %v1199, 1
        %v1250 = vrot.slane %v1199, 2
        %v1251 = vrot.slane %v1199, 3
        %v1252 = vrot.slane %v1199, 4
        %v1253 = vrot.slane %v1199, 5
        %v1254 = vrot.slane %v1199, 6
        %v1255 = vrot.slane %v1199, 7
        %v1256 = vrot.slane %v1214, 1
        %v1257 = vrot.slane %v1214, 2
        %v1258 = vrot.slane %v1214, 3
        %v1259 = vrot.slane %v1214, 4
        %v1260 = vrot.slane %v1214, 5
        %v1261 = vrot.slane %v1214, 6
        %v1262 = vrot.slane %v1214, 7
        %v1263 = vrot.slane %v1229, 1
        %v1264 = vrot.slane %v1229, 2
        %v1265 = vrot.slane %v1229, 3
        %v1266 = vrot.slane %v1229, 4
        %v1267 = vrot.slane %v1229, 5
        %v1268 = vrot.slane %v1229, 6
        %v1269 = vrot.slane %v1229, 7
        %v1270 = vrot.slane %v1244, 1
        %v1271 = vrot.slane %v1244, 2
        %v1272 = vrot.slane %v1244, 3
        %v1273 = vrot.slane %v1244, 4
        %v1274 = vrot.slane %v1244, 5
        %v1275 = vrot.slane %v1244, 6
        %v1276 = vrot.slane %v1244, 7
        %v1277 = vperm.slane %v1199, 0
        %v1278 = vperm.slane %v1249, 0
        %v1279 = vperm.slane %v1250, 0
        %v1280 = vperm.slane %v1251, 0
        %v1281 = vperm.slane %v1252, 0
        %v1282 = vperm.slane %v1253, 0
        %v1283 = vperm.slane %v1254, 0
        %v1284 = vperm.slane %v1255, 0
        %v1285 = vperm.slane %v1214, 0
        %v1286 = vperm.slane %v1256, 0
        %v1287 = vperm.slane %v1257, 0
        %v1288 = vperm.slane %v1258, 0
        %v1289 = vperm.slane %v1259, 0
        %v1290 = vperm.slane %v1260, 0
        %v1291 = vperm.slane %v1261, 0
        %v1292 = vperm.slane %v1262, 0
        %v1293 = vperm.slane %v1229, 0
        %v1294 = vperm.slane %v1263, 0
        %v1295 = vperm.slane %v1264, 0
        %v1296 = vperm.slane %v1265, 0
        %v1297 = vperm.slane %v1266, 0
        %v1298 = vperm.slane %v1267, 0
        %v1299 = vperm.slane %v1268, 0
        %v1300 = vperm.slane %v1269, 0
        %v1301 = vperm.slane %v1244, 0
        %v1302 = vperm.slane %v1270, 0
        %v1303 = vperm.slane %v1271, 0
        %v1304 = vperm.slane %v1272, 0
        %v1305 = vperm.slane %v1273, 0
        %v1306 = vperm.slane %v1274, 0
        %v1307 = vperm.slane %v1275, 0
        %v1308 = vperm.slane %v1276, 0
        %1309 = vset.pattern.permute.xlu0 0
        %1310 = vperm.xlu0 %1309, %v1277
        %v1311 = vpop.permute.xlu0 %1310
        %1313 = vset.pattern.permute.xlu0 0
        %1314 = vperm.xlu0 %1313, %v1278
        %v1315 = vpop.permute.xlu0 %1314
        %1317 = vset.pattern.permute.xlu0 0
        %1318 = vperm.xlu0 %1317, %v1279
        %v1319 = vpop.permute.xlu0 %1318
        %1321 = vset.pattern.permute.xlu0 0
        %1322 = vperm.xlu0 %1321, %v1280
        %v1323 = vpop.permute.xlu0 %1322
        %1325 = vset.pattern.permute.xlu0 0
        %1326 = vperm.xlu0 %1325, %v1281
        %v1327 = vpop.permute.xlu0 %1326
        %1329 = vset.pattern.permute.xlu0 0
        %1330 = vperm.xlu0 %1329, %v1282
        %v1331 = vpop.permute.xlu0 %1330
        %1333 = vset.pattern.permute.xlu0 0
        %1334 = vperm.xlu0 %1333, %v1283
        %v1335 = vpop.permute.xlu0 %1334
        %1337 = vset.pattern.permute.xlu0 0
        %1338 = vperm.xlu0 %1337, %v1284
        %v1339 = vpop.permute.xlu0 %1338
        %1341 = vset.pattern.permute.xlu0 0
        %1342 = vperm.xlu0 %1341, %v1285
        %v1343 = vpop.permute.xlu0 %1342
        %1345 = vset.pattern.permute.xlu0 0
        %1346 = vperm.xlu0 %1345, %v1286
        %v1347 = vpop.permute.xlu0 %1346
        %1349 = vset.pattern.permute.xlu0 0
        %1350 = vperm.xlu0 %1349, %v1287
        %v1351 = vpop.permute.xlu0 %1350
        %1353 = vset.pattern.permute.xlu0 0
        %1354 = vperm.xlu0 %1353, %v1288
        %v1355 = vpop.permute.xlu0 %1354
        %1357 = vset.pattern.permute.xlu0 0
        %1358 = vperm.xlu0 %1357, %v1289
        %v1359 = vpop.permute.xlu0 %1358
        %1361 = vset.pattern.permute.xlu0 0
        %1362 = vperm.xlu0 %1361, %v1290
        %v1363 = vpop.permute.xlu0 %1362
        %1365 = vset.pattern.permute.xlu0 0
        %1366 = vperm.xlu0 %1365, %v1291
        %v1367 = vpop.permute.xlu0 %1366
        %1369 = vset.pattern.permute.xlu0 0
        %1370 = vperm.xlu0 %1369, %v1292
        %v1371 = vpop.permute.xlu0 %1370
        %1373 = vset.pattern.permute.xlu0 0
        %1374 = vperm.xlu0 %1373, %v1293
        %v1375 = vpop.permute.xlu0 %1374
        %1377 = vset.pattern.permute.xlu0 0
        %1378 = vperm.xlu0 %1377, %v1294
        %v1379 = vpop.permute.xlu0 %1378
        %1381 = vset.pattern.permute.xlu0 0
        %1382 = vperm.xlu0 %1381, %v1295
        %v1383 = vpop.permute.xlu0 %1382
        %1385 = vset.pattern.permute.xlu0 0
        %1386 = vperm.xlu0 %1385, %v1296
        %v1387 = vpop.permute.xlu0 %1386
        %1389 = vset.pattern.permute.xlu0 0
        %1390 = vperm.xlu0 %1389, %v1297
        %v1391 = vpop.permute.xlu0 %1390
        %1393 = vset.pattern.permute.xlu0 0
        %1394 = vperm.xlu0 %1393, %v1298
        %v1395 = vpop.permute.xlu0 %1394
        %1397 = vset.pattern.permute.xlu0 0
        %1398 = vperm.xlu0 %1397, %v1299
        %v1399 = vpop.permute.xlu0 %1398
        %1401 = vset.pattern.permute.xlu0 0
        %1402 = vperm.xlu0 %1401, %v1300
        %v1403 = vpop.permute.xlu0 %1402
        %1405 = vset.pattern.permute.xlu0 0
        %1406 = vperm.xlu0 %1405, %v1301
        %v1407 = vpop.permute.xlu0 %1406
        %1409 = vset.pattern.permute.xlu0 0
        %1410 = vperm.xlu0 %1409, %v1302
        %v1411 = vpop.permute.xlu0 %1410
        %1413 = vset.pattern.permute.xlu0 0
        %1414 = vperm.xlu0 %1413, %v1303
        %v1415 = vpop.permute.xlu0 %1414
        %1417 = vset.pattern.permute.xlu0 0
        %1418 = vperm.xlu0 %1417, %v1304
        %v1419 = vpop.permute.xlu0 %1418
        %1421 = vset.pattern.permute.xlu0 0
        %1422 = vperm.xlu0 %1421, %v1305
        %v1423 = vpop.permute.xlu0 %1422
        %1425 = vset.pattern.permute.xlu0 0
        %1426 = vperm.xlu0 %1425, %v1306
        %v1427 = vpop.permute.xlu0 %1426
        %1429 = vset.pattern.permute.xlu0 0
        %1430 = vperm.xlu0 %1429, %v1307
        %v1431 = vpop.permute.xlu0 %1430
        %1433 = vset.pattern.permute.xlu0 0
        %1434 = vperm.xlu0 %1433, %v1308
        %v1435 = vpop.permute.xlu0 %1434
        %v1437 = vmul.f32 %v212, %v1311
        %v1438 = vmul.f32 %v213, %v1311
        %v1439 = vmul.f32 %v214, %v1315
        %v1440 = vmul.f32 %v215, %v1315
        %v1441 = vmul.f32 %v216, %v1319
        %v1442 = vmul.f32 %v217, %v1319
        %v1443 = vmul.f32 %v218, %v1323
        %v1444 = vmul.f32 %v219, %v1323
        %v1445 = vmul.f32 %v220, %v1327
        %v1446 = vmul.f32 %v221, %v1327
        %v1447 = vmul.f32 %v222, %v1331
        %v1448 = vmul.f32 %v223, %v1331
        %v1449 = vmul.f32 %v224, %v1335
        %v1450 = vmul.f32 %v225, %v1335
        %v1451 = vmul.f32 %v226, %v1339
        %v1452 = vmul.f32 %v227, %v1339
        %v1453 = vmul.f32 %v228, %v1343
        %v1454 = vmul.f32 %v229, %v1343
        %v1455 = vmul.f32 %v230, %v1347
        %v1456 = vmul.f32 %v231, %v1347
        %v1457 = vmul.f32 %v232, %v1351
        %v1458 = vmul.f32 %v233, %v1351
        %v1459 = vmul.f32 %v234, %v1355
        %v1460 = vmul.f32 %v235, %v1355
        %v1461 = vmul.f32 %v236, %v1359
        %v1462 = vmul.f32 %v237, %v1359
        %v1463 = vmul.f32 %v238, %v1363
        %v1464 = vmul.f32 %v239, %v1363
        %v1465 = vmul.f32 %v240, %v1367
        %v1466 = vmul.f32 %v241, %v1367
        %v1467 = vmul.f32 %v242, %v1371
        %v1468 = vmul.f32 %v243, %v1371
        %v1469 = vmul.f32 %v244, %v1375
        %v1470 = vmul.f32 %v245, %v1375
        %v1471 = vmul.f32 %v246, %v1379
        %v1472 = vmul.f32 %v247, %v1379
        %v1473 = vmul.f32 %v248, %v1383
        %v1474 = vmul.f32 %v249, %v1383
        %v1475 = vmul.f32 %v250, %v1387
        %v1476 = vmul.f32 %v251, %v1387
        %v1477 = vmul.f32 %v252, %v1391
        %v1478 = vmul.f32 %v253, %v1391
        %v1479 = vmul.f32 %v254, %v1395
        %v1480 = vmul.f32 %v255, %v1395
        %v1481 = vmul.f32 %v256, %v1399
        %v1482 = vmul.f32 %v257, %v1399
        %v1483 = vmul.f32 %v258, %v1403
        %v1484 = vmul.f32 %v259, %v1403
        %v1485 = vmul.f32 %v260, %v1407
        %v1486 = vmul.f32 %v261, %v1407
        %v1487 = vmul.f32 %v262, %v1411
        %v1488 = vmul.f32 %v263, %v1411
        %v1489 = vmul.f32 %v264, %v1415
        %v1490 = vmul.f32 %v265, %v1415
        %v1491 = vmul.f32 %v266, %v1419
        %v1492 = vmul.f32 %v267, %v1419
        %v1493 = vmul.f32 %v268, %v1423
        %v1494 = vmul.f32 %v269, %v1423
        %v1495 = vmul.f32 %v270, %v1427
        %v1496 = vmul.f32 %v271, %v1427
        %v1497 = vmul.f32 %v272, %v1431
        %v1498 = vmul.f32 %v273, %v1431
        %v1499 = vmul.f32 %v274, %v1435
        %v1500 = vmul.f32 %v275, %v1435
        %v1501 = vsel %vm276, %v1437, 0.0
        %v1502 = vsel %vm276, %v1439, 0.0
        %v1503 = vadd.f32 %v1501, %v1502
        %v1504 = vsel %vm276, %v1441, 0.0
        %v1505 = vadd.f32 %v1503, %v1504
        %v1506 = vsel %vm276, %v1443, 0.0
        %v1507 = vadd.f32 %v1505, %v1506
        %v1508 = vsel %vm276, %v1445, 0.0
        %v1509 = vadd.f32 %v1507, %v1508
        %v1510 = vsel %vm276, %v1447, 0.0
        %v1511 = vadd.f32 %v1509, %v1510
        %v1512 = vsel %vm276, %v1449, 0.0
        %v1513 = vadd.f32 %v1511, %v1512
        %v1514 = vsel %vm276, %v1451, 0.0
        %v1515 = vadd.f32 %v1513, %v1514
        %v1516 = vsel %vm276, %v1453, 0.0
        %v1517 = vadd.f32 %v1515, %v1516
        %v1518 = vsel %vm276, %v1455, 0.0
        %v1519 = vadd.f32 %v1517, %v1518
        %v1520 = vsel %vm276, %v1457, 0.0
        %v1521 = vadd.f32 %v1519, %v1520
        %v1522 = vsel %vm276, %v1459, 0.0
        %v1523 = vadd.f32 %v1521, %v1522
        %v1524 = vsel %vm276, %v1461, 0.0
        %v1525 = vadd.f32 %v1523, %v1524
        %v1526 = vsel %vm276, %v1463, 0.0
        %v1527 = vadd.f32 %v1525, %v1526
        %v1528 = vsel %vm276, %v1465, 0.0
        %v1529 = vadd.f32 %v1527, %v1528
        %v1530 = vsel %vm276, %v1467, 0.0
        %v1531 = vadd.f32 %v1529, %v1530
        %v1532 = vsel %vm276, %v1469, 0.0
        %v1533 = vadd.f32 %v1531, %v1532
        %v1534 = vsel %vm276, %v1471, 0.0
        %v1535 = vadd.f32 %v1533, %v1534
        %v1536 = vsel %vm276, %v1473, 0.0
        %v1537 = vadd.f32 %v1535, %v1536
        %v1538 = vsel %vm276, %v1475, 0.0
        %v1539 = vadd.f32 %v1537, %v1538
        %v1540 = vsel %vm276, %v1477, 0.0
        %v1541 = vadd.f32 %v1539, %v1540
        %v1542 = vsel %vm276, %v1479, 0.0
        %v1543 = vadd.f32 %v1541, %v1542
        %v1544 = vsel %vm276, %v1481, 0.0
        %v1545 = vadd.f32 %v1543, %v1544
        %v1546 = vsel %vm276, %v1483, 0.0
        %v1547 = vadd.f32 %v1545, %v1546
        %v1548 = vsel %vm276, %v1485, 0.0
        %v1549 = vadd.f32 %v1547, %v1548
        %v1550 = vsel %vm276, %v1487, 0.0
        %v1551 = vadd.f32 %v1549, %v1550
        %v1552 = vsel %vm276, %v1489, 0.0
        %v1553 = vadd.f32 %v1551, %v1552
        %v1554 = vsel %vm276, %v1491, 0.0
        %v1555 = vadd.f32 %v1553, %v1554
        %v1556 = vsel %vm276, %v1493, 0.0
        %v1557 = vadd.f32 %v1555, %v1556
        %v1558 = vsel %vm276, %v1495, 0.0
        %v1559 = vadd.f32 %v1557, %v1558
        %v1560 = vsel %vm276, %v1497, 0.0
        %v1561 = vadd.f32 %v1559, %v1560
        %v1562 = vsel %vm276, %v1499, 0.0
        %v1563 = vadd.f32 %v1561, %v1562
        %v1564 = vsel %vm276, %v1438, 0.0
        %v1565 = vsel %vm276, %v1440, 0.0
        %v1566 = vadd.f32 %v1564, %v1565
        %v1567 = vsel %vm276, %v1442, 0.0
        %v1568 = vadd.f32 %v1566, %v1567
        %v1569 = vsel %vm276, %v1444, 0.0
        %v1570 = vadd.f32 %v1568, %v1569
        %v1571 = vsel %vm276, %v1446, 0.0
        %v1572 = vadd.f32 %v1570, %v1571
        %v1573 = vsel %vm276, %v1448, 0.0
        %v1574 = vadd.f32 %v1572, %v1573
        %v1575 = vsel %vm276, %v1450, 0.0
        %v1576 = vadd.f32 %v1574, %v1575
        %v1577 = vsel %vm276, %v1452, 0.0
        %v1578 = vadd.f32 %v1576, %v1577
        %v1579 = vsel %vm276, %v1454, 0.0
        %v1580 = vadd.f32 %v1578, %v1579
        %v1581 = vsel %vm276, %v1456, 0.0
        %v1582 = vadd.f32 %v1580, %v1581
        %v1583 = vsel %vm276, %v1458, 0.0
        %v1584 = vadd.f32 %v1582, %v1583
        %v1585 = vsel %vm276, %v1460, 0.0
        %v1586 = vadd.f32 %v1584, %v1585
        %v1587 = vsel %vm276, %v1462, 0.0
        %v1588 = vadd.f32 %v1586, %v1587
        %v1589 = vsel %vm276, %v1464, 0.0
        %v1590 = vadd.f32 %v1588, %v1589
        %v1591 = vsel %vm276, %v1466, 0.0
        %v1592 = vadd.f32 %v1590, %v1591
        %v1593 = vsel %vm276, %v1468, 0.0
        %v1594 = vadd.f32 %v1592, %v1593
        %v1595 = vsel %vm276, %v1470, 0.0
        %v1596 = vadd.f32 %v1594, %v1595
        %v1597 = vsel %vm276, %v1472, 0.0
        %v1598 = vadd.f32 %v1596, %v1597
        %v1599 = vsel %vm276, %v1474, 0.0
        %v1600 = vadd.f32 %v1598, %v1599
        %v1601 = vsel %vm276, %v1476, 0.0
        %v1602 = vadd.f32 %v1600, %v1601
        %v1603 = vsel %vm276, %v1478, 0.0
        %v1604 = vadd.f32 %v1602, %v1603
        %v1605 = vsel %vm276, %v1480, 0.0
        %v1606 = vadd.f32 %v1604, %v1605
        %v1607 = vsel %vm276, %v1482, 0.0
        %v1608 = vadd.f32 %v1606, %v1607
        %v1609 = vsel %vm276, %v1484, 0.0
        %v1610 = vadd.f32 %v1608, %v1609
        %v1611 = vsel %vm276, %v1486, 0.0
        %v1612 = vadd.f32 %v1610, %v1611
        %v1613 = vsel %vm276, %v1488, 0.0
        %v1614 = vadd.f32 %v1612, %v1613
        %v1615 = vsel %vm276, %v1490, 0.0
        %v1616 = vadd.f32 %v1614, %v1615
        %v1617 = vsel %vm276, %v1492, 0.0
        %v1618 = vadd.f32 %v1616, %v1617
        %v1619 = vsel %vm276, %v1494, 0.0
        %v1620 = vadd.f32 %v1618, %v1619
        %v1621 = vsel %vm276, %v1496, 0.0
        %v1622 = vadd.f32 %v1620, %v1621
        %v1623 = vsel %vm276, %v1498, 0.0
        %v1624 = vadd.f32 %v1622, %v1623
        %v1625 = vsel %vm276, %v1500, 0.0
        %v1626 = vadd.f32 %v1624, %v1625
        %v1627 = vrcp.pop 32.0
        %v1628 = vmul.f32 32.0, %v1627
        %v1629 = vsub.f32 1.0, %v1628
        %v1630 = vmul.f32 %v1627, %v1629
        %v1631 = vadd.f32 %v1627, %v1630
        %vm1632 = vweird.f32 %v1627
        %v1633 = vsel %vm1632, %v1627, %v1631
        %v1634 = vmul.f32 %v1563, %v1633
        %v1635 = vmul.f32 %v1626, %v1633
        %v1636 = vsel %vm276, %v1437, -inf
        %v1637 = vsel %vm276, %v1439, -inf
        %v1638 = vsel %vm276, %v1441, -inf
        %v1639 = vmax.f32 %v1636, %v1638
        %v1640 = vsel %vm276, %v1443, -inf
        %v1641 = vmax.f32 %v1637, %v1640
        %v1642 = vsel %vm276, %v1445, -inf
        %v1643 = vmax.f32 %v1639, %v1642
        %v1644 = vsel %vm276, %v1447, -inf
        %v1645 = vmax.f32 %v1641, %v1644
        %v1646 = vsel %vm276, %v1449, -inf
        %v1647 = vmax.f32 %v1643, %v1646
        %v1648 = vsel %vm276, %v1451, -inf
        %v1649 = vmax.f32 %v1645, %v1648
        %v1650 = vsel %vm276, %v1453, -inf
        %v1651 = vmax.f32 %v1647, %v1650
        %v1652 = vsel %vm276, %v1455, -inf
        %v1653 = vmax.f32 %v1649, %v1652
        %v1654 = vsel %vm276, %v1457, -inf
        %v1655 = vmax.f32 %v1651, %v1654
        %v1656 = vsel %vm276, %v1459, -inf
        %v1657 = vmax.f32 %v1653, %v1656
        %v1658 = vsel %vm276, %v1461, -inf
        %v1659 = vmax.f32 %v1655, %v1658
        %v1660 = vsel %vm276, %v1463, -inf
        %v1661 = vmax.f32 %v1657, %v1660
        %v1662 = vsel %vm276, %v1465, -inf
        %v1663 = vmax.f32 %v1659, %v1662
        %v1664 = vsel %vm276, %v1467, -inf
        %v1665 = vmax.f32 %v1661, %v1664
        %v1666 = vsel %vm276, %v1469, -inf
        %v1667 = vmax.f32 %v1663, %v1666
        %v1668 = vsel %vm276, %v1471, -inf
        %v1669 = vmax.f32 %v1665, %v1668
        %v1670 = vsel %vm276, %v1473, -inf
        %v1671 = vmax.f32 %v1667, %v1670
        %v1672 = vsel %vm276, %v1475, -inf
        %v1673 = vmax.f32 %v1669, %v1672
        %v1674 = vsel %vm276, %v1477, -inf
        %v1675 = vmax.f32 %v1671, %v1674
        %v1676 = vsel %vm276, %v1479, -inf
        %v1677 = vmax.f32 %v1673, %v1676
        %v1678 = vsel %vm276, %v1481, -inf
        %v1679 = vmax.f32 %v1675, %v1678
        %v1680 = vsel %vm276, %v1483, -inf
        %v1681 = vmax.f32 %v1677, %v1680
        %v1682 = vsel %vm276, %v1485, -inf
        %v1683 = vmax.f32 %v1679, %v1682
        %v1684 = vsel %vm276, %v1487, -inf
        %v1685 = vmax.f32 %v1681, %v1684
        %v1686 = vsel %vm276, %v1489, -inf
        %v1687 = vmax.f32 %v1683, %v1686
        %v1688 = vsel %vm276, %v1491, -inf
        %v1689 = vmax.f32 %v1685, %v1688
        %v1690 = vsel %vm276, %v1493, -inf
        %v1691 = vmax.f32 %v1687, %v1690
        %v1692 = vsel %vm276, %v1495, -inf
        %v1693 = vmax.f32 %v1689, %v1692
        %v1694 = vsel %vm276, %v1497, -inf
        %v1695 = vmax.f32 %v1691, %v1694
        %v1696 = vsel %vm276, %v1499, -inf
        %v1697 = vmax.f32 %v1693, %v1696
        %v1698 = vmax.f32 %v1695, %v1697
        %v1699 = vsel %vm276, %v1438, -inf
        %v1700 = vsel %vm276, %v1440, -inf
        %v1701 = vsel %vm276, %v1442, -inf
        %v1702 = vmax.f32 %v1699, %v1701
        %v1703 = vsel %vm276, %v1444, -inf
        %v1704 = vmax.f32 %v1700, %v1703
        %v1705 = vsel %vm276, %v1446, -inf
        %v1706 = vmax.f32 %v1702, %v1705
        %v1707 = vsel %vm276, %v1448, -inf
        %v1708 = vmax.f32 %v1704, %v1707
        %v1709 = vsel %vm276, %v1450, -inf
        %v1710 = vmax.f32 %v1706, %v1709
        %v1711 = vsel %vm276, %v1452, -inf
        %v1712 = vmax.f32 %v1708, %v1711
        %v1713 = vsel %vm276, %v1454, -inf
        %v1714 = vmax.f32 %v1710, %v1713
        %v1715 = vsel %vm276, %v1456, -inf
        %v1716 = vmax.f32 %v1712, %v1715
        %v1717 = vsel %vm276, %v1458, -inf
        %v1718 = vmax.f32 %v1714, %v1717
        %v1719 = vsel %vm276, %v1460, -inf
        %v1720 = vmax.f32 %v1716, %v1719
        %v1721 = vsel %vm276, %v1462, -inf
        %v1722 = vmax.f32 %v1718, %v1721
        %v1723 = vsel %vm276, %v1464, -inf
        %v1724 = vmax.f32 %v1720, %v1723
        %v1725 = vsel %vm276, %v1466, -inf
        %v1726 = vmax.f32 %v1722, %v1725
        %v1727 = vsel %vm276, %v1468, -inf
        %v1728 = vmax.f32 %v1724, %v1727
        %v1729 = vsel %vm276, %v1470, -inf
        %v1730 = vmax.f32 %v1726, %v1729
        %v1731 = vsel %vm276, %v1472, -inf
        %v1732 = vmax.f32 %v1728, %v1731
        %v1733 = vsel %vm276, %v1474, -inf
        %v1734 = vmax.f32 %v1730, %v1733
        %v1735 = vsel %vm276, %v1476, -inf
        %v1736 = vmax.f32 %v1732, %v1735
        %v1737 = vsel %vm276, %v1478, -inf
        %v1738 = vmax.f32 %v1734, %v1737
        %v1739 = vsel %vm276, %v1480, -inf
        %v1740 = vmax.f32 %v1736, %v1739
        %v1741 = vsel %vm276, %v1482, -inf
        %v1742 = vmax.f32 %v1738, %v1741
        %v1743 = vsel %vm276, %v1484, -inf
        %v1744 = vmax.f32 %v1740, %v1743
        %v1745 = vsel %vm276, %v1486, -inf
        %v1746 = vmax.f32 %v1742, %v1745
        %v1747 = vsel %vm276, %v1488, -inf
        %v1748 = vmax.f32 %v1744, %v1747
        %v1749 = vsel %vm276, %v1490, -inf
        %v1750 = vmax.f32 %v1746, %v1749
        %v1751 = vsel %vm276, %v1492, -inf
        %v1752 = vmax.f32 %v1748, %v1751
        %v1753 = vsel %vm276, %v1494, -inf
        %v1754 = vmax.f32 %v1750, %v1753
        %v1755 = vsel %vm276, %v1496, -inf
        %v1756 = vmax.f32 %v1752, %v1755
        %v1757 = vsel %vm276, %v1498, -inf
        %v1758 = vmax.f32 %v1754, %v1757
        %v1759 = vsel %vm276, %v1500, -inf
        %v1760 = vmax.f32 %v1756, %v1759
        %v1761 = vmax.f32 %v1758, %v1760
        %vm1762 = vcmask 179200
        %1763 = vst.msk [vmem:[#allocation2] sm:$0xff] %vm1762, 0.0
        %1764 = vst.msk [vmem:[#allocation2 + $0x8] sm:$0xff] %vm1762, 0.0
        %vm1765 = vcmask 177152
        %1766 = vst.msk [vmem:[#allocation2 + $0x10] sm:$0x3f] %vm1765, 0.0
        %1767 = vst.msk [vmem:[#allocation2 + $0x18] sm:$0xff] %vm1762, 0.0
        %1768 = vst.msk [vmem:[#allocation2 + $0x20] sm:$0xff] %vm1762, 0.0
        %1769 = vst.msk [vmem:[#allocation2 + $0x28] sm:$0x3f] %vm1765, 0.0
        %1772 = vrot.lane.b32.xlu0 %v1634, 3
        %v1773 = vpop.permute.xlu0 %1772
        %1774 = vrot.lane.b32.xlu0 %v1635, 3
        %v1775 = vpop.permute.xlu0 %1774
        %vm1778 = vcmask 154648
        %1779 = vst.msk [vmem:[#allocation2 + $0x3] sm:$0xff] %vm1778, %v1773
        %1780 = vst.msk [vmem:[#allocation2 + $0xb] sm:$0xff] %vm1778, %v1775
        %1783 = vrot.lane.b32.xlu0 %v1698, 3
        %v1784 = vpop.permute.xlu0 %1783
        %1785 = vrot.lane.b32.xlu0 %v1761, 3
        %v1786 = vpop.permute.xlu0 %1785
        %s1789 = scalar_lea.vmem [#allocation2], 24
        %1790 = vst.msk [vmem:[%s1789 + $0x3] sm:$0xff] %vm1778, %v1784
        %1791 = vst.msk [vmem:[%s1789 + $0xb] sm:$0xff] %vm1778, %v1786
        %1792 = vst.msk [vmem:[#allocation3] sm:$0xff] %vm276, 0.0
        %1793 = vst.msk [vmem:[#allocation3 + $0x8] sm:$0xff] %vm276, 0.0
        %v1794 = vld [vmem:[#allocation2] sm:$0xff]
        %v1795 = vld [vmem:[#allocation2 + $0x8] sm:$0xff]
        %s1796 = sld [smem:[#allocation4]]
        %v1797 = vstv %s1796
        %v1798 = vmul.f32 %v1797, %v1794
        %v1799 = vmul.f32 %v1797, %v1795
        %v1800 = vadd.f32 %v1798, 0.0
        %v1801 = vadd.f32 %v1799, 0.0
        %s1802 = sld [smem:[#allocation4 + $0x1]]
        %v1803 = vstv %s1802
        %v1804 = vmul.f32 %v1803, %v1794
        %v1805 = vmul.f32 %v1803, %v1795
        %1808 = vrot.lane.b32.xlu0 %v1804, 127
        %v1809 = vpop.permute.xlu0 %1808
        %1810 = vrot.lane.b32.xlu0 %v1805, 127
        %v1811 = vpop.permute.xlu0 %1810
        %v1814 = vadd.f32 %v1800, %v1809
        %v1815 = vadd.f32 %v1801, %v1811
        %s1816 = sld [smem:[#allocation4 + $0x2]]
        %v1817 = vstv %s1816
        %v1818 = vmul.f32 %v1817, %v1794
        %v1819 = vmul.f32 %v1817, %v1795
        %1822 = vrot.lane.b32.xlu0 %v1818, 126
        %v1823 = vpop.permute.xlu0 %1822
        %1824 = vrot.lane.b32.xlu0 %v1819, 126
        %v1825 = vpop.permute.xlu0 %1824
        %v1828 = vadd.f32 %v1814, %v1823
        %v1829 = vadd.f32 %v1815, %v1825
        %s1830 = sld [smem:[#allocation4 + $0x3]]
        %v1831 = vstv %s1830
        %v1832 = vmul.f32 %v1831, %v1794
        %v1833 = vmul.f32 %v1831, %v1795
        %1836 = vrot.lane.b32.xlu0 %v1832, 125
        %v1837 = vpop.permute.xlu0 %1836
        %1838 = vrot.lane.b32.xlu0 %v1833, 125
        %v1839 = vpop.permute.xlu0 %1838
        %v1842 = vadd.f32 %v1828, %v1837
        %v1843 = vadd.f32 %v1829, %v1839
        %s1844 = sld [smem:[#allocation4 + $0x4]]
        %v1845 = vstv %s1844
        %v1846 = vmul.f32 %v1845, %v1794
        %v1847 = vmul.f32 %v1845, %v1795
        %1850 = vrot.lane.b32.xlu0 %v1846, 124
        %v1851 = vpop.permute.xlu0 %1850
        %1852 = vrot.lane.b32.xlu0 %v1847, 124
        %v1853 = vpop.permute.xlu0 %1852
        %v1856 = vadd.f32 %v1842, %v1851
        %v1857 = vadd.f32 %v1843, %v1853
        %s1858 = sld [smem:[#allocation4 + $0x5]]
        %v1859 = vstv %s1858
        %v1860 = vmul.f32 %v1859, %v1794
        %v1861 = vmul.f32 %v1859, %v1795
        %1864 = vrot.lane.b32.xlu0 %v1860, 123
        %v1865 = vpop.permute.xlu0 %1864
        %1866 = vrot.lane.b32.xlu0 %v1861, 123
        %v1867 = vpop.permute.xlu0 %1866
        %v1870 = vadd.f32 %v1856, %v1865
        %v1871 = vadd.f32 %v1857, %v1867
        %s1872 = sld [smem:[#allocation4 + $0x6]]
        %v1873 = vstv %s1872
        %v1874 = vmul.f32 %v1873, %v1794
        %v1875 = vmul.f32 %v1873, %v1795
        %1878 = vrot.lane.b32.xlu0 %v1874, 122
        %v1879 = vpop.permute.xlu0 %1878
        %1880 = vrot.lane.b32.xlu0 %v1875, 122
        %v1881 = vpop.permute.xlu0 %1880
        %v1884 = vadd.f32 %v1870, %v1879
        %v1885 = vadd.f32 %v1871, %v1881
        %v1886 = vld [vmem:[#allocation3] sm:$0xff]
        %v1887 = vld [vmem:[#allocation3 + $0x8] sm:$0xff]
        %v1888 = vadd.f32 %v1886, %v1884
        %v1889 = vadd.f32 %v1887, %v1885
        %1890 = vst.msk [vmem:[#allocation3] sm:$0xff] %vm276, %v1888
        %1891 = vst.msk [vmem:[#allocation3 + $0x8] sm:$0xff] %vm276, %v1889
        %v1892 = vld [vmem:[#allocation2 + $0x1] sm:$0xff]
        %v1893 = vld [vmem:[#allocation2 + $0x9] sm:$0xff]
        %s1894 = sld [smem:[#allocation4 + $0x7]]
        %v1895 = vstv %s1894
        %v1896 = vmul.f32 %v1895, %v1892
        %v1897 = vmul.f32 %v1895, %v1893
        %v1898 = vadd.f32 %v1896, 0.0
        %v1899 = vadd.f32 %v1897, 0.0
        %s1900 = sld [smem:[#allocation4 + $0x8]]
        %v1901 = vstv %s1900
        %v1902 = vmul.f32 %v1901, %v1892
        %v1903 = vmul.f32 %v1901, %v1893
        %1906 = vrot.lane.b32.xlu0 %v1902, 127
        %v1907 = vpop.permute.xlu0 %1906
        %1908 = vrot.lane.b32.xlu0 %v1903, 127
        %v1909 = vpop.permute.xlu0 %1908
        %v1912 = vadd.f32 %v1898, %v1907
        %v1913 = vadd.f32 %v1899, %v1909
        %s1914 = sld [smem:[#allocation4 + $0x9]]
        %v1915 = vstv %s1914
        %v1916 = vmul.f32 %v1915, %v1892
        %v1917 = vmul.f32 %v1915, %v1893
        %1920 = vrot.lane.b32.xlu0 %v1916, 126
        %v1921 = vpop.permute.xlu0 %1920
        %1922 = vrot.lane.b32.xlu0 %v1917, 126
        %v1923 = vpop.permute.xlu0 %1922
        %v1926 = vadd.f32 %v1912, %v1921
        %v1927 = vadd.f32 %v1913, %v1923
        %s1928 = sld [smem:[#allocation4 + $0xa]]
        %v1929 = vstv %s1928
        %v1930 = vmul.f32 %v1929, %v1892
        %v1931 = vmul.f32 %v1929, %v1893
        %1934 = vrot.lane.b32.xlu0 %v1930, 125
        %v1935 = vpop.permute.xlu0 %1934
        %1936 = vrot.lane.b32.xlu0 %v1931, 125
        %v1937 = vpop.permute.xlu0 %1936
        %v1940 = vadd.f32 %v1926, %v1935
        %v1941 = vadd.f32 %v1927, %v1937
        %s1942 = sld [smem:[#allocation4 + $0xb]]
        %v1943 = vstv %s1942
        %v1944 = vmul.f32 %v1943, %v1892
        %v1945 = vmul.f32 %v1943, %v1893
        %1948 = vrot.lane.b32.xlu0 %v1944, 124
        %v1949 = vpop.permute.xlu0 %1948
        %1950 = vrot.lane.b32.xlu0 %v1945, 124
        %v1951 = vpop.permute.xlu0 %1950
        %v1954 = vadd.f32 %v1940, %v1949
        %v1955 = vadd.f32 %v1941, %v1951
        %s1956 = sld [smem:[#allocation4 + $0xc]]
        %v1957 = vstv %s1956
        %v1958 = vmul.f32 %v1957, %v1892
        %v1959 = vmul.f32 %v1957, %v1893
        %1962 = vrot.lane.b32.xlu0 %v1958, 123
        %v1963 = vpop.permute.xlu0 %1962
        %1964 = vrot.lane.b32.xlu0 %v1959, 123
        %v1965 = vpop.permute.xlu0 %1964
        %v1968 = vadd.f32 %v1954, %v1963
        %v1969 = vadd.f32 %v1955, %v1965
        %s1970 = sld [smem:[#allocation4 + $0xd]]
        %v1971 = vstv %s1970
        %v1972 = vmul.f32 %v1971, %v1892
        %v1973 = vmul.f32 %v1971, %v1893
        %1976 = vrot.lane.b32.xlu0 %v1972, 122
        %v1977 = vpop.permute.xlu0 %1976
        %1978 = vrot.lane.b32.xlu0 %v1973, 122
        %v1979 = vpop.permute.xlu0 %1978
        %v1982 = vadd.f32 %v1968, %v1977
        %v1983 = vadd.f32 %v1969, %v1979
        %v1984 = vld [vmem:[#allocation3] sm:$0xff]
        %v1985 = vld [vmem:[#allocation3 + $0x8] sm:$0xff]
        %v1986 = vadd.f32 %v1984, %v1982
        %v1987 = vadd.f32 %v1985, %v1983
        %1988 = vst.msk [vmem:[#allocation3] sm:$0xff] %vm276, %v1986
        %1989 = vst.msk [vmem:[#allocation3 + $0x8] sm:$0xff] %vm276, %v1987
        %v1990 = vld [vmem:[#allocation2 + $0x2] sm:$0xff]
        %v1991 = vld [vmem:[#allocation2 + $0xa] sm:$0xff]
        %s1992 = sld [smem:[#allocation4 + $0xe]]
        %v1993 = vstv %s1992
        %v1994 = vmul.f32 %v1993, %v1990
        %v1995 = vmul.f32 %v1993, %v1991
        %v1996 = vadd.f32 %v1994, 0.0
        %v1997 = vadd.f32 %v1995, 0.0
        %s1998 = sld [smem:[#allocation4 + $0xf]]
        %v1999 = vstv %s1998
        %v2000 = vmul.f32 %v1999, %v1990
        %v2001 = vmul.f32 %v1999, %v1991
        %2004 = vrot.lane.b32.xlu0 %v2000, 127
        %v2005 = vpop.permute.xlu0 %2004
        %2006 = vrot.lane.b32.xlu0 %v2001, 127
        %v2007 = vpop.permute.xlu0 %2006
        %v2010 = vadd.f32 %v1996, %v2005
        %v2011 = vadd.f32 %v1997, %v2007
        %s2012 = sld [smem:[#allocation4 + $0x10]]
        %v2013 = vstv %s2012
        %v2014 = vmul.f32 %v2013, %v1990
        %v2015 = vmul.f32 %v2013, %v1991
        %2018 = vrot.lane.b32.xlu0 %v2014, 126
        %v2019 = vpop.permute.xlu0 %2018
        %2020 = vrot.lane.b32.xlu0 %v2015, 126
        %v2021 = vpop.permute.xlu0 %2020
        %v2024 = vadd.f32 %v2010, %v2019
        %v2025 = vadd.f32 %v2011, %v2021
        %s2026 = sld [smem:[#allocation4 + $0x11]]
        %v2027 = vstv %s2026
        %v2028 = vmul.f32 %v2027, %v1990
        %v2029 = vmul.f32 %v2027, %v1991
        %2032 = vrot.lane.b32.xlu0 %v2028, 125
        %v2033 = vpop.permute.xlu0 %2032
        %2034 = vrot.lane.b32.xlu0 %v2029, 125
        %v2035 = vpop.permute.xlu0 %2034
        %v2038 = vadd.f32 %v2024, %v2033
        %v2039 = vadd.f32 %v2025, %v2035
        %s2040 = sld [smem:[#allocation4 + $0x12]]
        %v2041 = vstv %s2040
        %v2042 = vmul.f32 %v2041, %v1990
        %v2043 = vmul.f32 %v2041, %v1991
        %2046 = vrot.lane.b32.xlu0 %v2042, 124
        %v2047 = vpop.permute.xlu0 %2046
        %2048 = vrot.lane.b32.xlu0 %v2043, 124
        %v2049 = vpop.permute.xlu0 %2048
        %v2052 = vadd.f32 %v2038, %v2047
        %v2053 = vadd.f32 %v2039, %v2049
        %s2054 = sld [smem:[#allocation4 + $0x13]]
        %v2055 = vstv %s2054
        %v2056 = vmul.f32 %v2055, %v1990
        %v2057 = vmul.f32 %v2055, %v1991
        %2060 = vrot.lane.b32.xlu0 %v2056, 123
        %v2061 = vpop.permute.xlu0 %2060
        %2062 = vrot.lane.b32.xlu0 %v2057, 123
        %v2063 = vpop.permute.xlu0 %2062
        %v2066 = vadd.f32 %v2052, %v2061
        %v2067 = vadd.f32 %v2053, %v2063
        %s2068 = sld [smem:[#allocation4 + $0x14]]
        %v2069 = vstv %s2068
        %v2070 = vmul.f32 %v2069, %v1990
        %v2071 = vmul.f32 %v2069, %v1991
        %2074 = vrot.lane.b32.xlu0 %v2070, 122
        %v2075 = vpop.permute.xlu0 %2074
        %2076 = vrot.lane.b32.xlu0 %v2071, 122
        %v2077 = vpop.permute.xlu0 %2076
        %v2080 = vadd.f32 %v2066, %v2075
        %v2081 = vadd.f32 %v2067, %v2077
        %v2082 = vld [vmem:[#allocation3] sm:$0xff]
        %v2083 = vld [vmem:[#allocation3 + $0x8] sm:$0xff]
        %v2084 = vadd.f32 %v2082, %v2080
        %v2085 = vadd.f32 %v2083, %v2081
        %2086 = vst.msk [vmem:[#allocation3] sm:$0xff] %vm276, %v2084
        %2087 = vst.msk [vmem:[#allocation3 + $0x8] sm:$0xff] %vm276, %v2085
        %v2088 = vld [vmem:[#allocation2 + $0x3] sm:$0xff]
        %v2089 = vld [vmem:[#allocation2 + $0xb] sm:$0xff]
        %s2090 = sld [smem:[#allocation4 + $0x15]]
        %v2091 = vstv %s2090
        %v2092 = vmul.f32 %v2091, %v2088
        %v2093 = vmul.f32 %v2091, %v2089
        %v2094 = vadd.f32 %v2092, 0.0
        %v2095 = vadd.f32 %v2093, 0.0
        %s2096 = sld [smem:[#allocation4 + $0x16]]
        %v2097 = vstv %s2096
        %v2098 = vmul.f32 %v2097, %v2088
        %v2099 = vmul.f32 %v2097, %v2089
        %2102 = vrot.lane.b32.xlu0 %v2098, 127
        %v2103 = vpop.permute.xlu0 %2102
        %2104 = vrot.lane.b32.xlu0 %v2099, 127
        %v2105 = vpop.permute.xlu0 %2104
        %v2108 = vadd.f32 %v2094, %v2103
        %v2109 = vadd.f32 %v2095, %v2105
        %s2110 = sld [smem:[#allocation4 + $0x17]]
        %v2111 = vstv %s2110
        %v2112 = vmul.f32 %v2111, %v2088
        %v2113 = vmul.f32 %v2111, %v2089
        %2116 = vrot.lane.b32.xlu0 %v2112, 126
        %v2117 = vpop.permute.xlu0 %2116
        %2118 = vrot.lane.b32.xlu0 %v2113, 126
        %v2119 = vpop.permute.xlu0 %2118
        %v2122 = vadd.f32 %v2108, %v2117
        %v2123 = vadd.f32 %v2109, %v2119
        %s2124 = sld [smem:[#allocation4 + $0x18]]
        %v2125 = vstv %s2124
        %v2126 = vmul.f32 %v2125, %v2088
        %v2127 = vmul.f32 %v2125, %v2089
        %2130 = vrot.lane.b32.xlu0 %v2126, 125
        %v2131 = vpop.permute.xlu0 %2130
        %2132 = vrot.lane.b32.xlu0 %v2127, 125
        %v2133 = vpop.permute.xlu0 %2132
        %v2136 = vadd.f32 %v2122, %v2131
        %v2137 = vadd.f32 %v2123, %v2133
        %s2138 = sld [smem:[#allocation4 + $0x19]]
        %v2139 = vstv %s2138
        %v2140 = vmul.f32 %v2139, %v2088
        %v2141 = vmul.f32 %v2139, %v2089
        %2144 = vrot.lane.b32.xlu0 %v2140, 124
        %v2145 = vpop.permute.xlu0 %2144
        %2146 = vrot.lane.b32.xlu0 %v2141, 124
        %v2147 = vpop.permute.xlu0 %2146
        %v2150 = vadd.f32 %v2136, %v2145
        %v2151 = vadd.f32 %v2137, %v2147
        %s2152 = sld [smem:[#allocation4 + $0x1a]]
        %v2153 = vstv %s2152
        %v2154 = vmul.f32 %v2153, %v2088
        %v2155 = vmul.f32 %v2153, %v2089
        %2158 = vrot.lane.b32.xlu0 %v2154, 123
        %v2159 = vpop.permute.xlu0 %2158
        %2160 = vrot.lane.b32.xlu0 %v2155, 123
        %v2161 = vpop.permute.xlu0 %2160
        %v2164 = vadd.f32 %v2150, %v2159
        %v2165 = vadd.f32 %v2151, %v2161
        %s2166 = sld [smem:[#allocation4 + $0x1b]]
        %v2167 = vstv %s2166
        %v2168 = vmul.f32 %v2167, %v2088
        %v2169 = vmul.f32 %v2167, %v2089
        %2172 = vrot.lane.b32.xlu0 %v2168, 122
        %v2173 = vpop.permute.xlu0 %2172
        %2174 = vrot.lane.b32.xlu0 %v2169, 122
        %v2175 = vpop.permute.xlu0 %2174
        %v2178 = vadd.f32 %v2164, %v2173
        %v2179 = vadd.f32 %v2165, %v2175
        %v2180 = vld [vmem:[#allocation3] sm:$0xff]
        %v2181 = vld [vmem:[#allocation3 + $0x8] sm:$0xff]
        %v2182 = vadd.f32 %v2180, %v2178
        %v2183 = vadd.f32 %v2181, %v2179
        %2184 = vst.msk [vmem:[#allocation3] sm:$0xff] %vm276, %v2182
        %2185 = vst.msk [vmem:[#allocation3 + $0x8] sm:$0xff] %vm276, %v2183
        %v2186 = vld [vmem:[#allocation2 + $0x4] sm:$0xff]
        %v2187 = vld [vmem:[#allocation2 + $0xc] sm:$0xff]
        %s2188 = sld [smem:[#allocation4 + $0x1c]]
        %v2189 = vstv %s2188
        %v2190 = vmul.f32 %v2189, %v2186
        %v2191 = vmul.f32 %v2189, %v2187
        %v2192 = vadd.f32 %v2190, 0.0
        %v2193 = vadd.f32 %v2191, 0.0
        %s2194 = sld [smem:[#allocation4 + $0x1d]]
        %v2195 = vstv %s2194
        %v2196 = vmul.f32 %v2195, %v2186
        %v2197 = vmul.f32 %v2195, %v2187
        %2200 = vrot.lane.b32.xlu0 %v2196, 127
        %v2201 = vpop.permute.xlu0 %2200
        %2202 = vrot.lane.b32.xlu0 %v2197, 127
        %v2203 = vpop.permute.xlu0 %2202
        %v2206 = vadd.f32 %v2192, %v2201
        %v2207 = vadd.f32 %v2193, %v2203
        %s2208 = sld [smem:[#allocation4 + $0x1e]]
        %v2209 = vstv %s2208
        %v2210 = vmul.f32 %v2209, %v2186
        %v2211 = vmul.f32 %v2209, %v2187
        %2214 = vrot.lane.b32.xlu0 %v2210, 126
        %v2215 = vpop.permute.xlu0 %2214
        %2216 = vrot.lane.b32.xlu0 %v2211, 126
        %v2217 = vpop.permute.xlu0 %2216
        %v2220 = vadd.f32 %v2206, %v2215
        %v2221 = vadd.f32 %v2207, %v2217
        %s2222 = sld [smem:[#allocation4 + $0x1f]]
        %v2223 = vstv %s2222
        %v2224 = vmul.f32 %v2223, %v2186
        %v2225 = vmul.f32 %v2223, %v2187
        %2228 = vrot.lane.b32.xlu0 %v2224, 125
        %v2229 = vpop.permute.xlu0 %2228
        %2230 = vrot.lane.b32.xlu0 %v2225, 125
        %v2231 = vpop.permute.xlu0 %2230
        %v2234 = vadd.f32 %v2220, %v2229
        %v2235 = vadd.f32 %v2221, %v2231
        %s2236 = sld [smem:[#allocation4 + $0x20]]
        %v2237 = vstv %s2236
        %v2238 = vmul.f32 %v2237, %v2186
        %v2239 = vmul.f32 %v2237, %v2187
        %2242 = vrot.lane.b32.xlu0 %v2238, 124
        %v2243 = vpop.permute.xlu0 %2242
        %2244 = vrot.lane.b32.xlu0 %v2239, 124
        %v2245 = vpop.permute.xlu0 %2244
        %v2248 = vadd.f32 %v2234, %v2243
        %v2249 = vadd.f32 %v2235, %v2245
        %s2250 = sld [smem:[#allocation4 + $0x21]]
        %v2251 = vstv %s2250
        %v2252 = vmul.f32 %v2251, %v2186
        %v2253 = vmul.f32 %v2251, %v2187
        %2256 = vrot.lane.b32.xlu0 %v2252, 123
        %v2257 = vpop.permute.xlu0 %2256
        %2258 = vrot.lane.b32.xlu0 %v2253, 123
        %v2259 = vpop.permute.xlu0 %2258
        %v2262 = vadd.f32 %v2248, %v2257
        %v2263 = vadd.f32 %v2249, %v2259
        %s2264 = sld [smem:[#allocation4 + $0x22]]
        %v2265 = vstv %s2264
        %v2266 = vmul.f32 %v2265, %v2186
        %v2267 = vmul.f32 %v2265, %v2187
        %2270 = vrot.lane.b32.xlu0 %v2266, 122
        %v2271 = vpop.permute.xlu0 %2270
        %2272 = vrot.lane.b32.xlu0 %v2267, 122
        %v2273 = vpop.permute.xlu0 %2272
        %v2276 = vadd.f32 %v2262, %v2271
        %v2277 = vadd.f32 %v2263, %v2273
        %v2278 = vld [vmem:[#allocation3] sm:$0xff]
        %v2279 = vld [vmem:[#allocation3 + $0x8] sm:$0xff]
        %v2280 = vadd.f32 %v2278, %v2276
        %v2281 = vadd.f32 %v2279, %v2277
        %2282 = vst.msk [vmem:[#allocation3] sm:$0xff] %vm276, %v2280
        %2283 = vst.msk [vmem:[#allocation3 + $0x8] sm:$0xff] %vm276, %v2281
        %v2284 = vld [vmem:[#allocation2 + $0x5] sm:$0xff]
        %v2285 = vld [vmem:[#allocation2 + $0xd] sm:$0xff]
        %s2286 = sld [smem:[#allocation4 + $0x23]]
        %v2287 = vstv %s2286
        %v2288 = vmul.f32 %v2287, %v2284
        %v2289 = vmul.f32 %v2287, %v2285
        %v2290 = vadd.f32 %v2288, 0.0
        %v2291 = vadd.f32 %v2289, 0.0
        %s2292 = sld [smem:[#allocation4 + $0x24]]
        %v2293 = vstv %s2292
        %v2294 = vmul.f32 %v2293, %v2284
        %v2295 = vmul.f32 %v2293, %v2285
        %2298 = vrot.lane.b32.xlu0 %v2294, 127
        %v2299 = vpop.permute.xlu0 %2298
        %2300 = vrot.lane.b32.xlu0 %v2295, 127
        %v2301 = vpop.permute.xlu0 %2300
        %v2304 = vadd.f32 %v2290, %v2299
        %v2305 = vadd.f32 %v2291, %v2301
        %s2306 = sld [smem:[#allocation4 + $0x25]]
        %v2307 = vstv %s2306
        %v2308 = vmul.f32 %v2307, %v2284
        %v2309 = vmul.f32 %v2307, %v2285
        %2312 = vrot.lane.b32.xlu0 %v2308, 126
        %v2313 = vpop.permute.xlu0 %2312
        %2314 = vrot.lane.b32.xlu0 %v2309, 126
        %v2315 = vpop.permute.xlu0 %2314
        %v2318 = vadd.f32 %v2304, %v2313
        %v2319 = vadd.f32 %v2305, %v2315
        %s2320 = sld [smem:[#allocation4 + $0x26]]
        %v2321 = vstv %s2320
        %v2322 = vmul.f32 %v2321, %v2284
        %v2323 = vmul.f32 %v2321, %v2285
        %2326 = vrot.lane.b32.xlu0 %v2322, 125
        %v2327 = vpop.permute.xlu0 %2326
        %2328 = vrot.lane.b32.xlu0 %v2323, 125
        %v2329 = vpop.permute.xlu0 %2328
        %v2332 = vadd.f32 %v2318, %v2327
        %v2333 = vadd.f32 %v2319, %v2329
        %s2334 = sld [smem:[#allocation4 + $0x27]]
        %v2335 = vstv %s2334
        %v2336 = vmul.f32 %v2335, %v2284
        %v2337 = vmul.f32 %v2335, %v2285
        %2340 = vrot.lane.b32.xlu0 %v2336, 124
        %v2341 = vpop.permute.xlu0 %2340
        %2342 = vrot.lane.b32.xlu0 %v2337, 124
        %v2343 = vpop.permute.xlu0 %2342
        %v2346 = vadd.f32 %v2332, %v2341
        %v2347 = vadd.f32 %v2333, %v2343
        %s2348 = sld [smem:[#allocation4 + $0x28]]
        %v2349 = vstv %s2348
        %v2350 = vmul.f32 %v2349, %v2284
        %v2351 = vmul.f32 %v2349, %v2285
        %2354 = vrot.lane.b32.xlu0 %v2350, 123
        %v2355 = vpop.permute.xlu0 %2354
        %2356 = vrot.lane.b32.xlu0 %v2351, 123
        %v2357 = vpop.permute.xlu0 %2356
        %v2360 = vadd.f32 %v2346, %v2355
        %v2361 = vadd.f32 %v2347, %v2357
        %s2362 = sld [smem:[#allocation4 + $0x29]]
        %v2363 = vstv %s2362
        %v2364 = vmul.f32 %v2363, %v2284
        %v2365 = vmul.f32 %v2363, %v2285
        %2368 = vrot.lane.b32.xlu0 %v2364, 122
        %v2369 = vpop.permute.xlu0 %2368
        %2370 = vrot.lane.b32.xlu0 %v2365, 122
        %v2371 = vpop.permute.xlu0 %2370
        %v2374 = vadd.f32 %v2360, %v2369
        %v2375 = vadd.f32 %v2361, %v2371
        %v2376 = vld [vmem:[#allocation3] sm:$0xff]
        %v2377 = vld [vmem:[#allocation3 + $0x8] sm:$0xff]
        %v2378 = vadd.f32 %v2376, %v2374
        %v2379 = vadd.f32 %v2377, %v2375
        %2380 = vst.msk [vmem:[#allocation3] sm:$0xff] %vm276, %v2378
        %2381 = vst.msk [vmem:[#allocation3 + $0x8] sm:$0xff] %vm276, %v2379
        %v2382 = vld [vmem:[#allocation2 + $0x6] sm:$0xff]
        %v2383 = vld [vmem:[#allocation2 + $0xe] sm:$0xff]
        %s2384 = sld [smem:[#allocation4 + $0x2a]]
        %v2385 = vstv %s2384
        %v2386 = vmul.f32 %v2385, %v2382
        %v2387 = vmul.f32 %v2385, %v2383
        %v2388 = vadd.f32 %v2386, 0.0
        %v2389 = vadd.f32 %v2387, 0.0
        %s2390 = sld [smem:[#allocation4 + $0x2b]]
        %v2391 = vstv %s2390
        %v2392 = vmul.f32 %v2391, %v2382
        %v2393 = vmul.f32 %v2391, %v2383
        %2396 = vrot.lane.b32.xlu0 %v2392, 127
        %v2397 = vpop.permute.xlu0 %2396
        %2398 = vrot.lane.b32.xlu0 %v2393, 127
        %v2399 = vpop.permute.xlu0 %2398
        %v2402 = vadd.f32 %v2388, %v2397
        %v2403 = vadd.f32 %v2389, %v2399
        %s2404 = sld [smem:[#allocation4 + $0x2c]]
        %v2405 = vstv %s2404
        %v2406 = vmul.f32 %v2405, %v2382
        %v2407 = vmul.f32 %v2405, %v2383
        %2410 = vrot.lane.b32.xlu0 %v2406, 126
        %v2411 = vpop.permute.xlu0 %2410
        %2412 = vrot.lane.b32.xlu0 %v2407, 126
        %v2413 = vpop.permute.xlu0 %2412
        %v2416 = vadd.f32 %v2402, %v2411
        %v2417 = vadd.f32 %v2403, %v2413
        %s2418 = sld [smem:[#allocation4 + $0x2d]]
        %v2419 = vstv %s2418
        %v2420 = vmul.f32 %v2419, %v2382
        %v2421 = vmul.f32 %v2419, %v2383
        %2424 = vrot.lane.b32.xlu0 %v2420, 125
        %v2425 = vpop.permute.xlu0 %2424
        %2426 = vrot.lane.b32.xlu0 %v2421, 125
        %v2427 = vpop.permute.xlu0 %2426
        %v2430 = vadd.f32 %v2416, %v2425
        %v2431 = vadd.f32 %v2417, %v2427
        %s2432 = sld [smem:[#allocation4 + $0x2e]]
        %v2433 = vstv %s2432
        %v2434 = vmul.f32 %v2433, %v2382
        %v2435 = vmul.f32 %v2433, %v2383
        %2438 = vrot.lane.b32.xlu0 %v2434, 124
        %v2439 = vpop.permute.xlu0 %2438
        %2440 = vrot.lane.b32.xlu0 %v2435, 124
        %v2441 = vpop.permute.xlu0 %2440
        %v2444 = vadd.f32 %v2430, %v2439
        %v2445 = vadd.f32 %v2431, %v2441
        %s2446 = sld [smem:[#allocation4 + $0x2f]]
        %v2447 = vstv %s2446
        %v2448 = vmul.f32 %v2447, %v2382
        %v2449 = vmul.f32 %v2447, %v2383
        %2452 = vrot.lane.b32.xlu0 %v2448, 123
        %v2453 = vpop.permute.xlu0 %2452
        %2454 = vrot.lane.b32.xlu0 %v2449, 123
        %v2455 = vpop.permute.xlu0 %2454
        %v2458 = vadd.f32 %v2444, %v2453
        %v2459 = vadd.f32 %v2445, %v2455
        %s2460 = sld [smem:[#allocation4 + $0x30]]
        %v2461 = vstv %s2460
        %v2462 = vmul.f32 %v2461, %v2382
        %v2463 = vmul.f32 %v2461, %v2383
        %2466 = vrot.lane.b32.xlu0 %v2462, 122
        %v2467 = vpop.permute.xlu0 %2466
        %2468 = vrot.lane.b32.xlu0 %v2463, 122
        %v2469 = vpop.permute.xlu0 %2468
        %v2472 = vadd.f32 %v2458, %v2467
        %v2473 = vadd.f32 %v2459, %v2469
        %v2474 = vld [vmem:[#allocation3] sm:$0xff]
        %v2475 = vld [vmem:[#allocation3 + $0x8] sm:$0xff]
        %v2476 = vadd.f32 %v2474, %v2472
        %v2477 = vadd.f32 %v2475, %v2473
        %2478 = vst.msk [vmem:[#allocation3] sm:$0xff] %vm276, %v2476
        %2479 = vst.msk [vmem:[#allocation3 + $0x8] sm:$0xff] %vm276, %v2477
        %v2480 = vld [vmem:[%s1789] sm:$0xff]
        %v2481 = vld [vmem:[%s1789 + $0x8] sm:$0xff]
        %s2482 = sld [smem:[#allocation4 + $0x31]]
        %v2483 = vstv %s2482
        %v2484 = vmul.f32 %v2483, %v2480
        %v2485 = vmul.f32 %v2483, %v2481
        %v2486 = vadd.f32 %v2484, 0.0
        %v2487 = vadd.f32 %v2485, 0.0
        %s2488 = sld [smem:[#allocation4 + $0x32]]
        %v2489 = vstv %s2488
        %v2490 = vmul.f32 %v2489, %v2480
        %v2491 = vmul.f32 %v2489, %v2481
        %2494 = vrot.lane.b32.xlu0 %v2490, 127
        %v2495 = vpop.permute.xlu0 %2494
        %2496 = vrot.lane.b32.xlu0 %v2491, 127
        %v2497 = vpop.permute.xlu0 %2496
        %v2500 = vadd.f32 %v2486, %v2495
        %v2501 = vadd.f32 %v2487, %v2497
        %s2502 = sld [smem:[#allocation4 + $0x33]]
        %v2503 = vstv %s2502
        %v2504 = vmul.f32 %v2503, %v2480
        %v2505 = vmul.f32 %v2503, %v2481
        %2508 = vrot.lane.b32.xlu0 %v2504, 126
        %v2509 = vpop.permute.xlu0 %2508
        %2510 = vrot.lane.b32.xlu0 %v2505, 126
        %v2511 = vpop.permute.xlu0 %2510
        %v2514 = vadd.f32 %v2500, %v2509
        %v2515 = vadd.f32 %v2501, %v2511
        %s2516 = sld [smem:[#allocation4 + $0x34]]
        %v2517 = vstv %s2516
        %v2518 = vmul.f32 %v2517, %v2480
        %v2519 = vmul.f32 %v2517, %v2481
        %2522 = vrot.lane.b32.xlu0 %v2518, 125
        %v2523 = vpop.permute.xlu0 %2522
        %2524 = vrot.lane.b32.xlu0 %v2519, 125
        %v2525 = vpop.permute.xlu0 %2524
        %v2528 = vadd.f32 %v2514, %v2523
        %v2529 = vadd.f32 %v2515, %v2525
        %s2530 = sld [smem:[#allocation4 + $0x35]]
        %v2531 = vstv %s2530
        %v2532 = vmul.f32 %v2531, %v2480
        %v2533 = vmul.f32 %v2531, %v2481
        %2536 = vrot.lane.b32.xlu0 %v2532, 124
        %v2537 = vpop.permute.xlu0 %2536
        %2538 = vrot.lane.b32.xlu0 %v2533, 124
        %v2539 = vpop.permute.xlu0 %2538
        %v2542 = vadd.f32 %v2528, %v2537
        %v2543 = vadd.f32 %v2529, %v2539
        %s2544 = sld [smem:[#allocation4 + $0x36]]
        %v2545 = vstv %s2544
        %v2546 = vmul.f32 %v2545, %v2480
        %v2547 = vmul.f32 %v2545, %v2481
        %2550 = vrot.lane.b32.xlu0 %v2546, 123
        %v2551 = vpop.permute.xlu0 %2550
        %2552 = vrot.lane.b32.xlu0 %v2547, 123
        %v2553 = vpop.permute.xlu0 %2552
        %v2556 = vadd.f32 %v2542, %v2551
        %v2557 = vadd.f32 %v2543, %v2553
        %s2558 = sld [smem:[#allocation4 + $0x37]]
        %v2559 = vstv %s2558
        %v2560 = vmul.f32 %v2559, %v2480
        %v2561 = vmul.f32 %v2559, %v2481
        %2564 = vrot.lane.b32.xlu0 %v2560, 122
        %v2565 = vpop.permute.xlu0 %2564
        %2566 = vrot.lane.b32.xlu0 %v2561, 122
        %v2567 = vpop.permute.xlu0 %2566
        %v2570 = vadd.f32 %v2556, %v2565
        %v2571 = vadd.f32 %v2557, %v2567
        %v2572 = vld [vmem:[#allocation3] sm:$0xff]
        %v2573 = vld [vmem:[#allocation3 + $0x8] sm:$0xff]
        %v2574 = vadd.f32 %v2572, %v2570
        %v2575 = vadd.f32 %v2573, %v2571
        %2576 = vst.msk [vmem:[#allocation3] sm:$0xff] %vm276, %v2574
        %2577 = vst.msk [vmem:[#allocation3 + $0x8] sm:$0xff] %vm276, %v2575
        %v2578 = vld [vmem:[%s1789 + $0x1] sm:$0xff]
        %v2579 = vld [vmem:[%s1789 + $0x9] sm:$0xff]
        %s2580 = sld [smem:[#allocation4 + $0x38]]
        %v2581 = vstv %s2580
        %v2582 = vmul.f32 %v2581, %v2578
        %v2583 = vmul.f32 %v2581, %v2579
        %v2584 = vadd.f32 %v2582, 0.0
        %v2585 = vadd.f32 %v2583, 0.0
        %s2586 = sld [smem:[#allocation4 + $0x39]]
        %v2587 = vstv %s2586
        %v2588 = vmul.f32 %v2587, %v2578
        %v2589 = vmul.f32 %v2587, %v2579
        %2592 = vrot.lane.b32.xlu0 %v2588, 127
        %v2593 = vpop.permute.xlu0 %2592
        %2594 = vrot.lane.b32.xlu0 %v2589, 127
        %v2595 = vpop.permute.xlu0 %2594
        %v2598 = vadd.f32 %v2584, %v2593
        %v2599 = vadd.f32 %v2585, %v2595
        %s2600 = sld [smem:[#allocation4 + $0x3a]]
        %v2601 = vstv %s2600
        %v2602 = vmul.f32 %v2601, %v2578
        %v2603 = vmul.f32 %v2601, %v2579
        %2606 = vrot.lane.b32.xlu0 %v2602, 126
        %v2607 = vpop.permute.xlu0 %2606
        %2608 = vrot.lane.b32.xlu0 %v2603, 126
        %v2609 = vpop.permute.xlu0 %2608
        %v2612 = vadd.f32 %v2598, %v2607
        %v2613 = vadd.f32 %v2599, %v2609
        %s2614 = sld [smem:[#allocation4 + $0x3b]]
        %v2615 = vstv %s2614
        %v2616 = vmul.f32 %v2615, %v2578
        %v2617 = vmul.f32 %v2615, %v2579
        %2620 = vrot.lane.b32.xlu0 %v2616, 125
        %v2621 = vpop.permute.xlu0 %2620
        %2622 = vrot.lane.b32.xlu0 %v2617, 125
        %v2623 = vpop.permute.xlu0 %2622
        %v2626 = vadd.f32 %v2612, %v2621
        %v2627 = vadd.f32 %v2613, %v2623
        %s2628 = sld [smem:[#allocation4 + $0x3c]]
        %v2629 = vstv %s2628
        %v2630 = vmul.f32 %v2629, %v2578
        %v2631 = vmul.f32 %v2629, %v2579
        %2634 = vrot.lane.b32.xlu0 %v2630, 124
        %v2635 = vpop.permute.xlu0 %2634
        %2636 = vrot.lane.b32.xlu0 %v2631, 124
        %v2637 = vpop.permute.xlu0 %2636
        %v2640 = vadd.f32 %v2626, %v2635
        %v2641 = vadd.f32 %v2627, %v2637
        %s2642 = sld [smem:[#allocation4 + $0x3d]]
        %v2643 = vstv %s2642
        %v2644 = vmul.f32 %v2643, %v2578
        %v2645 = vmul.f32 %v2643, %v2579
        %2648 = vrot.lane.b32.xlu0 %v2644, 123
        %v2649 = vpop.permute.xlu0 %2648
        %2650 = vrot.lane.b32.xlu0 %v2645, 123
        %v2651 = vpop.permute.xlu0 %2650
        %v2654 = vadd.f32 %v2640, %v2649
        %v2655 = vadd.f32 %v2641, %v2651
        %s2656 = sld [smem:[#allocation4 + $0x3e]]
        %v2657 = vstv %s2656
        %v2658 = vmul.f32 %v2657, %v2578
        %v2659 = vmul.f32 %v2657, %v2579
        %2662 = vrot.lane.b32.xlu0 %v2658, 122
        %v2663 = vpop.permute.xlu0 %2662
        %2664 = vrot.lane.b32.xlu0 %v2659, 122
        %v2665 = vpop.permute.xlu0 %2664
        %v2668 = vadd.f32 %v2654, %v2663
        %v2669 = vadd.f32 %v2655, %v2665
        %v2670 = vld [vmem:[#allocation3] sm:$0xff]
        %v2671 = vld [vmem:[#allocation3 + $0x8] sm:$0xff]
        %v2672 = vadd.f32 %v2670, %v2668
        %v2673 = vadd.f32 %v2671, %v2669
        %2674 = vst.msk [vmem:[#allocation3] sm:$0xff] %vm276, %v2672
        %2675 = vst.msk [vmem:[#allocation3 + $0x8] sm:$0xff] %vm276, %v2673
        %v2676 = vld [vmem:[%s1789 + $0x2] sm:$0xff]
        %v2677 = vld [vmem:[%s1789 + $0xa] sm:$0xff]
        %s2678 = sld [smem:[#allocation4 + $0x3f]]
        %v2679 = vstv %s2678
        %v2680 = vmul.f32 %v2679, %v2676
        %v2681 = vmul.f32 %v2679, %v2677
        %v2682 = vadd.f32 %v2680, 0.0
        %v2683 = vadd.f32 %v2681, 0.0
        %s2684 = sld [smem:[#allocation4 + $0x40]]
        %v2685 = vstv %s2684
        %v2686 = vmul.f32 %v2685, %v2676
        %v2687 = vmul.f32 %v2685, %v2677
        %2690 = vrot.lane.b32.xlu0 %v2686, 127
        %v2691 = vpop.permute.xlu0 %2690
        %2692 = vrot.lane.b32.xlu0 %v2687, 127
        %v2693 = vpop.permute.xlu0 %2692
        %v2696 = vadd.f32 %v2682, %v2691
        %v2697 = vadd.f32 %v2683, %v2693
        %s2698 = sld [smem:[#allocation4 + $0x41]]
        %v2699 = vstv %s2698
        %v2700 = vmul.f32 %v2699, %v2676
        %v2701 = vmul.f32 %v2699, %v2677
        %2704 = vrot.lane.b32.xlu0 %v2700, 126
        %v2705 = vpop.permute.xlu0 %2704
        %2706 = vrot.lane.b32.xlu0 %v2701, 126
        %v2707 = vpop.permute.xlu0 %2706
        %v2710 = vadd.f32 %v2696, %v2705
        %v2711 = vadd.f32 %v2697, %v2707
        %s2712 = sld [smem:[#allocation4 + $0x42]]
        %v2713 = vstv %s2712
        %v2714 = vmul.f32 %v2713, %v2676
        %v2715 = vmul.f32 %v2713, %v2677
        %2718 = vrot.lane.b32.xlu0 %v2714, 125
        %v2719 = vpop.permute.xlu0 %2718
        %2720 = vrot.lane.b32.xlu0 %v2715, 125
        %v2721 = vpop.permute.xlu0 %2720
        %v2724 = vadd.f32 %v2710, %v2719
        %v2725 = vadd.f32 %v2711, %v2721
        %s2726 = sld [smem:[#allocation4 + $0x43]]
        %v2727 = vstv %s2726
        %v2728 = vmul.f32 %v2727, %v2676
        %v2729 = vmul.f32 %v2727, %v2677
        %2732 = vrot.lane.b32.xlu0 %v2728, 124
        %v2733 = vpop.permute.xlu0 %2732
        %2734 = vrot.lane.b32.xlu0 %v2729, 124
        %v2735 = vpop.permute.xlu0 %2734
        %v2738 = vadd.f32 %v2724, %v2733
        %v2739 = vadd.f32 %v2725, %v2735
        %s2740 = sld [smem:[#allocation4 + $0x44]]
        %v2741 = vstv %s2740
        %v2742 = vmul.f32 %v2741, %v2676
        %v2743 = vmul.f32 %v2741, %v2677
        %2746 = vrot.lane.b32.xlu0 %v2742, 123
        %v2747 = vpop.permute.xlu0 %2746
        %2748 = vrot.lane.b32.xlu0 %v2743, 123
        %v2749 = vpop.permute.xlu0 %2748
        %v2752 = vadd.f32 %v2738, %v2747
        %v2753 = vadd.f32 %v2739, %v2749
        %s2754 = sld [smem:[#allocation4 + $0x45]]
        %v2755 = vstv %s2754
        %v2756 = vmul.f32 %v2755, %v2676
        %v2757 = vmul.f32 %v2755, %v2677
        %2760 = vrot.lane.b32.xlu0 %v2756, 122
        %v2761 = vpop.permute.xlu0 %2760
        %2762 = vrot.lane.b32.xlu0 %v2757, 122
        %v2763 = vpop.permute.xlu0 %2762
        %v2766 = vadd.f32 %v2752, %v2761
        %v2767 = vadd.f32 %v2753, %v2763
        %v2768 = vld [vmem:[#allocation3] sm:$0xff]
        %v2769 = vld [vmem:[#allocation3 + $0x8] sm:$0xff]
        %v2770 = vadd.f32 %v2768, %v2766
        %v2771 = vadd.f32 %v2769, %v2767
        %2772 = vst.msk [vmem:[#allocation3] sm:$0xff] %vm276, %v2770
        %2773 = vst.msk [vmem:[#allocation3 + $0x8] sm:$0xff] %vm276, %v2771
        %v2774 = vld [vmem:[%s1789 + $0x3] sm:$0xff]
        %v2775 = vld [vmem:[%s1789 + $0xb] sm:$0xff]
        %s2776 = sld [smem:[#allocation4 + $0x46]]
        %v2777 = vstv %s2776
        %v2778 = vmul.f32 %v2777, %v2774
        %v2779 = vmul.f32 %v2777, %v2775
        %v2780 = vadd.f32 %v2778, 0.0
        %v2781 = vadd.f32 %v2779, 0.0
        %s2782 = sld [smem:[#allocation4 + $0x47]]
        %v2783 = vstv %s2782
        %v2784 = vmul.f32 %v2783, %v2774
        %v2785 = vmul.f32 %v2783, %v2775
        %2788 = vrot.lane.b32.xlu0 %v2784, 127
        %v2789 = vpop.permute.xlu0 %2788
        %2790 = vrot.lane.b32.xlu0 %v2785, 127
        %v2791 = vpop.permute.xlu0 %2790
        %v2794 = vadd.f32 %v2780, %v2789
        %v2795 = vadd.f32 %v2781, %v2791
        %s2796 = sld [smem:[#allocation4 + $0x48]]
        %v2797 = vstv %s2796
        %v2798 = vmul.f32 %v2797, %v2774
        %v2799 = vmul.f32 %v2797, %v2775
        %2802 = vrot.lane.b32.xlu0 %v2798, 126
        %v2803 = vpop.permute.xlu0 %2802
        %2804 = vrot.lane.b32.xlu0 %v2799, 126
        %v2805 = vpop.permute.xlu0 %2804
        %v2808 = vadd.f32 %v2794, %v2803
        %v2809 = vadd.f32 %v2795, %v2805
        %s2810 = sld [smem:[#allocation4 + $0x49]]
        %v2811 = vstv %s2810
        %v2812 = vmul.f32 %v2811, %v2774
        %v2813 = vmul.f32 %v2811, %v2775
        %2816 = vrot.lane.b32.xlu0 %v2812, 125
        %v2817 = vpop.permute.xlu0 %2816
        %2818 = vrot.lane.b32.xlu0 %v2813, 125
        %v2819 = vpop.permute.xlu0 %2818
        %v2822 = vadd.f32 %v2808, %v2817
        %v2823 = vadd.f32 %v2809, %v2819
        %s2824 = sld [smem:[#allocation4 + $0x4a]]
        %v2825 = vstv %s2824
        %v2826 = vmul.f32 %v2825, %v2774
        %v2827 = vmul.f32 %v2825, %v2775
        %2830 = vrot.lane.b32.xlu0 %v2826, 124
        %v2831 = vpop.permute.xlu0 %2830
        %2832 = vrot.lane.b32.xlu0 %v2827, 124
        %v2833 = vpop.permute.xlu0 %2832
        %v2836 = vadd.f32 %v2822, %v2831
        %v2837 = vadd.f32 %v2823, %v2833
        %s2838 = sld [smem:[#allocation4 + $0x4b]]
        %v2839 = vstv %s2838
        %v2840 = vmul.f32 %v2839, %v2774
        %v2841 = vmul.f32 %v2839, %v2775
        %2844 = vrot.lane.b32.xlu0 %v2840, 123
        %v2845 = vpop.permute.xlu0 %2844
        %2846 = vrot.lane.b32.xlu0 %v2841, 123
        %v2847 = vpop.permute.xlu0 %2846
        %v2850 = vadd.f32 %v2836, %v2845
        %v2851 = vadd.f32 %v2837, %v2847
        %s2852 = sld [smem:[#allocation4 + $0x4c]]
        %v2853 = vstv %s2852
        %v2854 = vmul.f32 %v2853, %v2774
        %v2855 = vmul.f32 %v2853, %v2775
        %2858 = vrot.lane.b32.xlu0 %v2854, 122
        %v2859 = vpop.permute.xlu0 %2858
        %2860 = vrot.lane.b32.xlu0 %v2855, 122
        %v2861 = vpop.permute.xlu0 %2860
        %v2864 = vadd.f32 %v2850, %v2859
        %v2865 = vadd.f32 %v2851, %v2861
        %v2866 = vld [vmem:[#allocation3] sm:$0xff]
        %v2867 = vld [vmem:[#allocation3 + $0x8] sm:$0xff]
        %v2868 = vadd.f32 %v2866, %v2864
        %v2869 = vadd.f32 %v2867, %v2865
        %2870 = vst.msk [vmem:[#allocation3] sm:$0xff] %vm276, %v2868
        %2871 = vst.msk [vmem:[#allocation3 + $0x8] sm:$0xff] %vm276, %v2869
        %v2872 = vld [vmem:[%s1789 + $0x4] sm:$0xff]
        %v2873 = vld [vmem:[%s1789 + $0xc] sm:$0xff]
        %s2874 = sld [smem:[#allocation4 + $0x4d]]
        %v2875 = vstv %s2874
        %v2876 = vmul.f32 %v2875, %v2872
        %v2877 = vmul.f32 %v2875, %v2873
        %v2878 = vadd.f32 %v2876, 0.0
        %v2879 = vadd.f32 %v2877, 0.0
        %s2880 = sld [smem:[#allocation4 + $0x4e]]
        %v2881 = vstv %s2880
        %v2882 = vmul.f32 %v2881, %v2872
        %v2883 = vmul.f32 %v2881, %v2873
        %2886 = vrot.lane.b32.xlu0 %v2882, 127
        %v2887 = vpop.permute.xlu0 %2886
        %2888 = vrot.lane.b32.xlu0 %v2883, 127
        %v2889 = vpop.permute.xlu0 %2888
        %v2892 = vadd.f32 %v2878, %v2887
        %v2893 = vadd.f32 %v2879, %v2889
        %s2894 = sld [smem:[#allocation4 + $0x4f]]
        %v2895 = vstv %s2894
        %v2896 = vmul.f32 %v2895, %v2872
        %v2897 = vmul.f32 %v2895, %v2873
        %2900 = vrot.lane.b32.xlu0 %v2896, 126
        %v2901 = vpop.permute.xlu0 %2900
        %2902 = vrot.lane.b32.xlu0 %v2897, 126
        %v2903 = vpop.permute.xlu0 %2902
        %v2906 = vadd.f32 %v2892, %v2901
        %v2907 = vadd.f32 %v2893, %v2903
        %s2908 = sld [smem:[#allocation4 + $0x50]]
        %v2909 = vstv %s2908
        %v2910 = vmul.f32 %v2909, %v2872
        %v2911 = vmul.f32 %v2909, %v2873
        %2914 = vrot.lane.b32.xlu0 %v2910, 125
        %v2915 = vpop.permute.xlu0 %2914
        %2916 = vrot.lane.b32.xlu0 %v2911, 125
        %v2917 = vpop.permute.xlu0 %2916
        %v2920 = vadd.f32 %v2906, %v2915
        %v2921 = vadd.f32 %v2907, %v2917
        %s2922 = sld [smem:[#allocation4 + $0x51]]
        %v2923 = vstv %s2922
        %v2924 = vmul.f32 %v2923, %v2872
        %v2925 = vmul.f32 %v2923, %v2873
        %2928 = vrot.lane.b32.xlu0 %v2924, 124
        %v2929 = vpop.permute.xlu0 %2928
        %2930 = vrot.lane.b32.xlu0 %v2925, 124
        %v2931 = vpop.permute.xlu0 %2930
        %v2934 = vadd.f32 %v2920, %v2929
        %v2935 = vadd.f32 %v2921, %v2931
        %s2936 = sld [smem:[#allocation4 + $0x52]]
        %v2937 = vstv %s2936
        %v2938 = vmul.f32 %v2937, %v2872
        %v2939 = vmul.f32 %v2937, %v2873
        %2942 = vrot.lane.b32.xlu0 %v2938, 123
        %v2943 = vpop.permute.xlu0 %2942
        %2944 = vrot.lane.b32.xlu0 %v2939, 123
        %v2945 = vpop.permute.xlu0 %2944
        %v2948 = vadd.f32 %v2934, %v2943
        %v2949 = vadd.f32 %v2935, %v2945
        %s2950 = sld [smem:[#allocation4 + $0x53]]
        %v2951 = vstv %s2950
        %v2952 = vmul.f32 %v2951, %v2872
        %v2953 = vmul.f32 %v2951, %v2873
        %2956 = vrot.lane.b32.xlu0 %v2952, 122
        %v2957 = vpop.permute.xlu0 %2956
        %2958 = vrot.lane.b32.xlu0 %v2953, 122
        %v2959 = vpop.permute.xlu0 %2958
        %v2962 = vadd.f32 %v2948, %v2957
        %v2963 = vadd.f32 %v2949, %v2959
        %v2964 = vld [vmem:[#allocation3] sm:$0xff]
        %v2965 = vld [vmem:[#allocation3 + $0x8] sm:$0xff]
        %v2966 = vadd.f32 %v2964, %v2962
        %v2967 = vadd.f32 %v2965, %v2963
        %2968 = vst.msk [vmem:[#allocation3] sm:$0xff] %vm276, %v2966
        %2969 = vst.msk [vmem:[#allocation3 + $0x8] sm:$0xff] %vm276, %v2967
        %v2970 = vld [vmem:[%s1789 + $0x5] sm:$0xff]
        %v2971 = vld [vmem:[%s1789 + $0xd] sm:$0xff]
        %s2972 = sld [smem:[#allocation4 + $0x54]]
        %v2973 = vstv %s2972
        %v2974 = vmul.f32 %v2973, %v2970
        %v2975 = vmul.f32 %v2973, %v2971
        %v2976 = vadd.f32 %v2974, 0.0
        %v2977 = vadd.f32 %v2975, 0.0
        %s2978 = sld [smem:[#allocation4 + $0x55]]
        %v2979 = vstv %s2978
        %v2980 = vmul.f32 %v2979, %v2970
        %v2981 = vmul.f32 %v2979, %v2971
        %2984 = vrot.lane.b32.xlu0 %v2980, 127
        %v2985 = vpop.permute.xlu0 %2984
        %2986 = vrot.lane.b32.xlu0 %v2981, 127
        %v2987 = vpop.permute.xlu0 %2986
        %v2990 = vadd.f32 %v2976, %v2985
        %v2991 = vadd.f32 %v2977, %v2987
        %s2992 = sld [smem:[#allocation4 + $0x56]]
        %v2993 = vstv %s2992
        %v2994 = vmul.f32 %v2993, %v2970
        %v2995 = vmul.f32 %v2993, %v2971
        %2998 = vrot.lane.b32.xlu0 %v2994, 126
        %v2999 = vpop.permute.xlu0 %2998
        %3000 = vrot.lane.b32.xlu0 %v2995, 126
        %v3001 = vpop.permute.xlu0 %3000
        %v3004 = vadd.f32 %v2990, %v2999
        %v3005 = vadd.f32 %v2991, %v3001
        %s3006 = sld [smem:[#allocation4 + $0x57]]
        %v3007 = vstv %s3006
        %v3008 = vmul.f32 %v3007, %v2970
        %v3009 = vmul.f32 %v3007, %v2971
        %3012 = vrot.lane.b32.xlu0 %v3008, 125
        %v3013 = vpop.permute.xlu0 %3012
        %3014 = vrot.lane.b32.xlu0 %v3009, 125
        %v3015 = vpop.permute.xlu0 %3014
        %v3018 = vadd.f32 %v3004, %v3013
        %v3019 = vadd.f32 %v3005, %v3015
        %s3020 = sld [smem:[#allocation4 + $0x58]]
        %v3021 = vstv %s3020
        %v3022 = vmul.f32 %v3021, %v2970
        %v3023 = vmul.f32 %v3021, %v2971
        %3026 = vrot.lane.b32.xlu0 %v3022, 124
        %v3027 = vpop.permute.xlu0 %3026
        %3028 = vrot.lane.b32.xlu0 %v3023, 124
        %v3029 = vpop.permute.xlu0 %3028
        %v3032 = vadd.f32 %v3018, %v3027
        %v3033 = vadd.f32 %v3019, %v3029
        %s3034 = sld [smem:[#allocation4 + $0x59]]
        %v3035 = vstv %s3034
        %v3036 = vmul.f32 %v3035, %v2970
        %v3037 = vmul.f32 %v3035, %v2971
        %3040 = vrot.lane.b32.xlu0 %v3036, 123
        %v3041 = vpop.permute.xlu0 %3040
        %3042 = vrot.lane.b32.xlu0 %v3037, 123
        %v3043 = vpop.permute.xlu0 %3042
        %v3046 = vadd.f32 %v3032, %v3041
        %v3047 = vadd.f32 %v3033, %v3043
        %s3048 = sld [smem:[#allocation4 + $0x5a]]
        %v3049 = vstv %s3048
        %v3050 = vmul.f32 %v3049, %v2970
        %v3051 = vmul.f32 %v3049, %v2971
        %3054 = vrot.lane.b32.xlu0 %v3050, 122
        %v3055 = vpop.permute.xlu0 %3054
        %3056 = vrot.lane.b32.xlu0 %v3051, 122
        %v3057 = vpop.permute.xlu0 %3056
        %v3060 = vadd.f32 %v3046, %v3055
        %v3061 = vadd.f32 %v3047, %v3057
        %v3062 = vld [vmem:[#allocation3] sm:$0xff]
        %v3063 = vld [vmem:[#allocation3 + $0x8] sm:$0xff]
        %v3064 = vadd.f32 %v3062, %v3060
        %v3065 = vadd.f32 %v3063, %v3061
        %3066 = vst.msk [vmem:[#allocation3] sm:$0xff] %vm276, %v3064
        %3067 = vst.msk [vmem:[#allocation3 + $0x8] sm:$0xff] %vm276, %v3065
        %v3068 = vld [vmem:[%s1789 + $0x6] sm:$0xff]
        %v3069 = vld [vmem:[%s1789 + $0xe] sm:$0xff]
        %s3070 = sld [smem:[#allocation4 + $0x5b]]
        %v3071 = vstv %s3070
        %v3072 = vmul.f32 %v3071, %v3068
        %v3073 = vmul.f32 %v3071, %v3069
        %v3074 = vadd.f32 %v3072, 0.0
        %v3075 = vadd.f32 %v3073, 0.0
        %s3076 = sld [smem:[#allocation4 + $0x5c]]
        %v3077 = vstv %s3076
        %v3078 = vmul.f32 %v3077, %v3068
        %v3079 = vmul.f32 %v3077, %v3069
        %3082 = vrot.lane.b32.xlu0 %v3078, 127
        %v3083 = vpop.permute.xlu0 %3082
        %3084 = vrot.lane.b32.xlu0 %v3079, 127
        %v3085 = vpop.permute.xlu0 %3084
        %v3088 = vadd.f32 %v3074, %v3083
        %v3089 = vadd.f32 %v3075, %v3085
        %s3090 = sld [smem:[#allocation4 + $0x5d]]
        %v3091 = vstv %s3090
        %v3092 = vmul.f32 %v3091, %v3068
        %v3093 = vmul.f32 %v3091, %v3069
        %3096 = vrot.lane.b32.xlu0 %v3092, 126
        %v3097 = vpop.permute.xlu0 %3096
        %3098 = vrot.lane.b32.xlu0 %v3093, 126
        %v3099 = vpop.permute.xlu0 %3098
        %v3102 = vadd.f32 %v3088, %v3097
        %v3103 = vadd.f32 %v3089, %v3099
        %s3104 = sld [smem:[#allocation4 + $0x5e]]
        %v3105 = vstv %s3104
        %v3106 = vmul.f32 %v3105, %v3068
        %v3107 = vmul.f32 %v3105, %v3069
        %3110 = vrot.lane.b32.xlu0 %v3106, 125
        %v3111 = vpop.permute.xlu0 %3110
        %3112 = vrot.lane.b32.xlu0 %v3107, 125
        %v3113 = vpop.permute.xlu0 %3112
        %v3116 = vadd.f32 %v3102, %v3111
        %v3117 = vadd.f32 %v3103, %v3113
        %s3118 = sld [smem:[#allocation4 + $0x5f]]
        %v3119 = vstv %s3118
        %v3120 = vmul.f32 %v3119, %v3068
        %v3121 = vmul.f32 %v3119, %v3069
        %3124 = vrot.lane.b32.xlu0 %v3120, 124
        %v3125 = vpop.permute.xlu0 %3124
        %3126 = vrot.lane.b32.xlu0 %v3121, 124
        %v3127 = vpop.permute.xlu0 %3126
        %v3130 = vadd.f32 %v3116, %v3125
        %v3131 = vadd.f32 %v3117, %v3127
        %s3132 = sld [smem:[#allocation4 + $0x60]]
        %v3133 = vstv %s3132
        %v3134 = vmul.f32 %v3133, %v3068
        %v3135 = vmul.f32 %v3133, %v3069
        %3138 = vrot.lane.b32.xlu0 %v3134, 123
        %v3139 = vpop.permute.xlu0 %3138
        %3140 = vrot.lane.b32.xlu0 %v3135, 123
        %v3141 = vpop.permute.xlu0 %3140
        %v3144 = vadd.f32 %v3130, %v3139
        %v3145 = vadd.f32 %v3131, %v3141
        %s3146 = sld [smem:[#allocation4 + $0x61]]
        %v3147 = vstv %s3146
        %v3148 = vmul.f32 %v3147, %v3068
        %v3149 = vmul.f32 %v3147, %v3069
        %3152 = vrot.lane.b32.xlu0 %v3148, 122
        %v3153 = vpop.permute.xlu0 %3152
        %3154 = vrot.lane.b32.xlu0 %v3149, 122
        %v3155 = vpop.permute.xlu0 %3154
        %v3158 = vadd.f32 %v3144, %v3153
        %v3159 = vadd.f32 %v3145, %v3155
        %v3160 = vld [vmem:[#allocation3] sm:$0xff]
        %v3161 = vld [vmem:[#allocation3 + $0x8] sm:$0xff]
        %v3162 = vadd.f32 %v3160, %v3158
        %v3163 = vadd.f32 %v3161, %v3159
        %3164 = vst.msk [vmem:[#allocation3] sm:$0xff] %vm276, %v3162
        %3165 = vst.msk [vmem:[#allocation3 + $0x8] sm:$0xff] %vm276, %v3163
        %v3166 = vld [vmem:[#allocation3] sm:$0xff]
        %v3167 = vld [vmem:[#allocation3 + $0x8] sm:$0xff]
        %v3168 = vxor.u32 %v3166, 2147483648
        %v3169 = vxor.u32 %v3167, 2147483648
        %v3170 = vmul.f32 %v3168, 1.442695
        %v3171 = vpow.pop %v3170
        %v3172 = vmul.f32 %v3169, 1.442695
        %v3173 = vpow.pop %v3172
        %v3174 = vadd.f32 %v3171, 1.0
        %v3175 = vadd.f32 %v3173, 1.0
        %v3176 = vrcp.pop %v3174
        %v3177 = vmul.f32 %v3174, %v3176
        %v3178 = vsub.f32 1.0, %v3177
        %v3179 = vmul.f32 %v3176, %v3178
        %v3180 = vadd.f32 %v3176, %v3179
        %vm3181 = vweird.f32 %v3174
        %vm3182 = vweird.f32 %v3176
        %vm3183 = vmor %vm3181, %vm3182
        %v3184 = vsel %vm3183, %v3176, %v3180
        %v3185 = vand.u32 2147483647, %v3174
        %vm3186 = vcmp.eq.f32.partialorder %v3185, 8.507059e+37
        %v3187 = vand.u32 %v3174, 2147483648
        %v3188 = vor.u32 1.1754944e-38, %v3187
        %v3189 = vsel %vm3186, %v3188, %v3184
        %v3190 = vmul.f32 1.0, %v3189
        %v3191 = vrcp.pop %v3175
        %v3192 = vmul.f32 %v3175, %v3191
        %v3193 = vsub.f32 1.0, %v3192
        %v3194 = vmul.f32 %v3191, %v3193
        %v3195 = vadd.f32 %v3191, %v3194
        %vm3196 = vweird.f32 %v3175
        %vm3197 = vweird.f32 %v3191
        %vm3198 = vmor %vm3196, %vm3197
        %v3199 = vsel %vm3198, %v3191, %v3195
        %v3200 = vand.u32 2147483647, %v3175
        %vm3201 = vcmp.eq.f32.partialorder %v3200, 8.507059e+37
        %v3202 = vand.u32 %v3175, 2147483648
        %v3203 = vor.u32 1.1754944e-38, %v3202
        %v3204 = vsel %vm3201, %v3203, %v3199
        %v3205 = vmul.f32 1.0, %v3204
        %v3206 = vmul.f32 %v1437, %v3190
        %v3207 = vmul.f32 %v1438, %v3205
        %v3208 = vmul.f32 %v1439, %v3190
        %v3209 = vmul.f32 %v1440, %v3205
        %v3210 = vmul.f32 %v1441, %v3190
        %v3211 = vmul.f32 %v1442, %v3205
        %v3212 = vmul.f32 %v1443, %v3190
        %v3213 = vmul.f32 %v1444, %v3205
        %v3214 = vmul.f32 %v1445, %v3190
        %v3215 = vmul.f32 %v1446, %v3205
        %v3216 = vmul.f32 %v1447, %v3190
        %v3217 = vmul.f32 %v1448, %v3205
        %v3218 = vmul.f32 %v1449, %v3190
        %v3219 = vmul.f32 %v1450, %v3205
        %v3220 = vmul.f32 %v1451, %v3190
        %v3221 = vmul.f32 %v1452, %v3205
        %v3222 = vmul.f32 %v1453, %v3190
        %v3223 = vmul.f32 %v1454, %v3205
        %v3224 = vmul.f32 %v1455, %v3190
        %v3225 = vmul.f32 %v1456, %v3205
        %v3226 = vmul.f32 %v1457, %v3190
        %v3227 = vmul.f32 %v1458, %v3205
        %v3228 = vmul.f32 %v1459, %v3190
        %v3229 = vmul.f32 %v1460, %v3205
        %v3230 = vmul.f32 %v1461, %v3190
        %v3231 = vmul.f32 %v1462, %v3205
        %v3232 = vmul.f32 %v1463, %v3190
        %v3233 = vmul.f32 %v1464, %v3205
        %v3234 = vmul.f32 %v1465, %v3190
        %v3235 = vmul.f32 %v1466, %v3205
        %v3236 = vmul.f32 %v1467, %v3190
        %v3237 = vmul.f32 %v1468, %v3205
        %v3238 = vmul.f32 %v1469, %v3190
        %v3239 = vmul.f32 %v1470, %v3205
        %v3240 = vmul.f32 %v1471, %v3190
        %v3241 = vmul.f32 %v1472, %v3205
        %v3242 = vmul.f32 %v1473, %v3190
        %v3243 = vmul.f32 %v1474, %v3205
        %v3244 = vmul.f32 %v1475, %v3190
        %v3245 = vmul.f32 %v1476, %v3205
        %v3246 = vmul.f32 %v1477, %v3190
        %v3247 = vmul.f32 %v1478, %v3205
        %v3248 = vmul.f32 %v1479, %v3190
        %v3249 = vmul.f32 %v1480, %v3205
        %v3250 = vmul.f32 %v1481, %v3190
        %v3251 = vmul.f32 %v1482, %v3205
        %v3252 = vmul.f32 %v1483, %v3190
        %v3253 = vmul.f32 %v1484, %v3205
        %v3254 = vmul.f32 %v1485, %v3190
        %v3255 = vmul.f32 %v1486, %v3205
        %v3256 = vmul.f32 %v1487, %v3190
        %v3257 = vmul.f32 %v1488, %v3205
        %v3258 = vmul.f32 %v1489, %v3190
        %v3259 = vmul.f32 %v1490, %v3205
        %v3260 = vmul.f32 %v1491, %v3190
        %v3261 = vmul.f32 %v1492, %v3205
        %v3262 = vmul.f32 %v1493, %v3190
        %v3263 = vmul.f32 %v1494, %v3205
        %v3264 = vmul.f32 %v1495, %v3190
        %v3265 = vmul.f32 %v1496, %v3205
        %v3266 = vmul.f32 %v1497, %v3190
        %v3267 = vmul.f32 %v1498, %v3205
        %v3268 = vmul.f32 %v1499, %v3190
        %v3269 = vmul.f32 %v1500, %v3205
        %3270 = vst.msk [vmem:[%s211] sm:$0xff] %vm276, %v3206
        %3271 = vst.msk [vmem:[%s211 + $0x8] sm:$0xff] %vm276, %v3207
        %3272 = vst.msk [vmem:[%s211 + $0x10] sm:$0xff] %vm276, %v3208
        %3273 = vst.msk [vmem:[%s211 + $0x18] sm:$0xff] %vm276, %v3209
        %3274 = vst.msk [vmem:[%s211 + $0x20] sm:$0xff] %vm276, %v3210
        %3275 = vst.msk [vmem:[%s211 + $0x28] sm:$0xff] %vm276, %v3211
        %3276 = vst.msk [vmem:[%s211 + $0x30] sm:$0xff] %vm276, %v3212
        %3277 = vst.msk [vmem:[%s211 + $0x38] sm:$0xff] %vm276, %v3213
        %3278 = vst.msk [vmem:[%s211 + $0x40] sm:$0xff] %vm276, %v3214
        %3279 = vst.msk [vmem:[%s211 + $0x48] sm:$0xff] %vm276, %v3215
        %3280 = vst.msk [vmem:[%s211 + $0x50] sm:$0xff] %vm276, %v3216
        %3281 = vst.msk [vmem:[%s211 + $0x58] sm:$0xff] %vm276, %v3217
        %3282 = vst.msk [vmem:[%s211 + $0x60] sm:$0xff] %vm276, %v3218
        %3283 = vst.msk [vmem:[%s211 + $0x68] sm:$0xff] %vm276, %v3219
        %3284 = vst.msk [vmem:[%s211 + $0x70] sm:$0xff] %vm276, %v3220
        %3285 = vst.msk [vmem:[%s211 + $0x78] sm:$0xff] %vm276, %v3221
        %3286 = vst.msk [vmem:[%s211 + $0x80] sm:$0xff] %vm276, %v3222
        %3287 = vst.msk [vmem:[%s211 + $0x88] sm:$0xff] %vm276, %v3223
        %3288 = vst.msk [vmem:[%s211 + $0x90] sm:$0xff] %vm276, %v3224
        %3289 = vst.msk [vmem:[%s211 + $0x98] sm:$0xff] %vm276, %v3225
        %3290 = vst.msk [vmem:[%s211 + $0xa0] sm:$0xff] %vm276, %v3226
        %3291 = vst.msk [vmem:[%s211 + $0xa8] sm:$0xff] %vm276, %v3227
        %3292 = vst.msk [vmem:[%s211 + $0xb0] sm:$0xff] %vm276, %v3228
        %3293 = vst.msk [vmem:[%s211 + $0xb8] sm:$0xff] %vm276, %v3229
        %3294 = vst.msk [vmem:[%s211 + $0xc0] sm:$0xff] %vm276, %v3230
        %3295 = vst.msk [vmem:[%s211 + $0xc8] sm:$0xff] %vm276, %v3231
        %3296 = vst.msk [vmem:[%s211 + $0xd0] sm:$0xff] %vm276, %v3232
        %3297 = vst.msk [vmem:[%s211 + $0xd8] sm:$0xff] %vm276, %v3233
        %3298 = vst.msk [vmem:[%s211 + $0xe0] sm:$0xff] %vm276, %v3234
        %3299 = vst.msk [vmem:[%s211 + $0xe8] sm:$0xff] %vm276, %v3235
        %3300 = vst.msk [vmem:[%s211 + $0xf0] sm:$0xff] %vm276, %v3236
        %3301 = vst.msk [vmem:[%s211 + $0xf8] sm:$0xff] %vm276, %v3237
        %3302 = vst.msk [vmem:[%s211 + $0x100] sm:$0xff] %vm276, %v3238
        %3303 = vst.msk [vmem:[%s211 + $0x108] sm:$0xff] %vm276, %v3239
        %3304 = vst.msk [vmem:[%s211 + $0x110] sm:$0xff] %vm276, %v3240
        %3305 = vst.msk [vmem:[%s211 + $0x118] sm:$0xff] %vm276, %v3241
        %3306 = vst.msk [vmem:[%s211 + $0x120] sm:$0xff] %vm276, %v3242
        %3307 = vst.msk [vmem:[%s211 + $0x128] sm:$0xff] %vm276, %v3243
        %3308 = vst.msk [vmem:[%s211 + $0x130] sm:$0xff] %vm276, %v3244
        %3309 = vst.msk [vmem:[%s211 + $0x138] sm:$0xff] %vm276, %v3245
        %3310 = vst.msk [vmem:[%s211 + $0x140] sm:$0xff] %vm276, %v3246
        %3311 = vst.msk [vmem:[%s211 + $0x148] sm:$0xff] %vm276, %v3247
        %3312 = vst.msk [vmem:[%s211 + $0x150] sm:$0xff] %vm276, %v3248
        %3313 = vst.msk [vmem:[%s211 + $0x158] sm:$0xff] %vm276, %v3249
        %3314 = vst.msk [vmem:[%s211 + $0x160] sm:$0xff] %vm276, %v3250
        %3315 = vst.msk [vmem:[%s211 + $0x168] sm:$0xff] %vm276, %v3251
        %3316 = vst.msk [vmem:[%s211 + $0x170] sm:$0xff] %vm276, %v3252
        %3317 = vst.msk [vmem:[%s211 + $0x178] sm:$0xff] %vm276, %v3253
        %3318 = vst.msk [vmem:[%s211 + $0x180] sm:$0xff] %vm276, %v3254
        %3319 = vst.msk [vmem:[%s211 + $0x188] sm:$0xff] %vm276, %v3255
        %3320 = vst.msk [vmem:[%s211 + $0x190] sm:$0xff] %vm276, %v3256
        %3321 = vst.msk [vmem:[%s211 + $0x198] sm:$0xff] %vm276, %v3257
        %3322 = vst.msk [vmem:[%s211 + $0x1a0] sm:$0xff] %vm276, %v3258
        %3323 = vst.msk [vmem:[%s211 + $0x1a8] sm:$0xff] %vm276, %v3259
        %3324 = vst.msk [vmem:[%s211 + $0x1b0] sm:$0xff] %vm276, %v3260
        %3325 = vst.msk [vmem:[%s211 + $0x1b8] sm:$0xff] %vm276, %v3261
        %3326 = vst.msk [vmem:[%s211 + $0x1c0] sm:$0xff] %vm276, %v3262
        %3327 = vst.msk [vmem:[%s211 + $0x1c8] sm:$0xff] %vm276, %v3263
        %3328 = vst.msk [vmem:[%s211 + $0x1d0] sm:$0xff] %vm276, %v3264
        %3329 = vst.msk [vmem:[%s211 + $0x1d8] sm:$0xff] %vm276, %v3265
        %3330 = vst.msk [vmem:[%s211 + $0x1e0] sm:$0xff] %vm276, %v3266
        %3331 = vst.msk [vmem:[%s211 + $0x1e8] sm:$0xff] %vm276, %v3267
        %3332 = vst.msk [vmem:[%s211 + $0x1f0] sm:$0xff] %vm276, %v3268
        %3333 = vst.msk [vmem:[%s211 + $0x1f8] sm:$0xff] %vm276, %v3269
        %p3334 = scmp.lt.s32.totalorder %s16, 1
        %s3335 = scalar_select %p3334, %s16, 1
        %s3336 = smul.addr %s3335, 64
        %s3337 = smul.addr %s3336, 8
        %s3338 = scalar_lea.vmem %s4, %s3337
        // Predicated region
        $region41: #{cbam_forward.1} parent=35 // pred_check
          %p3339 = pneg %p123
        $region42: #{cbam_forward.1} parent=35 // pred_check_branch
          %3341 = sbr.rel (%p3339) target = $region44
        $region43: #{cbam_forward.1} parent=35 // pred_region
          _
        $region44: #{cbam_forward.1} parent=35 // pred_fallthru
          _
      $region36: #{cbam_forward.1} parent=5 // pred_fallthru
        _
      %p3342 = scmp.le.s32.totalorder 2, %s11
      // Predicated region
      $region45: #{cbam_forward.1} parent=5 // pred_check
        %p3343 = pneg %p3342
      $region46: #{cbam_forward.1} parent=5 // pred_check_branch
        %3345 = sbr.rel (%p3343) target = $region48
      $region47: #{cbam_forward.1} parent=5 // pred_region
        %s3346 = ssub.s32 %s11, 2
        // Predicated region
        $region49: #{cbam_forward.1} parent=47 // pred_check
          %p3347 = pneg %p129
        $region50: #{cbam_forward.1} parent=47 // pred_check_branch
          %3349 = sbr.rel (%p3347) target = $region52
        $region51: #{cbam_forward.1} parent=47 // pred_region
          %p3350 = scmp.lt.s32.totalorder %s17, 1
          %s3351 = scalar_select %p3350, %s17, 1
          %s3352 = smul.addr %s3351, 64
          %s3353 = smul.addr %s3352, 8
          %s3354 = scalar_lea.vmem %s4, %s3353
        $region52: #{cbam_forward.1} parent=47 // pred_fallthru
          _
      $region48: #{cbam_forward.1} parent=5 // pred_fallthru
        _
    $region6: #{cbam_forward.1} parent=1 // loop_footer
      %s15 = sadd.s32 1, %s11
    $region7: #{cbam_forward.1} parent=1 // loop_footer_branch
      %10 = sbr.rel target = $region3
    $region8: #{cbam_forward.1} parent=1 // loop_exit
      _
    %3355 = vsyncpa [#allocation5], 1
    %s3356 = scalar_lea.sflag [#allocation5], 1
    %3357 = vsyncpa %s3356, 1

</llo_original>
